<compile_context>
chip_gen: v7x
topology: tpu7x:2x2x1
jax: 0.10.0
libtpu: 0.0.40
codegen_flags: <defaults>
</compile_context>

<pallas_src>
import jax
import jax.numpy as jnp
from jax.experimental import pallas as pl
from jax.experimental.pallas import tpu as pltpu

INPUT_SIZE = 1
HIDDEN = 128          # nn.LSTM default hidden_layer_size in the module
OUTPUT_SIZE = 1
SEQ = 8


def _sigmoid(x):
    # One EUP op (tanh) + two VPU ops; avoids a possible exp + reciprocal pair.
    return 0.5 * jnp.tanh(0.5 * x) + 0.5


def _cell(gates, c):
    """LSTM cell elementwise math, gate layout [i|f|g|o]; c-path finishes first."""
    H = HIDDEN
    i = _sigmoid(gates[:, 0:H])
    f = _sigmoid(gates[:, H:2 * H])
    g = jnp.tanh(gates[:, 2 * H:3 * H])
    c_new = f * c + i * g
    tanh_c = jnp.tanh(c_new)
    o = _sigmoid(gates[:, 3 * H:4 * H])      # overlaps tanh(c_new) on the EUP
    return o * tanh_c, c_new


def lstm_kernel(x_ref, wih0_ref, b0_ref, whh0_ref, b1_ref,
                wlin_ref, blin_ref, w1_hbm_ref,
                out_ref,
                w1_vmem, w1_sem):
    H = HIDDEN
    T = x_ref.shape[0]
    bf16 = jnp.bfloat16
    f32 = jnp.float32

    # Kick off the layer-1 fused-weight DMA immediately; it overlaps with the
    # layer-0 input projection and layer-0 step 0 below.
    w1_copy = pltpu.make_async_copy(w1_hbm_ref, w1_vmem, w1_sem)
    w1_copy.start()

    # Layer-0 input projection for ALL timesteps: (T,1)*(1,4H)+b0 on the VPU.
    gates0_in = x_ref[...] * wih0_ref[...] + b0_ref[...]          # (T, 4H) f32

    whh0 = whh0_ref[...]                                          # (H, 4H) bf16
    b1 = b1_ref[...]                                              # (1, 4H) f32
    zeros = jnp.zeros((1, H), f32)

    def l0_step(t, h0, c0):
        gates = gates0_in[t:t + 1, :] + jnp.dot(
            h0.astype(bf16), whh0, preferred_element_type=f32)
        return _cell(gates, c0)

    def l1_step(h0_t, h1, c1, w1):
        # Fused input+recurrent projection: [h0_t | h1_{t-1}] @ [wih1; whh1].
        hh = jnp.concatenate([h0_t, h1], axis=-1).astype(bf16)    # (1, 2H)
        gates = jnp.dot(hh, w1, preferred_element_type=f32) + b1
        return _cell(gates, c1)

    # Layer-0 step 0: h0_prev = 0, so the recurrent matmul is exactly zero.
    h0, c0 = _cell(gates0_in[0:1, :], zeros)

    w1_copy.wait()
    w1 = w1_vmem[...]                                             # (2H, 4H) bf16

    h1, c1 = l1_step(h0, zeros, zeros, w1)
    # Wavefront: layer-0 step t is independent of layer-1 step t-1, so the
    # unrolled code exposes both per-"diagonal" matmuls to the scheduler.
    for t in range(1, T):
        h0, c0 = l0_step(t, h0, c0)
        h1, c1 = l1_step(h0, h1, c1, w1)

    # Linear head on the final top-layer hidden state -> (1, OUTPUT_SIZE).
    out_ref[...] = (jnp.dot(h1.astype(bf16), wlin_ref[...],
                            preferred_element_type=f32)
                    + blin_ref[...])


def lstm_forward(x, params):
    """x: (T, 1) f32. Returns the prediction of shape (OUTPUT_SIZE,) == (1,)."""
    wih0, b0, whh0_bf, b1, w1_bf, wlin_bf, blin = params
    vmem = pl.BlockSpec(memory_space=pltpu.MemorySpace.VMEM)
    hbm = pl.BlockSpec(memory_space=pl.ANY)       # fused W1: manual DMA overlap
    out = pl.pallas_call(
        lstm_kernel,
        out_shape=jax.ShapeDtypeStruct((1, OUTPUT_SIZE), jnp.float32),
        in_specs=[vmem, vmem, vmem, vmem, vmem, vmem, vmem, hbm],
        out_specs=vmem,
        scratch_shapes=[
            pltpu.VMEM((2 * HIDDEN, 4 * HIDDEN), jnp.bfloat16),   # fused W1 tile
            pltpu.SemaphoreType.DMA(()),                          # its DMA sem
        ],
    )(x, wih0, b0, whh0_bf, b1, wlin_bf, blin, w1_bf)
    return out[0]                                          # shape (OUTPUT_SIZE,)


def ref_forward(x, params):
    """Pure-JAX reference: PyTorch LSTM equations with the SAME bf16-quantized
    matmul operands and f32 accumulation/elementwise math as the kernel."""
    H = HIDDEN
    bf16 = jnp.bfloat16
    f32 = jnp.float32
    wih0, b0, whh0_bf, b1, w1_bf, wlin_bf, blin = params
    wih1_bf = w1_bf[:H, :]
    whh1_bf = w1_bf[H:, :]

    h0 = c0 = h1 = c1 = jnp.zeros((1, H), f32)
    for t in range(x.shape[0]):
        g0 = (x[t:t + 1, :] * wih0 + b0
              + jnp.dot(h0.astype(bf16), whh0_bf, preferred_element_type=f32))
        h0, c0 = _cell(g0, c0)
        g1 = (jnp.dot(h0.astype(bf16), wih1_bf, preferred_element_type=f32)
              + jnp.dot(h1.astype(bf16), whh1_bf, preferred_element_type=f32)
              + b1)
        h1, c1 = _cell(g1, c1)
    return (jnp.dot(h1.astype(bf16), wlin_bf, preferred_element_type=f32)
            + blin)[0]


def make_params(key):
    """Deterministic synthetic parameters (PyTorch-style U(-1/sqrt(H), 1/sqrt(H))).
    Matmul weights are pre-transposed to (in, out); MXU operands cast to bf16;
    layer-1 input/recurrent weights pre-concatenated into one (2H, 4H) matrix."""
    ks = jax.random.split(key, 10)
    bound = 1.0 / jnp.sqrt(jnp.float32(HIDDEN))

    def u(k, shape):
        return jax.random.uniform(k, shape, jnp.float32, -bound, bound)

    wih0 = u(ks[0], (INPUT_SIZE, 4 * HIDDEN))                       # f32 (VPU path)
    b0 = u(ks[1], (1, 4 * HIDDEN)) + u(ks[2], (1, 4 * HIDDEN))      # b_ih0 + b_hh0
    whh0_bf = u(ks[3], (HIDDEN, 4 * HIDDEN)).astype(jnp.bfloat16)
    wih1 = u(ks[4], (HIDDEN, 4 * HIDDEN))
    whh1 = u(ks[5], (HIDDEN, 4 * HIDDEN))
    b1 = u(ks[6], (1, 4 * HIDDEN)) + u(ks[7], (1, 4 * HIDDEN))      # b_ih1 + b_hh1
    w1_bf = jnp.concatenate([wih1, whh1], axis=0).astype(jnp.bfloat16)  # (2H, 4H)
    wlin_bf = u(ks[8], (HIDDEN, OUTPUT_SIZE)).astype(jnp.bfloat16)
    blin = u(ks[9], (1, OUTPUT_SIZE))
    return (wih0, b0, whh0_bf, b1, w1_bf, wlin_bf, blin)


if __name__ == "__main__":
    key = jax.random.PRNGKey(0)
    pkey, xkey = jax.random.split(key)
    params = make_params(pkey)

    # input_seq: a length-SEQ sequence of scalars (the module views it as (T,1,1)).
    x = jax.random.normal(xkey, (SEQ, INPUT_SIZE), dtype=jnp.float32)

    pred = jax.block_until_ready(lstm_forward(x, params))
    ref = jax.block_until_ready(ref_forward(x, params))

    assert pred.shape == (OUTPUT_SIZE,), pred.shape
    assert jnp.allclose(pred, ref, atol=2e-3, rtol=2e-3), (pred, ref)
    print("KERNEL_OK")
</pallas_src>

<mosaic_0001>
module attributes {stable_mosaic.version = 11 : i64} {
  func.func @lstm_kernel(%arg0: memref<8x1xf32, #tpu.memory_space<vmem>>, %arg1: memref<1x512xf32, #tpu.memory_space<vmem>>, %arg2: memref<1x512xf32, #tpu.memory_space<vmem>>, %arg3: memref<128x512xbf16, #tpu.memory_space<vmem>>, %arg4: memref<1x512xf32, #tpu.memory_space<vmem>>, %arg5: memref<128x1xbf16, #tpu.memory_space<vmem>>, %arg6: memref<1x1xf32, #tpu.memory_space<vmem>>, %arg7: memref<256x512xbf16, #tpu.memory_space<any>>, %arg8: memref<1x1xf32, #tpu.memory_space<vmem>>, %arg9: memref<256x512xbf16, #tpu.memory_space<vmem>>, %arg10: memref<!tpu.dma_semaphore, #tpu.memory_space<semaphore_mem>>) attributes {dimension_semantics = [], scalar_prefetch = 0 : i64, scratch_operands = 2 : i64, tpu.core_type = #tpu.core_type<tc>} {
    tpu.enqueue_dma source(%arg7 : memref<256x512xbf16, #tpu.memory_space<any>>) target(%arg9 : memref<256x512xbf16, #tpu.memory_space<vmem>>) target_semaphore(%arg10 : memref<!tpu.dma_semaphore, #tpu.memory_space<semaphore_mem>>)
    %c0 = arith.constant 0 : index
    %c0_0 = arith.constant 0 : index
    %0 = vector.load %arg0[%c0, %c0_0] : memref<8x1xf32, #tpu.memory_space<vmem>>, vector<8x1xf32>
    %c0_1 = arith.constant 0 : index
    %c0_2 = arith.constant 0 : index
    %1 = vector.load %arg1[%c0_1, %c0_2] : memref<1x512xf32, #tpu.memory_space<vmem>>, vector<1x512xf32>
    %2 = vector.broadcast %0 : vector<8x1xf32> to vector<8x512xf32>
    %3 = vector.broadcast %1 : vector<1x512xf32> to vector<8x512xf32>
    %4 = arith.mulf %2, %3 : vector<8x512xf32>
    %c0_3 = arith.constant 0 : index
    %c0_4 = arith.constant 0 : index
    %5 = vector.load %arg2[%c0_3, %c0_4] : memref<1x512xf32, #tpu.memory_space<vmem>>, vector<1x512xf32>
    %6 = vector.broadcast %5 : vector<1x512xf32> to vector<8x512xf32>
    %7 = arith.addf %4, %6 : vector<8x512xf32>
    %c0_5 = arith.constant 0 : index
    %c0_6 = arith.constant 0 : index
    %8 = vector.load %arg3[%c0_5, %c0_6] : memref<128x512xbf16, #tpu.memory_space<vmem>>, vector<128x512xbf16>
    %c0_7 = arith.constant 0 : index
    %c0_8 = arith.constant 0 : index
    %9 = vector.load %arg4[%c0_7, %c0_8] : memref<1x512xf32, #tpu.memory_space<vmem>>, vector<1x512xf32>
    %cst = arith.constant 0.000000e+00 : f32
    %10 = vector.broadcast %cst : f32 to vector<1x128xf32>
    %11 = vector.extract_strided_slice %7 {offsets = [0, 0], sizes = [1, 512], strides = [1, 1]} : vector<8x512xf32> to vector<1x512xf32>
    %12 = vector.extract_strided_slice %11 {offsets = [0, 0], sizes = [1, 128], strides = [1, 1]} : vector<1x512xf32> to vector<1x128xf32>
    %cst_9 = arith.constant 5.000000e-01 : f32
    %13 = vector.broadcast %cst_9 : f32 to vector<1x128xf32>
    %14 = arith.mulf %13, %12 : vector<1x128xf32>
    %15 = math.tanh %14 : vector<1x128xf32>
    %cst_10 = arith.constant 5.000000e-01 : f32
    %16 = vector.broadcast %cst_10 : f32 to vector<1x128xf32>
    %17 = arith.mulf %16, %15 : vector<1x128xf32>
    %cst_11 = arith.constant 5.000000e-01 : f32
    %18 = vector.broadcast %cst_11 : f32 to vector<1x128xf32>
    %19 = arith.addf %17, %18 : vector<1x128xf32>
    %20 = vector.extract_strided_slice %11 {offsets = [0, 128], sizes = [1, 128], strides = [1, 1]} : vector<1x512xf32> to vector<1x128xf32>
    %cst_12 = arith.constant 5.000000e-01 : f32
    %21 = vector.broadcast %cst_12 : f32 to vector<1x128xf32>
    %22 = arith.mulf %21, %20 : vector<1x128xf32>
    %23 = math.tanh %22 : vector<1x128xf32>
    %cst_13 = arith.constant 5.000000e-01 : f32
    %24 = vector.broadcast %cst_13 : f32 to vector<1x128xf32>
    %25 = arith.mulf %24, %23 : vector<1x128xf32>
    %cst_14 = arith.constant 5.000000e-01 : f32
    %26 = vector.broadcast %cst_14 : f32 to vector<1x128xf32>
    %27 = arith.addf %25, %26 : vector<1x128xf32>
    %28 = vector.extract_strided_slice %11 {offsets = [0, 256], sizes = [1, 128], strides = [1, 1]} : vector<1x512xf32> to vector<1x128xf32>
    %29 = math.tanh %28 : vector<1x128xf32>
    %30 = arith.mulf %27, %10 : vector<1x128xf32>
    %31 = arith.mulf %19, %29 : vector<1x128xf32>
    %32 = arith.addf %30, %31 : vector<1x128xf32>
    %33 = math.tanh %32 : vector<1x128xf32>
    %34 = vector.extract_strided_slice %11 {offsets = [0, 384], sizes = [1, 128], strides = [1, 1]} : vector<1x512xf32> to vector<1x128xf32>
    %cst_15 = arith.constant 5.000000e-01 : f32
    %35 = vector.broadcast %cst_15 : f32 to vector<1x128xf32>
    %36 = arith.mulf %35, %34 : vector<1x128xf32>
    %37 = math.tanh %36 : vector<1x128xf32>
    %cst_16 = arith.constant 5.000000e-01 : f32
    %38 = vector.broadcast %cst_16 : f32 to vector<1x128xf32>
    %39 = arith.mulf %38, %37 : vector<1x128xf32>
    %cst_17 = arith.constant 5.000000e-01 : f32
    %40 = vector.broadcast %cst_17 : f32 to vector<1x128xf32>
    %41 = arith.addf %39, %40 : vector<1x128xf32>
    %42 = arith.mulf %41, %33 : vector<1x128xf32>
    tpu.wait_dma2 semaphore(%arg10 : memref<!tpu.dma_semaphore, #tpu.memory_space<semaphore_mem>>) src(%arg7 : memref<256x512xbf16, #tpu.memory_space<any>>) dst(%arg9 : memref<256x512xbf16, #tpu.memory_space<vmem>>)
    %c0_18 = arith.constant 0 : index
    %c0_19 = arith.constant 0 : index
    %43 = vector.load %arg9[%c0_18, %c0_19] : memref<256x512xbf16, #tpu.memory_space<vmem>>, vector<256x512xbf16>
    %44 = tpu.concatenate %42, %10 in 1 : vector<1x128xf32>, vector<1x128xf32> -> vector<1x256xf32>
    %45 = arith.truncf %44 : vector<1x256xf32> to vector<1x256xbf16>
    %cst_20 = arith.constant dense<0.000000e+00> : vector<1x512xf32>
    %46 = tpu.matmul %45, %43, %cst_20 {dimension_numbers = #tpu.dot_dimension_numbers<[1], [0], [0], [1], [0, 0, 1, 1], [], []>} : vector<1x256xbf16>, vector<256x512xbf16>, vector<1x512xf32> -> vector<1x512xf32>
    %47 = arith.addf %46, %9 : vector<1x512xf32>
    %48 = vector.extract_strided_slice %47 {offsets = [0, 0], sizes = [1, 128], strides = [1, 1]} : vector<1x512xf32> to vector<1x128xf32>
    %cst_21 = arith.constant 5.000000e-01 : f32
    %49 = vector.broadcast %cst_21 : f32 to vector<1x128xf32>
    %50 = arith.mulf %49, %48 : vector<1x128xf32>
    %51 = math.tanh %50 : vector<1x128xf32>
    %cst_22 = arith.constant 5.000000e-01 : f32
    %52 = vector.broadcast %cst_22 : f32 to vector<1x128xf32>
    %53 = arith.mulf %52, %51 : vector<1x128xf32>
    %cst_23 = arith.constant 5.000000e-01 : f32
    %54 = vector.broadcast %cst_23 : f32 to vector<1x128xf32>
    %55 = arith.addf %53, %54 : vector<1x128xf32>
    %56 = vector.extract_strided_slice %47 {offsets = [0, 128], sizes = [1, 128], strides = [1, 1]} : vector<1x512xf32> to vector<1x128xf32>
    %cst_24 = arith.constant 5.000000e-01 : f32
    %57 = vector.broadcast %cst_24 : f32 to vector<1x128xf32>
    %58 = arith.mulf %57, %56 : vector<1x128xf32>
    %59 = math.tanh %58 : vector<1x128xf32>
    %cst_25 = arith.constant 5.000000e-01 : f32
    %60 = vector.broadcast %cst_25 : f32 to vector<1x128xf32>
    %61 = arith.mulf %60, %59 : vector<1x128xf32>
    %cst_26 = arith.constant 5.000000e-01 : f32
    %62 = vector.broadcast %cst_26 : f32 to vector<1x128xf32>
    %63 = arith.addf %61, %62 : vector<1x128xf32>
    %64 = vector.extract_strided_slice %47 {offsets = [0, 256], sizes = [1, 128], strides = [1, 1]} : vector<1x512xf32> to vector<1x128xf32>
    %65 = math.tanh %64 : vector<1x128xf32>
    %66 = arith.mulf %63, %10 : vector<1x128xf32>
    %67 = arith.mulf %55, %65 : vector<1x128xf32>
    %68 = arith.addf %66, %67 : vector<1x128xf32>
    %69 = math.tanh %68 : vector<1x128xf32>
    %70 = vector.extract_strided_slice %47 {offsets = [0, 384], sizes = [1, 128], strides = [1, 1]} : vector<1x512xf32> to vector<1x128xf32>
    %cst_27 = arith.constant 5.000000e-01 : f32
    %71 = vector.broadcast %cst_27 : f32 to vector<1x128xf32>
    %72 = arith.mulf %71, %70 : vector<1x128xf32>
    %73 = math.tanh %72 : vector<1x128xf32>
    %cst_28 = arith.constant 5.000000e-01 : f32
    %74 = vector.broadcast %cst_28 : f32 to vector<1x128xf32>
    %75 = arith.mulf %74, %73 : vector<1x128xf32>
    %cst_29 = arith.constant 5.000000e-01 : f32
    %76 = vector.broadcast %cst_29 : f32 to vector<1x128xf32>
    %77 = arith.addf %75, %76 : vector<1x128xf32>
    %78 = arith.mulf %77, %69 : vector<1x128xf32>
    %79 = vector.extract_strided_slice %7 {offsets = [1, 0], sizes = [1, 512], strides = [1, 1]} : vector<8x512xf32> to vector<1x512xf32>
    %80 = arith.truncf %42 : vector<1x128xf32> to vector<1x128xbf16>
    %cst_30 = arith.constant dense<0.000000e+00> : vector<1x512xf32>
    %81 = tpu.matmul %80, %8, %cst_30 {dimension_numbers = #tpu.dot_dimension_numbers<[1], [0], [0], [1], [0, 0, 1, 1], [], []>} : vector<1x128xbf16>, vector<128x512xbf16>, vector<1x512xf32> -> vector<1x512xf32>
    %82 = arith.addf %79, %81 : vector<1x512xf32>
    %83 = vector.extract_strided_slice %82 {offsets = [0, 0], sizes = [1, 128], strides = [1, 1]} : vector<1x512xf32> to vector<1x128xf32>
    %cst_31 = arith.constant 5.000000e-01 : f32
    %84 = vector.broadcast %cst_31 : f32 to vector<1x128xf32>
    %85 = arith.mulf %84, %83 : vector<1x128xf32>
    %86 = math.tanh %85 : vector<1x128xf32>
    %cst_32 = arith.constant 5.000000e-01 : f32
    %87 = vector.broadcast %cst_32 : f32 to vector<1x128xf32>
    %88 = arith.mulf %87, %86 : vector<1x128xf32>
    %cst_33 = arith.constant 5.000000e-01 : f32
    %89 = vector.broadcast %cst_33 : f32 to vector<1x128xf32>
    %90 = arith.addf %88, %89 : vector<1x128xf32>
    %91 = vector.extract_strided_slice %82 {offsets = [0, 128], sizes = [1, 128], strides = [1, 1]} : vector<1x512xf32> to vector<1x128xf32>
    %cst_34 = arith.constant 5.000000e-01 : f32
    %92 = vector.broadcast %cst_34 : f32 to vector<1x128xf32>
    %93 = arith.mulf %92, %91 : vector<1x128xf32>
    %94 = math.tanh %93 : vector<1x128xf32>
    %cst_35 = arith.constant 5.000000e-01 : f32
    %95 = vector.broadcast %cst_35 : f32 to vector<1x128xf32>
    %96 = arith.mulf %95, %94 : vector<1x128xf32>
    %cst_36 = arith.constant 5.000000e-01 : f32
    %97 = vector.broadcast %cst_36 : f32 to vector<1x128xf32>
    %98 = arith.addf %96, %97 : vector<1x128xf32>
    %99 = vector.extract_strided_slice %82 {offsets = [0, 256], sizes = [1, 128], strides = [1, 1]} : vector<1x512xf32> to vector<1x128xf32>
    %100 = math.tanh %99 : vector<1x128xf32>
    %101 = arith.mulf %98, %32 : vector<1x128xf32>
    %102 = arith.mulf %90, %100 : vector<1x128xf32>
    %103 = arith.addf %101, %102 : vector<1x128xf32>
    %104 = math.tanh %103 : vector<1x128xf32>
    %105 = vector.extract_strided_slice %82 {offsets = [0, 384], sizes = [1, 128], strides = [1, 1]} : vector<1x512xf32> to vector<1x128xf32>
    %cst_37 = arith.constant 5.000000e-01 : f32
    %106 = vector.broadcast %cst_37 : f32 to vector<1x128xf32>
    %107 = arith.mulf %106, %105 : vector<1x128xf32>
    %108 = math.tanh %107 : vector<1x128xf32>
    %cst_38 = arith.constant 5.000000e-01 : f32
    %109 = vector.broadcast %cst_38 : f32 to vector<1x128xf32>
    %110 = arith.mulf %109, %108 : vector<1x128xf32>
    %cst_39 = arith.constant 5.000000e-01 : f32
    %111 = vector.broadcast %cst_39 : f32 to vector<1x128xf32>
    %112 = arith.addf %110, %111 : vector<1x128xf32>
    %113 = arith.mulf %112, %104 : vector<1x128xf32>
    %114 = tpu.concatenate %113, %78 in 1 : vector<1x128xf32>, vector<1x128xf32> -> vector<1x256xf32>
    %115 = arith.truncf %114 : vector<1x256xf32> to vector<1x256xbf16>
    %cst_40 = arith.constant dense<0.000000e+00> : vector<1x512xf32>
    %116 = tpu.matmul %115, %43, %cst_40 {dimension_numbers = #tpu.dot_dimension_numbers<[1], [0], [0], [1], [0, 0, 1, 1], [], []>} : vector<1x256xbf16>, vector<256x512xbf16>, vector<1x512xf32> -> vector<1x512xf32>
    %117 = arith.addf %116, %9 : vector<1x512xf32>
    %118 = vector.extract_strided_slice %117 {offsets = [0, 0], sizes = [1, 128], strides = [1, 1]} : vector<1x512xf32> to vector<1x128xf32>
    %cst_41 = arith.constant 5.000000e-01 : f32
    %119 = vector.broadcast %cst_41 : f32 to vector<1x128xf32>
    %120 = arith.mulf %119, %118 : vector<1x128xf32>
    %121 = math.tanh %120 : vector<1x128xf32>
    %cst_42 = arith.constant 5.000000e-01 : f32
    %122 = vector.broadcast %cst_42 : f32 to vector<1x128xf32>
    %123 = arith.mulf %122, %121 : vector<1x128xf32>
    %cst_43 = arith.constant 5.000000e-01 : f32
    %124 = vector.broadcast %cst_43 : f32 to vector<1x128xf32>
    %125 = arith.addf %123, %124 : vector<1x128xf32>
    %126 = vector.extract_strided_slice %117 {offsets = [0, 128], sizes = [1, 128], strides = [1, 1]} : vector<1x512xf32> to vector<1x128xf32>
    %cst_44 = arith.constant 5.000000e-01 : f32
    %127 = vector.broadcast %cst_44 : f32 to vector<1x128xf32>
    %128 = arith.mulf %127, %126 : vector<1x128xf32>
    %129 = math.tanh %128 : vector<1x128xf32>
    %cst_45 = arith.constant 5.000000e-01 : f32
    %130 = vector.broadcast %cst_45 : f32 to vector<1x128xf32>
    %131 = arith.mulf %130, %129 : vector<1x128xf32>
    %cst_46 = arith.constant 5.000000e-01 : f32
    %132 = vector.broadcast %cst_46 : f32 to vector<1x128xf32>
    %133 = arith.addf %131, %132 : vector<1x128xf32>
    %134 = vector.extract_strided_slice %117 {offsets = [0, 256], sizes = [1, 128], strides = [1, 1]} : vector<1x512xf32> to vector<1x128xf32>
    %135 = math.tanh %134 : vector<1x128xf32>
    %136 = arith.mulf %133, %68 : vector<1x128xf32>
    %137 = arith.mulf %125, %135 : vector<1x128xf32>
    %138 = arith.addf %136, %137 : vector<1x128xf32>
    %139 = math.tanh %138 : vector<1x128xf32>
    %140 = vector.extract_strided_slice %117 {offsets = [0, 384], sizes = [1, 128], strides = [1, 1]} : vector<1x512xf32> to vector<1x128xf32>
    %cst_47 = arith.constant 5.000000e-01 : f32
    %141 = vector.broadcast %cst_47 : f32 to vector<1x128xf32>
    %142 = arith.mulf %141, %140 : vector<1x128xf32>
    %143 = math.tanh %142 : vector<1x128xf32>
    %cst_48 = arith.constant 5.000000e-01 : f32
    %144 = vector.broadcast %cst_48 : f32 to vector<1x128xf32>
    %145 = arith.mulf %144, %143 : vector<1x128xf32>
    %cst_49 = arith.constant 5.000000e-01 : f32
    %146 = vector.broadcast %cst_49 : f32 to vector<1x128xf32>
    %147 = arith.addf %145, %146 : vector<1x128xf32>
    %148 = arith.mulf %147, %139 : vector<1x128xf32>
    %149 = vector.extract_strided_slice %7 {offsets = [2, 0], sizes = [1, 512], strides = [1, 1]} : vector<8x512xf32> to vector<1x512xf32>
    %150 = arith.truncf %113 : vector<1x128xf32> to vector<1x128xbf16>
    %cst_50 = arith.constant dense<0.000000e+00> : vector<1x512xf32>
    %151 = tpu.matmul %150, %8, %cst_50 {dimension_numbers = #tpu.dot_dimension_numbers<[1], [0], [0], [1], [0, 0, 1, 1], [], []>} : vector<1x128xbf16>, vector<128x512xbf16>, vector<1x512xf32> -> vector<1x512xf32>
    %152 = arith.addf %149, %151 : vector<1x512xf32>
    %153 = vector.extract_strided_slice %152 {offsets = [0, 0], sizes = [1, 128], strides = [1, 1]} : vector<1x512xf32> to vector<1x128xf32>
    %cst_51 = arith.constant 5.000000e-01 : f32
    %154 = vector.broadcast %cst_51 : f32 to vector<1x128xf32>
    %155 = arith.mulf %154, %153 : vector<1x128xf32>
    %156 = math.tanh %155 : vector<1x128xf32>
    %cst_52 = arith.constant 5.000000e-01 : f32
    %157 = vector.broadcast %cst_52 : f32 to vector<1x128xf32>
    %158 = arith.mulf %157, %156 : vector<1x128xf32>
    %cst_53 = arith.constant 5.000000e-01 : f32
    %159 = vector.broadcast %cst_53 : f32 to vector<1x128xf32>
    %160 = arith.addf %158, %159 : vector<1x128xf32>
    %161 = vector.extract_strided_slice %152 {offsets = [0, 128], sizes = [1, 128], strides = [1, 1]} : vector<1x512xf32> to vector<1x128xf32>
    %cst_54 = arith.constant 5.000000e-01 : f32
    %162 = vector.broadcast %cst_54 : f32 to vector<1x128xf32>
    %163 = arith.mulf %162, %161 : vector<1x128xf32>
    %164 = math.tanh %163 : vector<1x128xf32>
    %cst_55 = arith.constant 5.000000e-01 : f32
    %165 = vector.broadcast %cst_55 : f32 to vector<1x128xf32>
    %166 = arith.mulf %165, %164 : vector<1x128xf32>
    %cst_56 = arith.constant 5.000000e-01 : f32
    %167 = vector.broadcast %cst_56 : f32 to vector<1x128xf32>
    %168 = arith.addf %166, %167 : vector<1x128xf32>
    %169 = vector.extract_strided_slice %152 {offsets = [0, 256], sizes = [1, 128], strides = [1, 1]} : vector<1x512xf32> to vector<1x128xf32>
    %170 = math.tanh %169 : vector<1x128xf32>
    %171 = arith.mulf %168, %103 : vector<1x128xf32>
    %172 = arith.mulf %160, %170 : vector<1x128xf32>
    %173 = arith.addf %171, %172 : vector<1x128xf32>
    %174 = math.tanh %173 : vector<1x128xf32>
    %175 = vector.extract_strided_slice %152 {offsets = [0, 384], sizes = [1, 128], strides = [1, 1]} : vector<1x512xf32> to vector<1x128xf32>
    %cst_57 = arith.constant 5.000000e-01 : f32
    %176 = vector.broadcast %cst_57 : f32 to vector<1x128xf32>
    %177 = arith.mulf %176, %175 : vector<1x128xf32>
    %178 = math.tanh %177 : vector<1x128xf32>
    %cst_58 = arith.constant 5.000000e-01 : f32
    %179 = vector.broadcast %cst_58 : f32 to vector<1x128xf32>
    %180 = arith.mulf %179, %178 : vector<1x128xf32>
    %cst_59 = arith.constant 5.000000e-01 : f32
    %181 = vector.broadcast %cst_59 : f32 to vector<1x128xf32>
    %182 = arith.addf %180, %181 : vector<1x128xf32>
    %183 = arith.mulf %182, %174 : vector<1x128xf32>
    %184 = tpu.concatenate %183, %148 in 1 : vector<1x128xf32>, vector<1x128xf32> -> vector<1x256xf32>
    %185 = arith.truncf %184 : vector<1x256xf32> to vector<1x256xbf16>
    %cst_60 = arith.constant dense<0.000000e+00> : vector<1x512xf32>
    %186 = tpu.matmul %185, %43, %cst_60 {dimension_numbers = #tpu.dot_dimension_numbers<[1], [0], [0], [1], [0, 0, 1, 1], [], []>} : vector<1x256xbf16>, vector<256x512xbf16>, vector<1x512xf32> -> vector<1x512xf32>
    %187 = arith.addf %186, %9 : vector<1x512xf32>
    %188 = vector.extract_strided_slice %187 {offsets = [0, 0], sizes = [1, 128], strides = [1, 1]} : vector<1x512xf32> to vector<1x128xf32>
    %cst_61 = arith.constant 5.000000e-01 : f32
    %189 = vector.broadcast %cst_61 : f32 to vector<1x128xf32>
    %190 = arith.mulf %189, %188 : vector<1x128xf32>
    %191 = math.tanh %190 : vector<1x128xf32>
    %cst_62 = arith.constant 5.000000e-01 : f32
    %192 = vector.broadcast %cst_62 : f32 to vector<1x128xf32>
    %193 = arith.mulf %192, %191 : vector<1x128xf32>
    %cst_63 = arith.constant 5.000000e-01 : f32
    %194 = vector.broadcast %cst_63 : f32 to vector<1x128xf32>
    %195 = arith.addf %193, %194 : vector<1x128xf32>
    %196 = vector.extract_strided_slice %187 {offsets = [0, 128], sizes = [1, 128], strides = [1, 1]} : vector<1x512xf32> to vector<1x128xf32>
    %cst_64 = arith.constant 5.000000e-01 : f32
    %197 = vector.broadcast %cst_64 : f32 to vector<1x128xf32>
    %198 = arith.mulf %197, %196 : vector<1x128xf32>
    %199 = math.tanh %198 : vector<1x128xf32>
    %cst_65 = arith.constant 5.000000e-01 : f32
    %200 = vector.broadcast %cst_65 : f32 to vector<1x128xf32>
    %201 = arith.mulf %200, %199 : vector<1x128xf32>
    %cst_66 = arith.constant 5.000000e-01 : f32
    %202 = vector.broadcast %cst_66 : f32 to vector<1x128xf32>
    %203 = arith.addf %201, %202 : vector<1x128xf32>
    %204 = vector.extract_strided_slice %187 {offsets = [0, 256], sizes = [1, 128], strides = [1, 1]} : vector<1x512xf32> to vector<1x128xf32>
    %205 = math.tanh %204 : vector<1x128xf32>
    %206 = arith.mulf %203, %138 : vector<1x128xf32>
    %207 = arith.mulf %195, %205 : vector<1x128xf32>
    %208 = arith.addf %206, %207 : vector<1x128xf32>
    %209 = math.tanh %208 : vector<1x128xf32>
    %210 = vector.extract_strided_slice %187 {offsets = [0, 384], sizes = [1, 128], strides = [1, 1]} : vector<1x512xf32> to vector<1x128xf32>
    %cst_67 = arith.constant 5.000000e-01 : f32
    %211 = vector.broadcast %cst_67 : f32 to vector<1x128xf32>
    %212 = arith.mulf %211, %210 : vector<1x128xf32>
    %213 = math.tanh %212 : vector<1x128xf32>
    %cst_68 = arith.constant 5.000000e-01 : f32
    %214 = vector.broadcast %cst_68 : f32 to vector<1x128xf32>
    %215 = arith.mulf %214, %213 : vector<1x128xf32>
    %cst_69 = arith.constant 5.000000e-01 : f32
    %216 = vector.broadcast %cst_69 : f32 to vector<1x128xf32>
    %217 = arith.addf %215, %216 : vector<1x128xf32>
    %218 = arith.mulf %217, %209 : vector<1x128xf32>
    %219 = vector.extract_strided_slice %7 {offsets = [3, 0], sizes = [1, 512], strides = [1, 1]} : vector<8x512xf32> to vector<1x512xf32>
    %220 = arith.truncf %183 : vector<1x128xf32> to vector<1x128xbf16>
    %cst_70 = arith.constant dense<0.000000e+00> : vector<1x512xf32>
    %221 = tpu.matmul %220, %8, %cst_70 {dimension_numbers = #tpu.dot_dimension_numbers<[1], [0], [0], [1], [0, 0, 1, 1], [], []>} : vector<1x128xbf16>, vector<128x512xbf16>, vector<1x512xf32> -> vector<1x512xf32>
    %222 = arith.addf %219, %221 : vector<1x512xf32>
    %223 = vector.extract_strided_slice %222 {offsets = [0, 0], sizes = [1, 128], strides = [1, 1]} : vector<1x512xf32> to vector<1x128xf32>
    %cst_71 = arith.constant 5.000000e-01 : f32
    %224 = vector.broadcast %cst_71 : f32 to vector<1x128xf32>
    %225 = arith.mulf %224, %223 : vector<1x128xf32>
    %226 = math.tanh %225 : vector<1x128xf32>
    %cst_72 = arith.constant 5.000000e-01 : f32
    %227 = vector.broadcast %cst_72 : f32 to vector<1x128xf32>
    %228 = arith.mulf %227, %226 : vector<1x128xf32>
    %cst_73 = arith.constant 5.000000e-01 : f32
    %229 = vector.broadcast %cst_73 : f32 to vector<1x128xf32>
    %230 = arith.addf %228, %229 : vector<1x128xf32>
    %231 = vector.extract_strided_slice %222 {offsets = [0, 128], sizes = [1, 128], strides = [1, 1]} : vector<1x512xf32> to vector<1x128xf32>
    %cst_74 = arith.constant 5.000000e-01 : f32
    %232 = vector.broadcast %cst_74 : f32 to vector<1x128xf32>
    %233 = arith.mulf %232, %231 : vector<1x128xf32>
    %234 = math.tanh %233 : vector<1x128xf32>
    %cst_75 = arith.constant 5.000000e-01 : f32
    %235 = vector.broadcast %cst_75 : f32 to vector<1x128xf32>
    %236 = arith.mulf %235, %234 : vector<1x128xf32>
    %cst_76 = arith.constant 5.000000e-01 : f32
    %237 = vector.broadcast %cst_76 : f32 to vector<1x128xf32>
    %238 = arith.addf %236, %237 : vector<1x128xf32>
    %239 = vector.extract_strided_slice %222 {offsets = [0, 256], sizes = [1, 128], strides = [1, 1]} : vector<1x512xf32> to vector<1x128xf32>
    %240 = math.tanh %239 : vector<1x128xf32>
    %241 = arith.mulf %238, %173 : vector<1x128xf32>
    %242 = arith.mulf %230, %240 : vector<1x128xf32>
    %243 = arith.addf %241, %242 : vector<1x128xf32>
    %244 = math.tanh %243 : vector<1x128xf32>
    %245 = vector.extract_strided_slice %222 {offsets = [0, 384], sizes = [1, 128], strides = [1, 1]} : vector<1x512xf32> to vector<1x128xf32>
    %cst_77 = arith.constant 5.000000e-01 : f32
    %246 = vector.broadcast %cst_77 : f32 to vector<1x128xf32>
    %247 = arith.mulf %246, %245 : vector<1x128xf32>
    %248 = math.tanh %247 : vector<1x128xf32>
    %cst_78 = arith.constant 5.000000e-01 : f32
    %249 = vector.broadcast %cst_78 : f32 to vector<1x128xf32>
    %250 = arith.mulf %249, %248 : vector<1x128xf32>
    %cst_79 = arith.constant 5.000000e-01 : f32
    %251 = vector.broadcast %cst_79 : f32 to vector<1x128xf32>
    %252 = arith.addf %250, %251 : vector<1x128xf32>
    %253 = arith.mulf %252, %244 : vector<1x128xf32>
    %254 = tpu.concatenate %253, %218 in 1 : vector<1x128xf32>, vector<1x128xf32> -> vector<1x256xf32>
    %255 = arith.truncf %254 : vector<1x256xf32> to vector<1x256xbf16>
    %cst_80 = arith.constant dense<0.000000e+00> : vector<1x512xf32>
    %256 = tpu.matmul %255, %43, %cst_80 {dimension_numbers = #tpu.dot_dimension_numbers<[1], [0], [0], [1], [0, 0, 1, 1], [], []>} : vector<1x256xbf16>, vector<256x512xbf16>, vector<1x512xf32> -> vector<1x512xf32>
    %257 = arith.addf %256, %9 : vector<1x512xf32>
    %258 = vector.extract_strided_slice %257 {offsets = [0, 0], sizes = [1, 128], strides = [1, 1]} : vector<1x512xf32> to vector<1x128xf32>
    %cst_81 = arith.constant 5.000000e-01 : f32
    %259 = vector.broadcast %cst_81 : f32 to vector<1x128xf32>
    %260 = arith.mulf %259, %258 : vector<1x128xf32>
    %261 = math.tanh %260 : vector<1x128xf32>
    %cst_82 = arith.constant 5.000000e-01 : f32
    %262 = vector.broadcast %cst_82 : f32 to vector<1x128xf32>
    %263 = arith.mulf %262, %261 : vector<1x128xf32>
    %cst_83 = arith.constant 5.000000e-01 : f32
    %264 = vector.broadcast %cst_83 : f32 to vector<1x128xf32>
    %265 = arith.addf %263, %264 : vector<1x128xf32>
    %266 = vector.extract_strided_slice %257 {offsets = [0, 128], sizes = [1, 128], strides = [1, 1]} : vector<1x512xf32> to vector<1x128xf32>
    %cst_84 = arith.constant 5.000000e-01 : f32
    %267 = vector.broadcast %cst_84 : f32 to vector<1x128xf32>
    %268 = arith.mulf %267, %266 : vector<1x128xf32>
    %269 = math.tanh %268 : vector<1x128xf32>
    %cst_85 = arith.constant 5.000000e-01 : f32
    %270 = vector.broadcast %cst_85 : f32 to vector<1x128xf32>
    %271 = arith.mulf %270, %269 : vector<1x128xf32>
    %cst_86 = arith.constant 5.000000e-01 : f32
    %272 = vector.broadcast %cst_86 : f32 to vector<1x128xf32>
    %273 = arith.addf %271, %272 : vector<1x128xf32>
    %274 = vector.extract_strided_slice %257 {offsets = [0, 256], sizes = [1, 128], strides = [1, 1]} : vector<1x512xf32> to vector<1x128xf32>
    %275 = math.tanh %274 : vector<1x128xf32>
    %276 = arith.mulf %273, %208 : vector<1x128xf32>
    %277 = arith.mulf %265, %275 : vector<1x128xf32>
    %278 = arith.addf %276, %277 : vector<1x128xf32>
    %279 = math.tanh %278 : vector<1x128xf32>
    %280 = vector.extract_strided_slice %257 {offsets = [0, 384], sizes = [1, 128], strides = [1, 1]} : vector<1x512xf32> to vector<1x128xf32>
    %cst_87 = arith.constant 5.000000e-01 : f32
    %281 = vector.broadcast %cst_87 : f32 to vector<1x128xf32>
    %282 = arith.mulf %281, %280 : vector<1x128xf32>
    %283 = math.tanh %282 : vector<1x128xf32>
    %cst_88 = arith.constant 5.000000e-01 : f32
    %284 = vector.broadcast %cst_88 : f32 to vector<1x128xf32>
    %285 = arith.mulf %284, %283 : vector<1x128xf32>
    %cst_89 = arith.constant 5.000000e-01 : f32
    %286 = vector.broadcast %cst_89 : f32 to vector<1x128xf32>
    %287 = arith.addf %285, %286 : vector<1x128xf32>
    %288 = arith.mulf %287, %279 : vector<1x128xf32>
    %289 = vector.extract_strided_slice %7 {offsets = [4, 0], sizes = [1, 512], strides = [1, 1]} : vector<8x512xf32> to vector<1x512xf32>
    %290 = arith.truncf %253 : vector<1x128xf32> to vector<1x128xbf16>
    %cst_90 = arith.constant dense<0.000000e+00> : vector<1x512xf32>
    %291 = tpu.matmul %290, %8, %cst_90 {dimension_numbers = #tpu.dot_dimension_numbers<[1], [0], [0], [1], [0, 0, 1, 1], [], []>} : vector<1x128xbf16>, vector<128x512xbf16>, vector<1x512xf32> -> vector<1x512xf32>
    %292 = arith.addf %289, %291 : vector<1x512xf32>
    %293 = vector.extract_strided_slice %292 {offsets = [0, 0], sizes = [1, 128], strides = [1, 1]} : vector<1x512xf32> to vector<1x128xf32>
    %cst_91 = arith.constant 5.000000e-01 : f32
    %294 = vector.broadcast %cst_91 : f32 to vector<1x128xf32>
    %295 = arith.mulf %294, %293 : vector<1x128xf32>
    %296 = math.tanh %295 : vector<1x128xf32>
    %cst_92 = arith.constant 5.000000e-01 : f32
    %297 = vector.broadcast %cst_92 : f32 to vector<1x128xf32>
    %298 = arith.mulf %297, %296 : vector<1x128xf32>
    %cst_93 = arith.constant 5.000000e-01 : f32
    %299 = vector.broadcast %cst_93 : f32 to vector<1x128xf32>
    %300 = arith.addf %298, %299 : vector<1x128xf32>
    %301 = vector.extract_strided_slice %292 {offsets = [0, 128], sizes = [1, 128], strides = [1, 1]} : vector<1x512xf32> to vector<1x128xf32>
    %cst_94 = arith.constant 5.000000e-01 : f32
    %302 = vector.broadcast %cst_94 : f32 to vector<1x128xf32>
    %303 = arith.mulf %302, %301 : vector<1x128xf32>
    %304 = math.tanh %303 : vector<1x128xf32>
    %cst_95 = arith.constant 5.000000e-01 : f32
    %305 = vector.broadcast %cst_95 : f32 to vector<1x128xf32>
    %306 = arith.mulf %305, %304 : vector<1x128xf32>
    %cst_96 = arith.constant 5.000000e-01 : f32
    %307 = vector.broadcast %cst_96 : f32 to vector<1x128xf32>
    %308 = arith.addf %306, %307 : vector<1x128xf32>
    %309 = vector.extract_strided_slice %292 {offsets = [0, 256], sizes = [1, 128], strides = [1, 1]} : vector<1x512xf32> to vector<1x128xf32>
    %310 = math.tanh %309 : vector<1x128xf32>
    %311 = arith.mulf %308, %243 : vector<1x128xf32>
    %312 = arith.mulf %300, %310 : vector<1x128xf32>
    %313 = arith.addf %311, %312 : vector<1x128xf32>
    %314 = math.tanh %313 : vector<1x128xf32>
    %315 = vector.extract_strided_slice %292 {offsets = [0, 384], sizes = [1, 128], strides = [1, 1]} : vector<1x512xf32> to vector<1x128xf32>
    %cst_97 = arith.constant 5.000000e-01 : f32
    %316 = vector.broadcast %cst_97 : f32 to vector<1x128xf32>
    %317 = arith.mulf %316, %315 : vector<1x128xf32>
    %318 = math.tanh %317 : vector<1x128xf32>
    %cst_98 = arith.constant 5.000000e-01 : f32
    %319 = vector.broadcast %cst_98 : f32 to vector<1x128xf32>
    %320 = arith.mulf %319, %318 : vector<1x128xf32>
    %cst_99 = arith.constant 5.000000e-01 : f32
    %321 = vector.broadcast %cst_99 : f32 to vector<1x128xf32>
    %322 = arith.addf %320, %321 : vector<1x128xf32>
    %323 = arith.mulf %322, %314 : vector<1x128xf32>
    %324 = tpu.concatenate %323, %288 in 1 : vector<1x128xf32>, vector<1x128xf32> -> vector<1x256xf32>
    %325 = arith.truncf %324 : vector<1x256xf32> to vector<1x256xbf16>
    %cst_100 = arith.constant dense<0.000000e+00> : vector<1x512xf32>
    %326 = tpu.matmul %325, %43, %cst_100 {dimension_numbers = #tpu.dot_dimension_numbers<[1], [0], [0], [1], [0, 0, 1, 1], [], []>} : vector<1x256xbf16>, vector<256x512xbf16>, vector<1x512xf32> -> vector<1x512xf32>
    %327 = arith.addf %326, %9 : vector<1x512xf32>
    %328 = vector.extract_strided_slice %327 {offsets = [0, 0], sizes = [1, 128], strides = [1, 1]} : vector<1x512xf32> to vector<1x128xf32>
    %cst_101 = arith.constant 5.000000e-01 : f32
    %329 = vector.broadcast %cst_101 : f32 to vector<1x128xf32>
    %330 = arith.mulf %329, %328 : vector<1x128xf32>
    %331 = math.tanh %330 : vector<1x128xf32>
    %cst_102 = arith.constant 5.000000e-01 : f32
    %332 = vector.broadcast %cst_102 : f32 to vector<1x128xf32>
    %333 = arith.mulf %332, %331 : vector<1x128xf32>
    %cst_103 = arith.constant 5.000000e-01 : f32
    %334 = vector.broadcast %cst_103 : f32 to vector<1x128xf32>
    %335 = arith.addf %333, %334 : vector<1x128xf32>
    %336 = vector.extract_strided_slice %327 {offsets = [0, 128], sizes = [1, 128], strides = [1, 1]} : vector<1x512xf32> to vector<1x128xf32>
    %cst_104 = arith.constant 5.000000e-01 : f32
    %337 = vector.broadcast %cst_104 : f32 to vector<1x128xf32>
    %338 = arith.mulf %337, %336 : vector<1x128xf32>
    %339 = math.tanh %338 : vector<1x128xf32>
    %cst_105 = arith.constant 5.000000e-01 : f32
    %340 = vector.broadcast %cst_105 : f32 to vector<1x128xf32>
    %341 = arith.mulf %340, %339 : vector<1x128xf32>
    %cst_106 = arith.constant 5.000000e-01 : f32
    %342 = vector.broadcast %cst_106 : f32 to vector<1x128xf32>
    %343 = arith.addf %341, %342 : vector<1x128xf32>
    %344 = vector.extract_strided_slice %327 {offsets = [0, 256], sizes = [1, 128], strides = [1, 1]} : vector<1x512xf32> to vector<1x128xf32>
    %345 = math.tanh %344 : vector<1x128xf32>
    %346 = arith.mulf %343, %278 : vector<1x128xf32>
    %347 = arith.mulf %335, %345 : vector<1x128xf32>
    %348 = arith.addf %346, %347 : vector<1x128xf32>
    %349 = math.tanh %348 : vector<1x128xf32>
    %350 = vector.extract_strided_slice %327 {offsets = [0, 384], sizes = [1, 128], strides = [1, 1]} : vector<1x512xf32> to vector<1x128xf32>
    %cst_107 = arith.constant 5.000000e-01 : f32
    %351 = vector.broadcast %cst_107 : f32 to vector<1x128xf32>
    %352 = arith.mulf %351, %350 : vector<1x128xf32>
    %353 = math.tanh %352 : vector<1x128xf32>
    %cst_108 = arith.constant 5.000000e-01 : f32
    %354 = vector.broadcast %cst_108 : f32 to vector<1x128xf32>
    %355 = arith.mulf %354, %353 : vector<1x128xf32>
    %cst_109 = arith.constant 5.000000e-01 : f32
    %356 = vector.broadcast %cst_109 : f32 to vector<1x128xf32>
    %357 = arith.addf %355, %356 : vector<1x128xf32>
    %358 = arith.mulf %357, %349 : vector<1x128xf32>
    %359 = vector.extract_strided_slice %7 {offsets = [5, 0], sizes = [1, 512], strides = [1, 1]} : vector<8x512xf32> to vector<1x512xf32>
    %360 = arith.truncf %323 : vector<1x128xf32> to vector<1x128xbf16>
    %cst_110 = arith.constant dense<0.000000e+00> : vector<1x512xf32>
    %361 = tpu.matmul %360, %8, %cst_110 {dimension_numbers = #tpu.dot_dimension_numbers<[1], [0], [0], [1], [0, 0, 1, 1], [], []>} : vector<1x128xbf16>, vector<128x512xbf16>, vector<1x512xf32> -> vector<1x512xf32>
    %362 = arith.addf %359, %361 : vector<1x512xf32>
    %363 = vector.extract_strided_slice %362 {offsets = [0, 0], sizes = [1, 128], strides = [1, 1]} : vector<1x512xf32> to vector<1x128xf32>
    %cst_111 = arith.constant 5.000000e-01 : f32
    %364 = vector.broadcast %cst_111 : f32 to vector<1x128xf32>
    %365 = arith.mulf %364, %363 : vector<1x128xf32>
    %366 = math.tanh %365 : vector<1x128xf32>
    %cst_112 = arith.constant 5.000000e-01 : f32
    %367 = vector.broadcast %cst_112 : f32 to vector<1x128xf32>
    %368 = arith.mulf %367, %366 : vector<1x128xf32>
    %cst_113 = arith.constant 5.000000e-01 : f32
    %369 = vector.broadcast %cst_113 : f32 to vector<1x128xf32>
    %370 = arith.addf %368, %369 : vector<1x128xf32>
    %371 = vector.extract_strided_slice %362 {offsets = [0, 128], sizes = [1, 128], strides = [1, 1]} : vector<1x512xf32> to vector<1x128xf32>
    %cst_114 = arith.constant 5.000000e-01 : f32
    %372 = vector.broadcast %cst_114 : f32 to vector<1x128xf32>
    %373 = arith.mulf %372, %371 : vector<1x128xf32>
    %374 = math.tanh %373 : vector<1x128xf32>
    %cst_115 = arith.constant 5.000000e-01 : f32
    %375 = vector.broadcast %cst_115 : f32 to vector<1x128xf32>
    %376 = arith.mulf %375, %374 : vector<1x128xf32>
    %cst_116 = arith.constant 5.000000e-01 : f32
    %377 = vector.broadcast %cst_116 : f32 to vector<1x128xf32>
    %378 = arith.addf %376, %377 : vector<1x128xf32>
    %379 = vector.extract_strided_slice %362 {offsets = [0, 256], sizes = [1, 128], strides = [1, 1]} : vector<1x512xf32> to vector<1x128xf32>
    %380 = math.tanh %379 : vector<1x128xf32>
    %381 = arith.mulf %378, %313 : vector<1x128xf32>
    %382 = arith.mulf %370, %380 : vector<1x128xf32>
    %383 = arith.addf %381, %382 : vector<1x128xf32>
    %384 = math.tanh %383 : vector<1x128xf32>
    %385 = vector.extract_strided_slice %362 {offsets = [0, 384], sizes = [1, 128], strides = [1, 1]} : vector<1x512xf32> to vector<1x128xf32>
    %cst_117 = arith.constant 5.000000e-01 : f32
    %386 = vector.broadcast %cst_117 : f32 to vector<1x128xf32>
    %387 = arith.mulf %386, %385 : vector<1x128xf32>
    %388 = math.tanh %387 : vector<1x128xf32>
    %cst_118 = arith.constant 5.000000e-01 : f32
    %389 = vector.broadcast %cst_118 : f32 to vector<1x128xf32>
    %390 = arith.mulf %389, %388 : vector<1x128xf32>
    %cst_119 = arith.constant 5.000000e-01 : f32
    %391 = vector.broadcast %cst_119 : f32 to vector<1x128xf32>
    %392 = arith.addf %390, %391 : vector<1x128xf32>
    %393 = arith.mulf %392, %384 : vector<1x128xf32>
    %394 = tpu.concatenate %393, %358 in 1 : vector<1x128xf32>, vector<1x128xf32> -> vector<1x256xf32>
    %395 = arith.truncf %394 : vector<1x256xf32> to vector<1x256xbf16>
    %cst_120 = arith.constant dense<0.000000e+00> : vector<1x512xf32>
    %396 = tpu.matmul %395, %43, %cst_120 {dimension_numbers = #tpu.dot_dimension_numbers<[1], [0], [0], [1], [0, 0, 1, 1], [], []>} : vector<1x256xbf16>, vector<256x512xbf16>, vector<1x512xf32> -> vector<1x512xf32>
    %397 = arith.addf %396, %9 : vector<1x512xf32>
    %398 = vector.extract_strided_slice %397 {offsets = [0, 0], sizes = [1, 128], strides = [1, 1]} : vector<1x512xf32> to vector<1x128xf32>
    %cst_121 = arith.constant 5.000000e-01 : f32
    %399 = vector.broadcast %cst_121 : f32 to vector<1x128xf32>
    %400 = arith.mulf %399, %398 : vector<1x128xf32>
    %401 = math.tanh %400 : vector<1x128xf32>
    %cst_122 = arith.constant 5.000000e-01 : f32
    %402 = vector.broadcast %cst_122 : f32 to vector<1x128xf32>
    %403 = arith.mulf %402, %401 : vector<1x128xf32>
    %cst_123 = arith.constant 5.000000e-01 : f32
    %404 = vector.broadcast %cst_123 : f32 to vector<1x128xf32>
    %405 = arith.addf %403, %404 : vector<1x128xf32>
    %406 = vector.extract_strided_slice %397 {offsets = [0, 128], sizes = [1, 128], strides = [1, 1]} : vector<1x512xf32> to vector<1x128xf32>
    %cst_124 = arith.constant 5.000000e-01 : f32
    %407 = vector.broadcast %cst_124 : f32 to vector<1x128xf32>
    %408 = arith.mulf %407, %406 : vector<1x128xf32>
    %409 = math.tanh %408 : vector<1x128xf32>
    %cst_125 = arith.constant 5.000000e-01 : f32
    %410 = vector.broadcast %cst_125 : f32 to vector<1x128xf32>
    %411 = arith.mulf %410, %409 : vector<1x128xf32>
    %cst_126 = arith.constant 5.000000e-01 : f32
    %412 = vector.broadcast %cst_126 : f32 to vector<1x128xf32>
    %413 = arith.addf %411, %412 : vector<1x128xf32>
    %414 = vector.extract_strided_slice %397 {offsets = [0, 256], sizes = [1, 128], strides = [1, 1]} : vector<1x512xf32> to vector<1x128xf32>
    %415 = math.tanh %414 : vector<1x128xf32>
    %416 = arith.mulf %413, %348 : vector<1x128xf32>
    %417 = arith.mulf %405, %415 : vector<1x128xf32>
    %418 = arith.addf %416, %417 : vector<1x128xf32>
    %419 = math.tanh %418 : vector<1x128xf32>
    %420 = vector.extract_strided_slice %397 {offsets = [0, 384], sizes = [1, 128], strides = [1, 1]} : vector<1x512xf32> to vector<1x128xf32>
    %cst_127 = arith.constant 5.000000e-01 : f32
    %421 = vector.broadcast %cst_127 : f32 to vector<1x128xf32>
    %422 = arith.mulf %421, %420 : vector<1x128xf32>
    %423 = math.tanh %422 : vector<1x128xf32>
    %cst_128 = arith.constant 5.000000e-01 : f32
    %424 = vector.broadcast %cst_128 : f32 to vector<1x128xf32>
    %425 = arith.mulf %424, %423 : vector<1x128xf32>
    %cst_129 = arith.constant 5.000000e-01 : f32
    %426 = vector.broadcast %cst_129 : f32 to vector<1x128xf32>
    %427 = arith.addf %425, %426 : vector<1x128xf32>
    %428 = arith.mulf %427, %419 : vector<1x128xf32>
    %429 = vector.extract_strided_slice %7 {offsets = [6, 0], sizes = [1, 512], strides = [1, 1]} : vector<8x512xf32> to vector<1x512xf32>
    %430 = arith.truncf %393 : vector<1x128xf32> to vector<1x128xbf16>
    %cst_130 = arith.constant dense<0.000000e+00> : vector<1x512xf32>
    %431 = tpu.matmul %430, %8, %cst_130 {dimension_numbers = #tpu.dot_dimension_numbers<[1], [0], [0], [1], [0, 0, 1, 1], [], []>} : vector<1x128xbf16>, vector<128x512xbf16>, vector<1x512xf32> -> vector<1x512xf32>
    %432 = arith.addf %429, %431 : vector<1x512xf32>
    %433 = vector.extract_strided_slice %432 {offsets = [0, 0], sizes = [1, 128], strides = [1, 1]} : vector<1x512xf32> to vector<1x128xf32>
    %cst_131 = arith.constant 5.000000e-01 : f32
    %434 = vector.broadcast %cst_131 : f32 to vector<1x128xf32>
    %435 = arith.mulf %434, %433 : vector<1x128xf32>
    %436 = math.tanh %435 : vector<1x128xf32>
    %cst_132 = arith.constant 5.000000e-01 : f32
    %437 = vector.broadcast %cst_132 : f32 to vector<1x128xf32>
    %438 = arith.mulf %437, %436 : vector<1x128xf32>
    %cst_133 = arith.constant 5.000000e-01 : f32
    %439 = vector.broadcast %cst_133 : f32 to vector<1x128xf32>
    %440 = arith.addf %438, %439 : vector<1x128xf32>
    %441 = vector.extract_strided_slice %432 {offsets = [0, 128], sizes = [1, 128], strides = [1, 1]} : vector<1x512xf32> to vector<1x128xf32>
    %cst_134 = arith.constant 5.000000e-01 : f32
    %442 = vector.broadcast %cst_134 : f32 to vector<1x128xf32>
    %443 = arith.mulf %442, %441 : vector<1x128xf32>
    %444 = math.tanh %443 : vector<1x128xf32>
    %cst_135 = arith.constant 5.000000e-01 : f32
    %445 = vector.broadcast %cst_135 : f32 to vector<1x128xf32>
    %446 = arith.mulf %445, %444 : vector<1x128xf32>
    %cst_136 = arith.constant 5.000000e-01 : f32
    %447 = vector.broadcast %cst_136 : f32 to vector<1x128xf32>
    %448 = arith.addf %446, %447 : vector<1x128xf32>
    %449 = vector.extract_strided_slice %432 {offsets = [0, 256], sizes = [1, 128], strides = [1, 1]} : vector<1x512xf32> to vector<1x128xf32>
    %450 = math.tanh %449 : vector<1x128xf32>
    %451 = arith.mulf %448, %383 : vector<1x128xf32>
    %452 = arith.mulf %440, %450 : vector<1x128xf32>
    %453 = arith.addf %451, %452 : vector<1x128xf32>
    %454 = math.tanh %453 : vector<1x128xf32>
    %455 = vector.extract_strided_slice %432 {offsets = [0, 384], sizes = [1, 128], strides = [1, 1]} : vector<1x512xf32> to vector<1x128xf32>
    %cst_137 = arith.constant 5.000000e-01 : f32
    %456 = vector.broadcast %cst_137 : f32 to vector<1x128xf32>
    %457 = arith.mulf %456, %455 : vector<1x128xf32>
    %458 = math.tanh %457 : vector<1x128xf32>
    %cst_138 = arith.constant 5.000000e-01 : f32
    %459 = vector.broadcast %cst_138 : f32 to vector<1x128xf32>
    %460 = arith.mulf %459, %458 : vector<1x128xf32>
    %cst_139 = arith.constant 5.000000e-01 : f32
    %461 = vector.broadcast %cst_139 : f32 to vector<1x128xf32>
    %462 = arith.addf %460, %461 : vector<1x128xf32>
    %463 = arith.mulf %462, %454 : vector<1x128xf32>
    %464 = tpu.concatenate %463, %428 in 1 : vector<1x128xf32>, vector<1x128xf32> -> vector<1x256xf32>
    %465 = arith.truncf %464 : vector<1x256xf32> to vector<1x256xbf16>
    %cst_140 = arith.constant dense<0.000000e+00> : vector<1x512xf32>
    %466 = tpu.matmul %465, %43, %cst_140 {dimension_numbers = #tpu.dot_dimension_numbers<[1], [0], [0], [1], [0, 0, 1, 1], [], []>} : vector<1x256xbf16>, vector<256x512xbf16>, vector<1x512xf32> -> vector<1x512xf32>
    %467 = arith.addf %466, %9 : vector<1x512xf32>
    %468 = vector.extract_strided_slice %467 {offsets = [0, 0], sizes = [1, 128], strides = [1, 1]} : vector<1x512xf32> to vector<1x128xf32>
    %cst_141 = arith.constant 5.000000e-01 : f32
    %469 = vector.broadcast %cst_141 : f32 to vector<1x128xf32>
    %470 = arith.mulf %469, %468 : vector<1x128xf32>
    %471 = math.tanh %470 : vector<1x128xf32>
    %cst_142 = arith.constant 5.000000e-01 : f32
    %472 = vector.broadcast %cst_142 : f32 to vector<1x128xf32>
    %473 = arith.mulf %472, %471 : vector<1x128xf32>
    %cst_143 = arith.constant 5.000000e-01 : f32
    %474 = vector.broadcast %cst_143 : f32 to vector<1x128xf32>
    %475 = arith.addf %473, %474 : vector<1x128xf32>
    %476 = vector.extract_strided_slice %467 {offsets = [0, 128], sizes = [1, 128], strides = [1, 1]} : vector<1x512xf32> to vector<1x128xf32>
    %cst_144 = arith.constant 5.000000e-01 : f32
    %477 = vector.broadcast %cst_144 : f32 to vector<1x128xf32>
    %478 = arith.mulf %477, %476 : vector<1x128xf32>
    %479 = math.tanh %478 : vector<1x128xf32>
    %cst_145 = arith.constant 5.000000e-01 : f32
    %480 = vector.broadcast %cst_145 : f32 to vector<1x128xf32>
    %481 = arith.mulf %480, %479 : vector<1x128xf32>
    %cst_146 = arith.constant 5.000000e-01 : f32
    %482 = vector.broadcast %cst_146 : f32 to vector<1x128xf32>
    %483 = arith.addf %481, %482 : vector<1x128xf32>
    %484 = vector.extract_strided_slice %467 {offsets = [0, 256], sizes = [1, 128], strides = [1, 1]} : vector<1x512xf32> to vector<1x128xf32>
    %485 = math.tanh %484 : vector<1x128xf32>
    %486 = arith.mulf %483, %418 : vector<1x128xf32>
    %487 = arith.mulf %475, %485 : vector<1x128xf32>
    %488 = arith.addf %486, %487 : vector<1x128xf32>
    %489 = math.tanh %488 : vector<1x128xf32>
    %490 = vector.extract_strided_slice %467 {offsets = [0, 384], sizes = [1, 128], strides = [1, 1]} : vector<1x512xf32> to vector<1x128xf32>
    %cst_147 = arith.constant 5.000000e-01 : f32
    %491 = vector.broadcast %cst_147 : f32 to vector<1x128xf32>
    %492 = arith.mulf %491, %490 : vector<1x128xf32>
    %493 = math.tanh %492 : vector<1x128xf32>
    %cst_148 = arith.constant 5.000000e-01 : f32
    %494 = vector.broadcast %cst_148 : f32 to vector<1x128xf32>
    %495 = arith.mulf %494, %493 : vector<1x128xf32>
    %cst_149 = arith.constant 5.000000e-01 : f32
    %496 = vector.broadcast %cst_149 : f32 to vector<1x128xf32>
    %497 = arith.addf %495, %496 : vector<1x128xf32>
    %498 = arith.mulf %497, %489 : vector<1x128xf32>
    %499 = vector.extract_strided_slice %7 {offsets = [7, 0], sizes = [1, 512], strides = [1, 1]} : vector<8x512xf32> to vector<1x512xf32>
    %500 = arith.truncf %463 : vector<1x128xf32> to vector<1x128xbf16>
    %cst_150 = arith.constant dense<0.000000e+00> : vector<1x512xf32>
    %501 = tpu.matmul %500, %8, %cst_150 {dimension_numbers = #tpu.dot_dimension_numbers<[1], [0], [0], [1], [0, 0, 1, 1], [], []>} : vector<1x128xbf16>, vector<128x512xbf16>, vector<1x512xf32> -> vector<1x512xf32>
    %502 = arith.addf %499, %501 : vector<1x512xf32>
    %503 = vector.extract_strided_slice %502 {offsets = [0, 0], sizes = [1, 128], strides = [1, 1]} : vector<1x512xf32> to vector<1x128xf32>
    %cst_151 = arith.constant 5.000000e-01 : f32
    %504 = vector.broadcast %cst_151 : f32 to vector<1x128xf32>
    %505 = arith.mulf %504, %503 : vector<1x128xf32>
    %506 = math.tanh %505 : vector<1x128xf32>
    %cst_152 = arith.constant 5.000000e-01 : f32
    %507 = vector.broadcast %cst_152 : f32 to vector<1x128xf32>
    %508 = arith.mulf %507, %506 : vector<1x128xf32>
    %cst_153 = arith.constant 5.000000e-01 : f32
    %509 = vector.broadcast %cst_153 : f32 to vector<1x128xf32>
    %510 = arith.addf %508, %509 : vector<1x128xf32>
    %511 = vector.extract_strided_slice %502 {offsets = [0, 128], sizes = [1, 128], strides = [1, 1]} : vector<1x512xf32> to vector<1x128xf32>
    %cst_154 = arith.constant 5.000000e-01 : f32
    %512 = vector.broadcast %cst_154 : f32 to vector<1x128xf32>
    %513 = arith.mulf %512, %511 : vector<1x128xf32>
    %514 = math.tanh %513 : vector<1x128xf32>
    %cst_155 = arith.constant 5.000000e-01 : f32
    %515 = vector.broadcast %cst_155 : f32 to vector<1x128xf32>
    %516 = arith.mulf %515, %514 : vector<1x128xf32>
    %cst_156 = arith.constant 5.000000e-01 : f32
    %517 = vector.broadcast %cst_156 : f32 to vector<1x128xf32>
    %518 = arith.addf %516, %517 : vector<1x128xf32>
    %519 = vector.extract_strided_slice %502 {offsets = [0, 256], sizes = [1, 128], strides = [1, 1]} : vector<1x512xf32> to vector<1x128xf32>
    %520 = math.tanh %519 : vector<1x128xf32>
    %521 = arith.mulf %518, %453 : vector<1x128xf32>
    %522 = arith.mulf %510, %520 : vector<1x128xf32>
    %523 = arith.addf %521, %522 : vector<1x128xf32>
    %524 = math.tanh %523 : vector<1x128xf32>
    %525 = vector.extract_strided_slice %502 {offsets = [0, 384], sizes = [1, 128], strides = [1, 1]} : vector<1x512xf32> to vector<1x128xf32>
    %cst_157 = arith.constant 5.000000e-01 : f32
    %526 = vector.broadcast %cst_157 : f32 to vector<1x128xf32>
    %527 = arith.mulf %526, %525 : vector<1x128xf32>
    %528 = math.tanh %527 : vector<1x128xf32>
    %cst_158 = arith.constant 5.000000e-01 : f32
    %529 = vector.broadcast %cst_158 : f32 to vector<1x128xf32>
    %530 = arith.mulf %529, %528 : vector<1x128xf32>
    %cst_159 = arith.constant 5.000000e-01 : f32
    %531 = vector.broadcast %cst_159 : f32 to vector<1x128xf32>
    %532 = arith.addf %530, %531 : vector<1x128xf32>
    %533 = arith.mulf %532, %524 : vector<1x128xf32>
    %534 = tpu.concatenate %533, %498 in 1 : vector<1x128xf32>, vector<1x128xf32> -> vector<1x256xf32>
    %535 = arith.truncf %534 : vector<1x256xf32> to vector<1x256xbf16>
    %cst_160 = arith.constant dense<0.000000e+00> : vector<1x512xf32>
    %536 = tpu.matmul %535, %43, %cst_160 {dimension_numbers = #tpu.dot_dimension_numbers<[1], [0], [0], [1], [0, 0, 1, 1], [], []>} : vector<1x256xbf16>, vector<256x512xbf16>, vector<1x512xf32> -> vector<1x512xf32>
    %537 = arith.addf %536, %9 : vector<1x512xf32>
    %538 = vector.extract_strided_slice %537 {offsets = [0, 0], sizes = [1, 128], strides = [1, 1]} : vector<1x512xf32> to vector<1x128xf32>
    %cst_161 = arith.constant 5.000000e-01 : f32
    %539 = vector.broadcast %cst_161 : f32 to vector<1x128xf32>
    %540 = arith.mulf %539, %538 : vector<1x128xf32>
    %541 = math.tanh %540 : vector<1x128xf32>
    %cst_162 = arith.constant 5.000000e-01 : f32
    %542 = vector.broadcast %cst_162 : f32 to vector<1x128xf32>
    %543 = arith.mulf %542, %541 : vector<1x128xf32>
    %cst_163 = arith.constant 5.000000e-01 : f32
    %544 = vector.broadcast %cst_163 : f32 to vector<1x128xf32>
    %545 = arith.addf %543, %544 : vector<1x128xf32>
    %546 = vector.extract_strided_slice %537 {offsets = [0, 128], sizes = [1, 128], strides = [1, 1]} : vector<1x512xf32> to vector<1x128xf32>
    %cst_164 = arith.constant 5.000000e-01 : f32
    %547 = vector.broadcast %cst_164 : f32 to vector<1x128xf32>
    %548 = arith.mulf %547, %546 : vector<1x128xf32>
    %549 = math.tanh %548 : vector<1x128xf32>
    %cst_165 = arith.constant 5.000000e-01 : f32
    %550 = vector.broadcast %cst_165 : f32 to vector<1x128xf32>
    %551 = arith.mulf %550, %549 : vector<1x128xf32>
    %cst_166 = arith.constant 5.000000e-01 : f32
    %552 = vector.broadcast %cst_166 : f32 to vector<1x128xf32>
    %553 = arith.addf %551, %552 : vector<1x128xf32>
    %554 = vector.extract_strided_slice %537 {offsets = [0, 256], sizes = [1, 128], strides = [1, 1]} : vector<1x512xf32> to vector<1x128xf32>
    %555 = math.tanh %554 : vector<1x128xf32>
    %556 = arith.mulf %553, %488 : vector<1x128xf32>
    %557 = arith.mulf %545, %555 : vector<1x128xf32>
    %558 = arith.addf %556, %557 : vector<1x128xf32>
    %559 = math.tanh %558 : vector<1x128xf32>
    %560 = vector.extract_strided_slice %537 {offsets = [0, 384], sizes = [1, 128], strides = [1, 1]} : vector<1x512xf32> to vector<1x128xf32>
    %cst_167 = arith.constant 5.000000e-01 : f32
    %561 = vector.broadcast %cst_167 : f32 to vector<1x128xf32>
    %562 = arith.mulf %561, %560 : vector<1x128xf32>
    %563 = math.tanh %562 : vector<1x128xf32>
    %cst_168 = arith.constant 5.000000e-01 : f32
    %564 = vector.broadcast %cst_168 : f32 to vector<1x128xf32>
    %565 = arith.mulf %564, %563 : vector<1x128xf32>
    %cst_169 = arith.constant 5.000000e-01 : f32
    %566 = vector.broadcast %cst_169 : f32 to vector<1x128xf32>
    %567 = arith.addf %565, %566 : vector<1x128xf32>
    %568 = arith.mulf %567, %559 : vector<1x128xf32>
    %569 = arith.truncf %568 : vector<1x128xf32> to vector<1x128xbf16>
    %c0_170 = arith.constant 0 : index
    %c0_171 = arith.constant 0 : index
    %570 = vector.load %arg5[%c0_170, %c0_171] : memref<128x1xbf16, #tpu.memory_space<vmem>>, vector<128x1xbf16>
    %cst_172 = arith.constant dense<0.000000e+00> : vector<1x1xf32>
    %571 = tpu.matmul %569, %570, %cst_172 {dimension_numbers = #tpu.dot_dimension_numbers<[1], [0], [0], [1], [0, 0, 1, 1], [], []>} : vector<1x128xbf16>, vector<128x1xbf16>, vector<1x1xf32> -> vector<1x1xf32>
    %c0_173 = arith.constant 0 : index
    %c0_174 = arith.constant 0 : index
    %572 = vector.load %arg6[%c0_173, %c0_174] : memref<1x1xf32, #tpu.memory_space<vmem>>, vector<1x1xf32>
    %573 = arith.addf %571, %572 : vector<1x1xf32>
    %c0_175 = arith.constant 0 : index
    %c0_176 = arith.constant 0 : index
    %574 = vector.load %arg8[%c0_175, %c0_176] : memref<1x1xf32, #tpu.memory_space<vmem>>, vector<1x1xf32>
    tpu.vector_store %arg8[%c0_175, %c0_176], %573 {strides = array<i32>} : memref<1x1xf32, #tpu.memory_space<vmem>>, vector<1x1xf32>,
    return
  }
}

</mosaic_0001>

<llo_original>
// kernel: tpu_custom_call.1
$region0: #{tpu_custom_call.1}
  #allocation0 [shape = 'u32[]', space=smem, size = 0x4, offset = 0x4, fixed_abs, tag = 'smem constant byte address 0x4 - core index']
  #allocation1 [shape = 'u32[144,128]{1,0:T(1,128)}', space=vmem, size = 0x12000, scoped, tag = 'internal scratch']
  #allocation2 [shape = 'bf16[256,512]{1,0:T(16,128)(2,1)}', space=vmem, size = 0x40000, scoped, tag = 'scratch operand']
  #allocation3 [shape = 's32[1]{0}', space=sflag, size = 0x4, scoped, tag = 'scratch operand']
  #allocation4 [shape = 'f32[1,1]{1,0:T(1,128)S(1)}', space=vmem, size = 0x200, scoped, tag = 'scoped memory for tpu_custom_call.1']
  #allocation9 [shape = 's32[]', space=sflag, size = 0x4, offset = 0, fixed_abs, tag = 'sflag constant byte address 0x0 - dummy sync flag']
  %s0 = inlined_call_operand.vmem [shape: f32[8,1], index: 0, kind: input, shape index: {}]
  %s1 = inlined_call_operand.vmem [shape: f32[1,512], index: 1, kind: input, shape index: {}]
  %s2 = inlined_call_operand.vmem [shape: f32[1,512], index: 2, kind: input, shape index: {}]
  %s3 = inlined_call_operand.hbm [shape: bf16[128,512], index: 3, kind: input, shape index: {}]
  %s4 = inlined_call_operand.vmem [shape: f32[1,512], index: 4, kind: input, shape index: {}]
  %s5 = inlined_call_operand.vmem [shape: bf16[128,1], index: 5, kind: input, shape index: {}]
  %s6 = inlined_call_operand.<no memory space> [shape: f32[1,1], index: 6, kind: input, shape index: {}]
  %s7 = inlined_call_operand.hbm [shape: bf16[256,512], index: 7, kind: input, shape index: {}]
  %s8 = inlined_call_operand.hbm [shape: f32[1,1], index: 8, kind: output, shape index: {}]
  %s9 = sld [smem:[#allocation0]]
  $region42: #{tpu_custom_call.1} parent=0
    _
  %s11 = ssub.s32 1, %s9
  %s12 = scalar_select 0, %s11, %s9
  %v13 = vstv %s6
  %14 = vst [vmem:[#allocation4] sm:$0x1] %v13
  $region1: #{tpu_custom_call.1} parent=0
    #allocation5 [shape = 'u8[131072]{0}', space=vmem, size = 0x20000, scoped, tag = 'input window, operand 3, single buffered']
    #allocation6 [shape = 's32[1]{0}', space=sflag, size = 0x4, scoped, tag = 'scoped memory for tpu_custom_call.1']
    #allocation7 [shape = 's32[1]{0}', space=sflag, size = 0x4, scoped, tag = 'scoped memory for tpu_custom_call.1']
    #allocation8 [shape = 'u8[512]{0}', space=vmem, size = 0x400, scoped, tag = 'output window, operand 0, single buffered']
    #allocation10 [shape = 'u32[9]{0}', space=smem, size = 0x24, scoped, tag = 'DMA stride descriptor']
    %15 = vsyncpa [#allocation6], 0
    %16 = vsyncpa [#allocation7], 0
    // Predicated region
    $region2: #{tpu_custom_call.1} parent=1 // pred_check
      _
    $region3: #{tpu_custom_call.1} parent=1 // pred_check_branch
      %18 = sbr.rel (0) target = $region5
    $region4: #{tpu_custom_call.1} parent=1 // pred_region
      _
    $region5: #{tpu_custom_call.1} parent=1 // pred_fallthru
      _
    // Predicated region
    $region6: #{tpu_custom_call.1} parent=1 // pred_check
      _
    $region7: #{tpu_custom_call.1} parent=1 // pred_check_branch
      %20 = sbr.rel (0) target = $region9
    $region8: #{tpu_custom_call.1} parent=1 // pred_region
      _
    $region9: #{tpu_custom_call.1} parent=1 // pred_fallthru
      _
    // Predicated region
    $region10: #{tpu_custom_call.1} parent=1 // pred_check
      _
    $region11: #{tpu_custom_call.1} parent=1 // pred_check_branch
      %22 = sbr.rel (0) target = $region13
    $region12: #{tpu_custom_call.1} parent=1 // pred_region
      _
    $region13: #{tpu_custom_call.1} parent=1 // pred_fallthru
      _
    // Predicated region
    $region14: #{tpu_custom_call.1} parent=1 // pred_check
      _
    $region15: #{tpu_custom_call.1} parent=1 // pred_check_branch
      %24 = sbr.rel (0) target = $region17
    $region16: #{tpu_custom_call.1} parent=1 // pred_region
      %s26 = ssub.s32 4096, 4096
      %27 = vsyncadd [#allocation6], %s26
      %s28 = sshll.u32 [#allocation5], 4
      %s29 = int_to_ptr.vmem [resolvable:$true] %s28
      %34 = dma.hbm_to_vmem [thread:$0]  %s3, 4096, %s29, [#allocation6], 256, 256, 16
    $region17: #{tpu_custom_call.1} parent=1 // pred_fallthru
      _
    // Predicated region
    $region18: #{tpu_custom_call.1} parent=1 // pred_check
      _
    $region19: #{tpu_custom_call.1} parent=1 // pred_check_branch
      %36 = sbr.rel (0) target = $region21
    $region20: #{tpu_custom_call.1} parent=1 // pred_region
      _
    $region21: #{tpu_custom_call.1} parent=1 // pred_fallthru
      _
    // Predicated region
    $region22: #{tpu_custom_call.1} parent=1 // pred_check
      _
    $region23: #{tpu_custom_call.1} parent=1 // pred_check_branch
      %38 = sbr.rel (0) target = $region25
    $region24: #{tpu_custom_call.1} parent=1 // pred_region
      _
    $region25: #{tpu_custom_call.1} parent=1 // pred_fallthru
      _
    // Predicated region
    $region26: #{tpu_custom_call.1} parent=1 // pred_check
      _
    $region27: #{tpu_custom_call.1} parent=1 // pred_check_branch
      %40 = sbr.rel (0) target = $region29
    $region28: #{tpu_custom_call.1} parent=1 // pred_region
      _
    $region29: #{tpu_custom_call.1} parent=1 // pred_fallthru
      _
    // Predicated region
    $region30: #{tpu_custom_call.1} parent=1 // pred_check
      _
    $region31: #{tpu_custom_call.1} parent=1 // pred_check_branch
      %42 = sbr.rel (0) target = $region33
    $region32: #{tpu_custom_call.1} parent=1 // pred_region
      %43 = dma.done [#allocation6], 4096
    $region33: #{tpu_custom_call.1} parent=1 // pred_fallthru
      _
    %s46 = sshll.u32 1, 14
    %s47 = sxor.u32 4294967295, %s46
    %s49 = sld [smem:[#allocation0]]
    %s50 = sadd.s32 2, %s49
    %s52 = sshll.u32 7, 26
    %s53 = sxor.u32 4294967295, %s52
    %s54 = sand.u32 0, %s53
    %s55 = sshll.u32 %s50, 26
    %s56 = sor.u32 %s54, %s55
    %s57 = sshll.u32 [#allocation2], 4
    %s58 = int_to_ptr.vmem [resolvable:$true] %s57
    %61 = sst [smem:[#allocation10]] 512
    %s62 = scalar_lea.smem [#allocation10], 1
    %63 = sst [smem:[%s62]] 512
    %s64 = scalar_lea.smem [#allocation10], 2
    %65 = sst [smem:[%s64]] 4
    %s66 = scalar_lea.smem [#allocation10], 3
    %67 = sst [smem:[%s66]] 64
    %s68 = scalar_lea.smem [#allocation10], 4
    %69 = sst [smem:[%s68]] 128
    %s70 = scalar_lea.smem [#allocation10], 5
    %71 = sst [smem:[%s70]] 2
    %s72 = scalar_lea.smem [#allocation10], 6
    %73 = sst [smem:[%s72]] 256
    %s74 = scalar_lea.smem [#allocation10], 7
    %75 = sst [smem:[%s74]] 64
    %s76 = scalar_lea.smem [#allocation10], 8
    %77 = sst [smem:[%s76]] 4
    %79 = dma.general %s7, 8192, %s58, [#allocation3], [#allocation9], [#allocation10], %s56, 0
    %v80 = vld [vmem:[%s0] sm:$0xff]
    %v81 = vld [vmem:[%s1] sm:$0xf]
    %83 = vset.pattern.permute.xlu0 0
    %84 = vperm.xlu0 %83, %v80
    %v85 = vpop.permute.xlu0 %84
    %v88 = vlaneseq
    %v89 = vshrl.u32 %v88, 7
    %v90 = vsub.s32 0, %v89
    %v91 = vrot.slane %v81, %v90
    %v92 = vlaneseq
    %v93 = vshrl.u32 %v92, 7
    %v94 = vsub.s32 1, %v93
    %v95 = vrot.slane %v81, %v94
    %v96 = vlaneseq
    %v97 = vshrl.u32 %v96, 7
    %v98 = vsub.s32 2, %v97
    %v99 = vrot.slane %v81, %v98
    %v100 = vlaneseq
    %v101 = vshrl.u32 %v100, 7
    %v102 = vsub.s32 3, %v101
    %v103 = vrot.slane %v81, %v102
    %v108 = vmul.f32 %v85, %v91
    %v109 = vmul.f32 %v85, %v95
    %v110 = vmul.f32 %v85, %v99
    %v111 = vmul.f32 %v85, %v103
    %v112 = vld [vmem:[%s2] sm:$0xf]
    %v114 = vlaneseq
    %v115 = vshrl.u32 %v114, 7
    %v116 = vsub.s32 0, %v115
    %v117 = vrot.slane %v112, %v116
    %v118 = vlaneseq
    %v119 = vshrl.u32 %v118, 7
    %v120 = vsub.s32 1, %v119
    %v121 = vrot.slane %v112, %v120
    %v122 = vlaneseq
    %v123 = vshrl.u32 %v122, 7
    %v124 = vsub.s32 2, %v123
    %v125 = vrot.slane %v112, %v124
    %v126 = vlaneseq
    %v127 = vshrl.u32 %v126, 7
    %v128 = vsub.s32 3, %v127
    %v129 = vrot.slane %v112, %v128
    %v134 = vadd.f32 %v108, %v117
    %v135 = vadd.f32 %v109, %v121
    %v136 = vadd.f32 %v110, %v125
    %v137 = vadd.f32 %v111, %v129
    %v138 = vld [vmem:[#allocation5] sm:$0xff]
    %v139 = vld [vmem:[#allocation5 + $0x8] sm:$0xff]
    %v140 = vld [vmem:[#allocation5 + $0x10] sm:$0xff]
    %v141 = vld [vmem:[#allocation5 + $0x18] sm:$0xff]
    %v142 = vld [vmem:[#allocation5 + $0x20] sm:$0xff]
    %v143 = vld [vmem:[#allocation5 + $0x28] sm:$0xff]
    %v144 = vld [vmem:[#allocation5 + $0x30] sm:$0xff]
    %v145 = vld [vmem:[#allocation5 + $0x38] sm:$0xff]
    %v146 = vld [vmem:[#allocation5 + $0x40] sm:$0xff]
    %v147 = vld [vmem:[#allocation5 + $0x48] sm:$0xff]
    %v148 = vld [vmem:[#allocation5 + $0x50] sm:$0xff]
    %v149 = vld [vmem:[#allocation5 + $0x58] sm:$0xff]
    %v150 = vld [vmem:[#allocation5 + $0x60] sm:$0xff]
    %v151 = vld [vmem:[#allocation5 + $0x68] sm:$0xff]
    %v152 = vld [vmem:[#allocation5 + $0x70] sm:$0xff]
    %v153 = vld [vmem:[#allocation5 + $0x78] sm:$0xff]
    %v154 = vld [vmem:[#allocation5 + $0x80] sm:$0xff]
    %v155 = vld [vmem:[#allocation5 + $0x88] sm:$0xff]
    %v156 = vld [vmem:[#allocation5 + $0x90] sm:$0xff]
    %v157 = vld [vmem:[#allocation5 + $0x98] sm:$0xff]
    %v158 = vld [vmem:[#allocation5 + $0xa0] sm:$0xff]
    %v159 = vld [vmem:[#allocation5 + $0xa8] sm:$0xff]
    %v160 = vld [vmem:[#allocation5 + $0xb0] sm:$0xff]
    %v161 = vld [vmem:[#allocation5 + $0xb8] sm:$0xff]
    %v162 = vld [vmem:[#allocation5 + $0xc0] sm:$0xff]
    %v163 = vld [vmem:[#allocation5 + $0xc8] sm:$0xff]
    %v164 = vld [vmem:[#allocation5 + $0xd0] sm:$0xff]
    %v165 = vld [vmem:[#allocation5 + $0xd8] sm:$0xff]
    %v166 = vld [vmem:[#allocation5 + $0xe0] sm:$0xff]
    %v167 = vld [vmem:[#allocation5 + $0xe8] sm:$0xff]
    %v168 = vld [vmem:[#allocation5 + $0xf0] sm:$0xff]
    %v169 = vld [vmem:[#allocation5 + $0xf8] sm:$0xff]
    %v170 = vld [vmem:[%s4] sm:$0xf]
    %v171 = vmul.f32 %v134, 0.5
    %v172 = vtanh.pop %v171
    %v173 = vmul.f32 %v172, 0.5
    %v174 = vadd.f32 %v173, 0.5
    %v175 = vmul.f32 %v135, 0.5
    %v176 = vtanh.pop %v175
    %v177 = vmul.f32 %v176, 0.5
    %v178 = vadd.f32 %v177, 0.5
    %v179 = vtanh.pop %v136
    %v180 = vmul.f32 %v178, 0.0
    %v181 = vmul.f32 %v174, %v179
    %v182 = vadd.f32 %v180, %v181
    %v183 = vtanh.pop %v182
    %v184 = vmul.f32 %v137, 0.5
    %v185 = vtanh.pop %v184
    %v186 = vmul.f32 %v185, 0.5
    %v187 = vadd.f32 %v186, 0.5
    %v188 = vmul.f32 %v187, %v183
    %s189 = smul.u32 4, 32
    %s190 = smul.u32 %s189, 4
    %s191 = sshll.u32 %s190, 4
    %192 = dma.done [#allocation3], %s191
    %v193 = vld [vmem:[#allocation2] sm:$0xff]
    %v194 = vld [vmem:[#allocation2 + $0x8] sm:$0xff]
    %v195 = vld [vmem:[#allocation2 + $0x10] sm:$0xff]
    %v196 = vld [vmem:[#allocation2 + $0x18] sm:$0xff]
    %v197 = vld [vmem:[#allocation2 + $0x20] sm:$0xff]
    %v198 = vld [vmem:[#allocation2 + $0x28] sm:$0xff]
    %v199 = vld [vmem:[#allocation2 + $0x30] sm:$0xff]
    %v200 = vld [vmem:[#allocation2 + $0x38] sm:$0xff]
    %v201 = vld [vmem:[#allocation2 + $0x40] sm:$0xff]
    %v202 = vld [vmem:[#allocation2 + $0x48] sm:$0xff]
    %v203 = vld [vmem:[#allocation2 + $0x50] sm:$0xff]
    %v204 = vld [vmem:[#allocation2 + $0x58] sm:$0xff]
    %v205 = vld [vmem:[#allocation2 + $0x60] sm:$0xff]
    %v206 = vld [vmem:[#allocation2 + $0x68] sm:$0xff]
    %v207 = vld [vmem:[#allocation2 + $0x70] sm:$0xff]
    %v208 = vld [vmem:[#allocation2 + $0x78] sm:$0xff]
    %v209 = vld [vmem:[#allocation2 + $0x80] sm:$0xff]
    %v210 = vld [vmem:[#allocation2 + $0x88] sm:$0xff]
    %v211 = vld [vmem:[#allocation2 + $0x90] sm:$0xff]
    %v212 = vld [vmem:[#allocation2 + $0x98] sm:$0xff]
    %v213 = vld [vmem:[#allocation2 + $0xa0] sm:$0xff]
    %v214 = vld [vmem:[#allocation2 + $0xa8] sm:$0xff]
    %v215 = vld [vmem:[#allocation2 + $0xb0] sm:$0xff]
    %v216 = vld [vmem:[#allocation2 + $0xb8] sm:$0xff]
    %v217 = vld [vmem:[#allocation2 + $0xc0] sm:$0xff]
    %v218 = vld [vmem:[#allocation2 + $0xc8] sm:$0xff]
    %v219 = vld [vmem:[#allocation2 + $0xd0] sm:$0xff]
    %v220 = vld [vmem:[#allocation2 + $0xd8] sm:$0xff]
    %v221 = vld [vmem:[#allocation2 + $0xe0] sm:$0xff]
    %v222 = vld [vmem:[#allocation2 + $0xe8] sm:$0xff]
    %v223 = vld [vmem:[#allocation2 + $0xf0] sm:$0xff]
    %v224 = vld [vmem:[#allocation2 + $0xf8] sm:$0xff]
    %v225 = vld [vmem:[#allocation2 + $0x100] sm:$0xff]
    %v226 = vld [vmem:[#allocation2 + $0x108] sm:$0xff]
    %v227 = vld [vmem:[#allocation2 + $0x110] sm:$0xff]
    %v228 = vld [vmem:[#allocation2 + $0x118] sm:$0xff]
    %v229 = vld [vmem:[#allocation2 + $0x120] sm:$0xff]
    %v230 = vld [vmem:[#allocation2 + $0x128] sm:$0xff]
    %v231 = vld [vmem:[#allocation2 + $0x130] sm:$0xff]
    %v232 = vld [vmem:[#allocation2 + $0x138] sm:$0xff]
    %v233 = vld [vmem:[#allocation2 + $0x140] sm:$0xff]
    %v234 = vld [vmem:[#allocation2 + $0x148] sm:$0xff]
    %v235 = vld [vmem:[#allocation2 + $0x150] sm:$0xff]
    %v236 = vld [vmem:[#allocation2 + $0x158] sm:$0xff]
    %v237 = vld [vmem:[#allocation2 + $0x160] sm:$0xff]
    %v238 = vld [vmem:[#allocation2 + $0x168] sm:$0xff]
    %v239 = vld [vmem:[#allocation2 + $0x170] sm:$0xff]
    %v240 = vld [vmem:[#allocation2 + $0x178] sm:$0xff]
    %v241 = vld [vmem:[#allocation2 + $0x180] sm:$0xff]
    %v242 = vld [vmem:[#allocation2 + $0x188] sm:$0xff]
    %v243 = vld [vmem:[#allocation2 + $0x190] sm:$0xff]
    %v244 = vld [vmem:[#allocation2 + $0x198] sm:$0xff]
    %v245 = vld [vmem:[#allocation2 + $0x1a0] sm:$0xff]
    %v246 = vld [vmem:[#allocation2 + $0x1a8] sm:$0xff]
    %v247 = vld [vmem:[#allocation2 + $0x1b0] sm:$0xff]
    %v248 = vld [vmem:[#allocation2 + $0x1b8] sm:$0xff]
    %v249 = vld [vmem:[#allocation2 + $0x1c0] sm:$0xff]
    %v250 = vld [vmem:[#allocation2 + $0x1c8] sm:$0xff]
    %v251 = vld [vmem:[#allocation2 + $0x1d0] sm:$0xff]
    %v252 = vld [vmem:[#allocation2 + $0x1d8] sm:$0xff]
    %v253 = vld [vmem:[#allocation2 + $0x1e0] sm:$0xff]
    %v254 = vld [vmem:[#allocation2 + $0x1e8] sm:$0xff]
    %v255 = vld [vmem:[#allocation2 + $0x1f0] sm:$0xff]
    %v256 = vld [vmem:[#allocation2 + $0x1f8] sm:$0xff]
    %v257 = vpack.c.bf16 %v188, %v188
    %v258 = vpack.c.bf16 0.0, 0.0
    %v260 = vlaneseq
    %v261 = vshrl.u32 %v260, 7
    %v262 = vsub.s32 0, %v261
    %v263 = vrot.slane %v170, %v262
    %v264 = vlaneseq
    %v265 = vshrl.u32 %v264, 7
    %v266 = vsub.s32 1, %v265
    %v267 = vrot.slane %v170, %v266
    %v268 = vlaneseq
    %v269 = vshrl.u32 %v268, 7
    %v270 = vsub.s32 2, %v269
    %v271 = vrot.slane %v170, %v270
    %v272 = vlaneseq
    %v273 = vshrl.u32 %v272, 7
    %v274 = vsub.s32 3, %v273
    %v275 = vrot.slane %v170, %v274
    %280 = vmatprep.subr.bf16.mxu0 %v194
    %281 = vmatpush1.bf16.msra.mxu0 %v193
    %282 = vmatprep.subr.bf16.mxu0 %v198
    %283 = vmatpush1.bf16.msra.mxu0 %v197
    %284 = vmatprep.subr.bf16.mxu0 %v202
    %285 = vmatpush1.bf16.msra.mxu0 %v201
    %286 = vmatprep.subr.bf16.mxu0 %v206
    %287 = vmatpush1.bf16.msra.mxu0 %v205
    %288 = vmatprep.subr.bf16.mxu0 %v210
    %289 = vmatpush1.bf16.msra.mxu0 %v209
    %290 = vmatprep.subr.bf16.mxu0 %v214
    %291 = vmatpush1.bf16.msra.mxu0 %v213
    %292 = vmatprep.subr.bf16.mxu0 %v218
    %293 = vmatpush1.bf16.msra.mxu0 %v217
    %294 = vmatprep.subr.bf16.mxu0 %v222
    %295 = vmatpush1.bf16.msra.mxu0 %v221
    %296 = vmatprep.subr.bf16.mxu0 %v226
    %297 = vmatpush1.bf16.msra.mxu0 %v225
    %298 = vmatprep.subr.bf16.mxu0 %v230
    %299 = vmatpush1.bf16.msra.mxu0 %v229
    %300 = vmatprep.subr.bf16.mxu0 %v234
    %301 = vmatpush1.bf16.msra.mxu0 %v233
    %302 = vmatprep.subr.bf16.mxu0 %v238
    %303 = vmatpush1.bf16.msra.mxu0 %v237
    %304 = vmatprep.subr.bf16.mxu0 %v242
    %305 = vmatpush1.bf16.msra.mxu0 %v241
    %306 = vmatprep.subr.bf16.mxu0 %v246
    %307 = vmatpush1.bf16.msra.mxu0 %v245
    %308 = vmatprep.subr.bf16.mxu0 %v250
    %309 = vmatpush1.bf16.msra.mxu0 %v249
    %310 = vmatprep.subr.bf16.mxu0 %v254
    %311 = vmatpush1.bf16.msra.mxu0 %v253
    %312 = vmatprep.mubr.bf16.mxu0 %v258
    %313 = vmatmul.mubr.bf16.gmra.mrb[0].mxu0 %v257
    %v314 = vpop.f32.mrb[0].mxu0
    %v315 = vadd.f32 %v263, %v314
    %v316 = vpop.f32.mrb[0].mxu0
    %v317 = vadd.f32 %v267, %v316
    %v318 = vpop.f32.mrb[0].mxu0
    %v319 = vpop.f32.mrb[0].mxu0
    %320 = vdwg.mxu0
    %321 = vmatprep.subr.bf16.mxu0 %v196
    %322 = vmatpush1.bf16.msra.mxu0 %v195
    %323 = vmatprep.subr.bf16.mxu0 %v200
    %324 = vmatpush1.bf16.msra.mxu0 %v199
    %325 = vmatprep.subr.bf16.mxu0 %v204
    %326 = vmatpush1.bf16.msra.mxu0 %v203
    %327 = vmatprep.subr.bf16.mxu0 %v208
    %328 = vmatpush1.bf16.msra.mxu0 %v207
    %329 = vmatprep.subr.bf16.mxu0 %v212
    %330 = vmatpush1.bf16.msra.mxu0 %v211
    %331 = vmatprep.subr.bf16.mxu0 %v216
    %332 = vmatpush1.bf16.msra.mxu0 %v215
    %333 = vmatprep.subr.bf16.mxu0 %v220
    %334 = vmatpush1.bf16.msra.mxu0 %v219
    %335 = vmatprep.subr.bf16.mxu0 %v224
    %336 = vmatpush1.bf16.msra.mxu0 %v223
    %337 = vmatprep.subr.bf16.mxu0 %v228
    %338 = vmatpush1.bf16.msra.mxu0 %v227
    %339 = vmatprep.subr.bf16.mxu0 %v232
    %340 = vmatpush1.bf16.msra.mxu0 %v231
    %341 = vmatprep.subr.bf16.mxu0 %v236
    %342 = vmatpush1.bf16.msra.mxu0 %v235
    %343 = vmatprep.subr.bf16.mxu0 %v240
    %344 = vmatpush1.bf16.msra.mxu0 %v239
    %345 = vmatprep.subr.bf16.mxu0 %v244
    %346 = vmatpush1.bf16.msra.mxu0 %v243
    %347 = vmatprep.subr.bf16.mxu0 %v248
    %348 = vmatpush1.bf16.msra.mxu0 %v247
    %349 = vmatprep.subr.bf16.mxu0 %v252
    %350 = vmatpush1.bf16.msra.mxu0 %v251
    %351 = vmatprep.subr.bf16.mxu0 %v256
    %352 = vmatpush1.bf16.msra.mxu0 %v255
    %353 = vmatprep.mubr.bf16.mxu0 %v258
    %354 = vmatmul.mubr.bf16.gmra.mrb[0].mxu0 %v257
    %v355 = vpop.f32.mrb[0].mxu0
    %v356 = vadd.f32 %v271, %v355
    %v357 = vpop.f32.mrb[0].mxu0
    %v358 = vadd.f32 %v275, %v357
    %v359 = vpop.f32.mrb[0].mxu0
    %v360 = vpop.f32.mrb[0].mxu0
    %361 = vdwg.mxu0
    %v362 = vmul.f32 %v315, 0.5
    %v363 = vtanh.pop %v362
    %v364 = vmul.f32 %v363, 0.5
    %v365 = vadd.f32 %v364, 0.5
    %v366 = vmul.f32 %v317, 0.5
    %v367 = vtanh.pop %v366
    %v368 = vmul.f32 %v367, 0.5
    %v369 = vadd.f32 %v368, 0.5
    %v370 = vtanh.pop %v356
    %v371 = vmul.f32 %v369, 0.0
    %v372 = vmul.f32 %v365, %v370
    %v373 = vadd.f32 %v371, %v372
    %v374 = vtanh.pop %v373
    %v375 = vmul.f32 %v358, 0.5
    %v376 = vtanh.pop %v375
    %v377 = vmul.f32 %v376, 0.5
    %v378 = vadd.f32 %v377, 0.5
    %v379 = vmul.f32 %v378, %v374
    %v412 = vunpack.c.l.b16 %v138
    %v413 = vunpack.c.h.b16 %v138
    %v414 = vunpack.c.l.b16 %v139
    %v415 = vunpack.c.h.b16 %v139
    %v416 = vunpack.c.l.b16 %v140
    %v417 = vunpack.c.h.b16 %v140
    %v418 = vunpack.c.l.b16 %v141
    %v419 = vunpack.c.h.b16 %v141
    %v420 = vunpack.c.l.b16 %v142
    %v421 = vunpack.c.h.b16 %v142
    %v422 = vunpack.c.l.b16 %v143
    %v423 = vunpack.c.h.b16 %v143
    %v424 = vunpack.c.l.b16 %v144
    %v425 = vunpack.c.h.b16 %v144
    %v426 = vunpack.c.l.b16 %v145
    %v427 = vunpack.c.h.b16 %v145
    %v428 = vunpack.c.l.b16 %v146
    %v429 = vunpack.c.h.b16 %v146
    %v430 = vunpack.c.l.b16 %v147
    %v431 = vunpack.c.h.b16 %v147
    %v432 = vunpack.c.l.b16 %v148
    %v433 = vunpack.c.h.b16 %v148
    %v434 = vunpack.c.l.b16 %v149
    %v435 = vunpack.c.h.b16 %v149
    %v436 = vunpack.c.l.b16 %v150
    %v437 = vunpack.c.h.b16 %v150
    %v438 = vunpack.c.l.b16 %v151
    %v439 = vunpack.c.h.b16 %v151
    %v440 = vunpack.c.l.b16 %v152
    %v441 = vunpack.c.h.b16 %v152
    %v442 = vunpack.c.l.b16 %v153
    %v443 = vunpack.c.h.b16 %v153
    %v444 = vunpack.c.l.b16 %v154
    %v445 = vunpack.c.h.b16 %v154
    %v446 = vunpack.c.l.b16 %v155
    %v447 = vunpack.c.h.b16 %v155
    %v448 = vunpack.c.l.b16 %v156
    %v449 = vunpack.c.h.b16 %v156
    %v450 = vunpack.c.l.b16 %v157
    %v451 = vunpack.c.h.b16 %v157
    %v452 = vunpack.c.l.b16 %v158
    %v453 = vunpack.c.h.b16 %v158
    %v454 = vunpack.c.l.b16 %v159
    %v455 = vunpack.c.h.b16 %v159
    %v456 = vunpack.c.l.b16 %v160
    %v457 = vunpack.c.h.b16 %v160
    %v458 = vunpack.c.l.b16 %v161
    %v459 = vunpack.c.h.b16 %v161
    %v460 = vunpack.c.l.b16 %v162
    %v461 = vunpack.c.h.b16 %v162
    %v462 = vunpack.c.l.b16 %v163
    %v463 = vunpack.c.h.b16 %v163
    %v464 = vunpack.c.l.b16 %v164
    %v465 = vunpack.c.h.b16 %v164
    %v466 = vunpack.c.l.b16 %v165
    %v467 = vunpack.c.h.b16 %v165
    %v468 = vunpack.c.l.b16 %v166
    %v469 = vunpack.c.h.b16 %v166
    %v470 = vunpack.c.l.b16 %v167
    %v471 = vunpack.c.h.b16 %v167
    %v472 = vunpack.c.l.b16 %v168
    %v473 = vunpack.c.h.b16 %v168
    %v474 = vunpack.c.l.b16 %v169
    %v475 = vunpack.c.h.b16 %v169
    %v476 = vpack.c.b16 %v416, %v412
    %v477 = vpack.c.b16 %v417, %v413
    %v478 = vpack.c.b16 %v418, %v414
    %v479 = vpack.c.b16 %v419, %v415
    %v480 = vpack.c.b16 %v424, %v420
    %v481 = vpack.c.b16 %v425, %v421
    %v482 = vpack.c.b16 %v426, %v422
    %v483 = vpack.c.b16 %v427, %v423
    %v484 = vpack.c.b16 %v432, %v428
    %v485 = vpack.c.b16 %v433, %v429
    %v486 = vpack.c.b16 %v434, %v430
    %v487 = vpack.c.b16 %v435, %v431
    %v488 = vpack.c.b16 %v440, %v436
    %v489 = vpack.c.b16 %v441, %v437
    %v490 = vpack.c.b16 %v442, %v438
    %v491 = vpack.c.b16 %v443, %v439
    %v492 = vpack.c.b16 %v448, %v444
    %v493 = vpack.c.b16 %v449, %v445
    %v494 = vpack.c.b16 %v450, %v446
    %v495 = vpack.c.b16 %v451, %v447
    %v496 = vpack.c.b16 %v456, %v452
    %v497 = vpack.c.b16 %v457, %v453
    %v498 = vpack.c.b16 %v458, %v454
    %v499 = vpack.c.b16 %v459, %v455
    %v500 = vpack.c.b16 %v464, %v460
    %v501 = vpack.c.b16 %v465, %v461
    %v502 = vpack.c.b16 %v466, %v462
    %v503 = vpack.c.b16 %v467, %v463
    %v504 = vpack.c.b16 %v472, %v468
    %v505 = vpack.c.b16 %v473, %v469
    %v506 = vpack.c.b16 %v474, %v470
    %v507 = vpack.c.b16 %v475, %v471
    %540 = vmatprep.subr.bf16.mxu0 %v477
    %541 = vmatpush1.bf16.msra.mxu0 %v476
    %542 = vmatprep.subr.bf16.mxu0 %v481
    %543 = vmatpush1.bf16.msra.mxu0 %v480
    %544 = vmatprep.subr.bf16.mxu0 %v485
    %545 = vmatpush1.bf16.msra.mxu0 %v484
    %546 = vmatprep.subr.bf16.mxu0 %v489
    %547 = vmatpush1.bf16.msra.mxu0 %v488
    %548 = vmatprep.subr.bf16.mxu0 %v493
    %549 = vmatpush1.bf16.msra.mxu0 %v492
    %550 = vmatprep.subr.bf16.mxu0 %v497
    %551 = vmatpush1.bf16.msra.mxu0 %v496
    %552 = vmatprep.subr.bf16.mxu0 %v501
    %553 = vmatpush1.bf16.msra.mxu0 %v500
    %554 = vmatprep.subr.bf16.mxu0 %v505
    %555 = vmatpush1.bf16.msra.mxu0 %v504
    %556 = vmatprep.subr.bf16.mxu0 0
    %557 = vmatpush1.bf16.msra.mxu0 0
    %558 = vmatprep.subr.bf16.mxu0 0
    %559 = vmatpush1.bf16.msra.mxu0 0
    %560 = vmatprep.subr.bf16.mxu0 0
    %561 = vmatpush1.bf16.msra.mxu0 0
    %562 = vmatprep.subr.bf16.mxu0 0
    %563 = vmatpush1.bf16.msra.mxu0 0
    %564 = vmatprep.subr.bf16.mxu0 0
    %565 = vmatpush1.bf16.msra.mxu0 0
    %566 = vmatprep.subr.bf16.mxu0 0
    %567 = vmatpush1.bf16.msra.mxu0 0
    %568 = vmatprep.subr.bf16.mxu0 0
    %569 = vmatpush1.bf16.msra.mxu0 0
    %570 = vmatprep.subr.bf16.mxu0 0
    %571 = vmatpush1.bf16.msra.mxu0 0
    %572 = vmatprep.mubr.bf16.mxu0 0
    %573 = vmatmul.mubr.bf16.gmra.mrb[0].mxu0 %v257
    %v574 = vpop.f32.mrb[0].mxu0
    %v575 = vadd.f32 0.0, %v574
    %v576 = vpop.f32.mrb[0].mxu0
    %v577 = vadd.f32 0.0, %v576
    %v578 = vpop.f32.mrb[0].mxu0
    %v579 = vpop.f32.mrb[0].mxu0
    %580 = vdwg.mxu0
    %581 = vmatprep.subr.bf16.mxu0 %v479
    %582 = vmatpush1.bf16.msra.mxu0 %v478
    %583 = vmatprep.subr.bf16.mxu0 %v483
    %584 = vmatpush1.bf16.msra.mxu0 %v482
    %585 = vmatprep.subr.bf16.mxu0 %v487
    %586 = vmatpush1.bf16.msra.mxu0 %v486
    %587 = vmatprep.subr.bf16.mxu0 %v491
    %588 = vmatpush1.bf16.msra.mxu0 %v490
    %589 = vmatprep.subr.bf16.mxu0 %v495
    %590 = vmatpush1.bf16.msra.mxu0 %v494
    %591 = vmatprep.subr.bf16.mxu0 %v499
    %592 = vmatpush1.bf16.msra.mxu0 %v498
    %593 = vmatprep.subr.bf16.mxu0 %v503
    %594 = vmatpush1.bf16.msra.mxu0 %v502
    %595 = vmatprep.subr.bf16.mxu0 %v507
    %596 = vmatpush1.bf16.msra.mxu0 %v506
    %597 = vmatprep.subr.bf16.mxu0 0
    %598 = vmatpush1.bf16.msra.mxu0 0
    %599 = vmatprep.subr.bf16.mxu0 0
    %600 = vmatpush1.bf16.msra.mxu0 0
    %601 = vmatprep.subr.bf16.mxu0 0
    %602 = vmatpush1.bf16.msra.mxu0 0
    %603 = vmatprep.subr.bf16.mxu0 0
    %604 = vmatpush1.bf16.msra.mxu0 0
    %605 = vmatprep.subr.bf16.mxu0 0
    %606 = vmatpush1.bf16.msra.mxu0 0
    %607 = vmatprep.subr.bf16.mxu0 0
    %608 = vmatpush1.bf16.msra.mxu0 0
    %609 = vmatprep.subr.bf16.mxu0 0
    %610 = vmatpush1.bf16.msra.mxu0 0
    %611 = vmatprep.subr.bf16.mxu0 0
    %612 = vmatpush1.bf16.msra.mxu0 0
    %613 = vmatprep.mubr.bf16.mxu0 0
    %614 = vmatmul.mubr.bf16.gmra.mrb[0].mxu0 %v257
    %v615 = vpop.f32.mrb[0].mxu0
    %v616 = vadd.f32 0.0, %v615
    %v617 = vpop.f32.mrb[0].mxu0
    %v618 = vadd.f32 0.0, %v617
    %v619 = vpop.f32.mrb[0].mxu0
    %v620 = vpop.f32.mrb[0].mxu0
    %621 = vdwg.mxu0
    %v626 = vrot.slane %v575, 7
    %v627 = vrot.slane %v577, 7
    %v628 = vrot.slane %v616, 7
    %v629 = vrot.slane %v618, 7
    %v634 = vadd.f32 %v134, %v626
    %v635 = vadd.f32 %v135, %v627
    %v636 = vadd.f32 %v136, %v628
    %v637 = vadd.f32 %v137, %v629
    %v638 = vmul.f32 %v634, 0.5
    %v639 = vtanh.pop %v638
    %v640 = vmul.f32 %v639, 0.5
    %v641 = vadd.f32 %v640, 0.5
    %v642 = vmul.f32 %v635, 0.5
    %v643 = vtanh.pop %v642
    %v644 = vmul.f32 %v643, 0.5
    %v645 = vadd.f32 %v644, 0.5
    %v646 = vtanh.pop %v636
    %v648 = vrot.slane %v182, 7
    %v650 = vmul.f32 %v645, %v648
    %v651 = vmul.f32 %v641, %v646
    %v652 = vadd.f32 %v650, %v651
    %v653 = vtanh.pop %v652
    %v654 = vmul.f32 %v637, 0.5
    %v655 = vtanh.pop %v654
    %v656 = vmul.f32 %v655, 0.5
    %v657 = vadd.f32 %v656, 0.5
    %v658 = vmul.f32 %v657, %v653
    %v660 = vrot.slane %v379, 7
    %v662 = vpack.c.bf16 %v658, %v658
    %v663 = vpack.c.bf16 %v660, %v660
    %v665 = vshrl.u32 %v662, 16
    %v668 = vshrl.u32 %v663, 16
    %672 = vmatprep.subr.bf16.mxu0 %v194
    %673 = vmatpush1.bf16.msra.mxu0 %v193
    %674 = vmatprep.subr.bf16.mxu0 %v198
    %675 = vmatpush1.bf16.msra.mxu0 %v197
    %676 = vmatprep.subr.bf16.mxu0 %v202
    %677 = vmatpush1.bf16.msra.mxu0 %v201
    %678 = vmatprep.subr.bf16.mxu0 %v206
    %679 = vmatpush1.bf16.msra.mxu0 %v205
    %680 = vmatprep.subr.bf16.mxu0 %v210
    %681 = vmatpush1.bf16.msra.mxu0 %v209
    %682 = vmatprep.subr.bf16.mxu0 %v214
    %683 = vmatpush1.bf16.msra.mxu0 %v213
    %684 = vmatprep.subr.bf16.mxu0 %v218
    %685 = vmatpush1.bf16.msra.mxu0 %v217
    %686 = vmatprep.subr.bf16.mxu0 %v222
    %687 = vmatpush1.bf16.msra.mxu0 %v221
    %688 = vmatprep.subr.bf16.mxu0 %v226
    %689 = vmatpush1.bf16.msra.mxu0 %v225
    %690 = vmatprep.subr.bf16.mxu0 %v230
    %691 = vmatpush1.bf16.msra.mxu0 %v229
    %692 = vmatprep.subr.bf16.mxu0 %v234
    %693 = vmatpush1.bf16.msra.mxu0 %v233
    %694 = vmatprep.subr.bf16.mxu0 %v238
    %695 = vmatpush1.bf16.msra.mxu0 %v237
    %696 = vmatprep.subr.bf16.mxu0 %v242
    %697 = vmatpush1.bf16.msra.mxu0 %v241
    %698 = vmatprep.subr.bf16.mxu0 %v246
    %699 = vmatpush1.bf16.msra.mxu0 %v245
    %700 = vmatprep.subr.bf16.mxu0 %v250
    %701 = vmatpush1.bf16.msra.mxu0 %v249
    %702 = vmatprep.subr.bf16.mxu0 %v254
    %703 = vmatpush1.bf16.msra.mxu0 %v253
    %704 = vmatprep.mubr.bf16.mxu0 %v668
    %705 = vmatmul.mubr.bf16.gmra.mrb[0].mxu0 %v665
    %v706 = vpop.f32.mrb[0].mxu0
    %v707 = vadd.f32 %v263, %v706
    %v708 = vpop.f32.mrb[0].mxu0
    %v709 = vadd.f32 %v267, %v708
    %v710 = vpop.f32.mrb[0].mxu0
    %v711 = vpop.f32.mrb[0].mxu0
    %712 = vdwg.mxu0
    %713 = vmatprep.subr.bf16.mxu0 %v196
    %714 = vmatpush1.bf16.msra.mxu0 %v195
    %715 = vmatprep.subr.bf16.mxu0 %v200
    %716 = vmatpush1.bf16.msra.mxu0 %v199
    %717 = vmatprep.subr.bf16.mxu0 %v204
    %718 = vmatpush1.bf16.msra.mxu0 %v203
    %719 = vmatprep.subr.bf16.mxu0 %v208
    %720 = vmatpush1.bf16.msra.mxu0 %v207
    %721 = vmatprep.subr.bf16.mxu0 %v212
    %722 = vmatpush1.bf16.msra.mxu0 %v211
    %723 = vmatprep.subr.bf16.mxu0 %v216
    %724 = vmatpush1.bf16.msra.mxu0 %v215
    %725 = vmatprep.subr.bf16.mxu0 %v220
    %726 = vmatpush1.bf16.msra.mxu0 %v219
    %727 = vmatprep.subr.bf16.mxu0 %v224
    %728 = vmatpush1.bf16.msra.mxu0 %v223
    %729 = vmatprep.subr.bf16.mxu0 %v228
    %730 = vmatpush1.bf16.msra.mxu0 %v227
    %731 = vmatprep.subr.bf16.mxu0 %v232
    %732 = vmatpush1.bf16.msra.mxu0 %v231
    %733 = vmatprep.subr.bf16.mxu0 %v236
    %734 = vmatpush1.bf16.msra.mxu0 %v235
    %735 = vmatprep.subr.bf16.mxu0 %v240
    %736 = vmatpush1.bf16.msra.mxu0 %v239
    %737 = vmatprep.subr.bf16.mxu0 %v244
    %738 = vmatpush1.bf16.msra.mxu0 %v243
    %739 = vmatprep.subr.bf16.mxu0 %v248
    %740 = vmatpush1.bf16.msra.mxu0 %v247
    %741 = vmatprep.subr.bf16.mxu0 %v252
    %742 = vmatpush1.bf16.msra.mxu0 %v251
    %743 = vmatprep.subr.bf16.mxu0 %v256
    %744 = vmatpush1.bf16.msra.mxu0 %v255
    %745 = vmatprep.mubr.bf16.mxu0 %v668
    %746 = vmatmul.mubr.bf16.gmra.mrb[0].mxu0 %v665
    %v747 = vpop.f32.mrb[0].mxu0
    %v748 = vadd.f32 %v271, %v747
    %v749 = vpop.f32.mrb[0].mxu0
    %v750 = vadd.f32 %v275, %v749
    %v751 = vpop.f32.mrb[0].mxu0
    %v752 = vpop.f32.mrb[0].mxu0
    %753 = vdwg.mxu0
    %v754 = vmul.f32 %v707, 0.5
    %v755 = vtanh.pop %v754
    %v756 = vmul.f32 %v755, 0.5
    %v757 = vadd.f32 %v756, 0.5
    %v758 = vmul.f32 %v709, 0.5
    %v759 = vtanh.pop %v758
    %v760 = vmul.f32 %v759, 0.5
    %v761 = vadd.f32 %v760, 0.5
    %v762 = vtanh.pop %v748
    %v763 = vmul.f32 %v761, %v373
    %v764 = vmul.f32 %v757, %v762
    %v765 = vadd.f32 %v763, %v764
    %v766 = vtanh.pop %v765
    %v767 = vmul.f32 %v750, 0.5
    %v768 = vtanh.pop %v767
    %v769 = vmul.f32 %v768, 0.5
    %v770 = vadd.f32 %v769, 0.5
    %v771 = vmul.f32 %v770, %v766
    %772 = vmatprep.subr.bf16.mxu0 %v477
    %773 = vmatpush1.bf16.msra.mxu0 %v476
    %774 = vmatprep.subr.bf16.mxu0 %v481
    %775 = vmatpush1.bf16.msra.mxu0 %v480
    %776 = vmatprep.subr.bf16.mxu0 %v485
    %777 = vmatpush1.bf16.msra.mxu0 %v484
    %778 = vmatprep.subr.bf16.mxu0 %v489
    %779 = vmatpush1.bf16.msra.mxu0 %v488
    %780 = vmatprep.subr.bf16.mxu0 %v493
    %781 = vmatpush1.bf16.msra.mxu0 %v492
    %782 = vmatprep.subr.bf16.mxu0 %v497
    %783 = vmatpush1.bf16.msra.mxu0 %v496
    %784 = vmatprep.subr.bf16.mxu0 %v501
    %785 = vmatpush1.bf16.msra.mxu0 %v500
    %786 = vmatprep.subr.bf16.mxu0 %v505
    %787 = vmatpush1.bf16.msra.mxu0 %v504
    %788 = vmatprep.subr.bf16.mxu0 0
    %789 = vmatpush1.bf16.msra.mxu0 0
    %790 = vmatprep.subr.bf16.mxu0 0
    %791 = vmatpush1.bf16.msra.mxu0 0
    %792 = vmatprep.subr.bf16.mxu0 0
    %793 = vmatpush1.bf16.msra.mxu0 0
    %794 = vmatprep.subr.bf16.mxu0 0
    %795 = vmatpush1.bf16.msra.mxu0 0
    %796 = vmatprep.subr.bf16.mxu0 0
    %797 = vmatpush1.bf16.msra.mxu0 0
    %798 = vmatprep.subr.bf16.mxu0 0
    %799 = vmatpush1.bf16.msra.mxu0 0
    %800 = vmatprep.subr.bf16.mxu0 0
    %801 = vmatpush1.bf16.msra.mxu0 0
    %802 = vmatprep.subr.bf16.mxu0 0
    %803 = vmatpush1.bf16.msra.mxu0 0
    %804 = vmatprep.mubr.bf16.mxu0 0
    %805 = vmatmul.mubr.bf16.gmra.mrb[0].mxu0 %v665
    %v806 = vpop.f32.mrb[0].mxu0
    %v807 = vadd.f32 0.0, %v806
    %v808 = vpop.f32.mrb[0].mxu0
    %v809 = vadd.f32 0.0, %v808
    %v810 = vpop.f32.mrb[0].mxu0
    %v811 = vpop.f32.mrb[0].mxu0
    %812 = vdwg.mxu0
    %813 = vmatprep.subr.bf16.mxu0 %v479
    %814 = vmatpush1.bf16.msra.mxu0 %v478
    %815 = vmatprep.subr.bf16.mxu0 %v483
    %816 = vmatpush1.bf16.msra.mxu0 %v482
    %817 = vmatprep.subr.bf16.mxu0 %v487
    %818 = vmatpush1.bf16.msra.mxu0 %v486
    %819 = vmatprep.subr.bf16.mxu0 %v491
    %820 = vmatpush1.bf16.msra.mxu0 %v490
    %821 = vmatprep.subr.bf16.mxu0 %v495
    %822 = vmatpush1.bf16.msra.mxu0 %v494
    %823 = vmatprep.subr.bf16.mxu0 %v499
    %824 = vmatpush1.bf16.msra.mxu0 %v498
    %825 = vmatprep.subr.bf16.mxu0 %v503
    %826 = vmatpush1.bf16.msra.mxu0 %v502
    %827 = vmatprep.subr.bf16.mxu0 %v507
    %828 = vmatpush1.bf16.msra.mxu0 %v506
    %829 = vmatprep.subr.bf16.mxu0 0
    %830 = vmatpush1.bf16.msra.mxu0 0
    %831 = vmatprep.subr.bf16.mxu0 0
    %832 = vmatpush1.bf16.msra.mxu0 0
    %833 = vmatprep.subr.bf16.mxu0 0
    %834 = vmatpush1.bf16.msra.mxu0 0
    %835 = vmatprep.subr.bf16.mxu0 0
    %836 = vmatpush1.bf16.msra.mxu0 0
    %837 = vmatprep.subr.bf16.mxu0 0
    %838 = vmatpush1.bf16.msra.mxu0 0
    %839 = vmatprep.subr.bf16.mxu0 0
    %840 = vmatpush1.bf16.msra.mxu0 0
    %841 = vmatprep.subr.bf16.mxu0 0
    %842 = vmatpush1.bf16.msra.mxu0 0
    %843 = vmatprep.subr.bf16.mxu0 0
    %844 = vmatpush1.bf16.msra.mxu0 0
    %845 = vmatprep.mubr.bf16.mxu0 0
    %846 = vmatmul.mubr.bf16.gmra.mrb[0].mxu0 %v665
    %v847 = vpop.f32.mrb[0].mxu0
    %v848 = vadd.f32 0.0, %v847
    %v849 = vpop.f32.mrb[0].mxu0
    %v850 = vadd.f32 0.0, %v849
    %v851 = vpop.f32.mrb[0].mxu0
    %v852 = vpop.f32.mrb[0].mxu0
    %853 = vdwg.mxu0
    %v858 = vrot.slane %v807, 6
    %v859 = vrot.slane %v809, 6
    %v860 = vrot.slane %v848, 6
    %v861 = vrot.slane %v850, 6
    %v866 = vadd.f32 %v134, %v858
    %v867 = vadd.f32 %v135, %v859
    %v868 = vadd.f32 %v136, %v860
    %v869 = vadd.f32 %v137, %v861
    %v870 = vmul.f32 %v866, 0.5
    %v871 = vtanh.pop %v870
    %v872 = vmul.f32 %v871, 0.5
    %v873 = vadd.f32 %v872, 0.5
    %v874 = vmul.f32 %v867, 0.5
    %v875 = vtanh.pop %v874
    %v876 = vmul.f32 %v875, 0.5
    %v877 = vadd.f32 %v876, 0.5
    %v878 = vtanh.pop %v868
    %v880 = vrot.slane %v652, 7
    %v882 = vmul.f32 %v877, %v880
    %v883 = vmul.f32 %v873, %v878
    %v884 = vadd.f32 %v882, %v883
    %v885 = vtanh.pop %v884
    %v886 = vmul.f32 %v869, 0.5
    %v887 = vtanh.pop %v886
    %v888 = vmul.f32 %v887, 0.5
    %v889 = vadd.f32 %v888, 0.5
    %v890 = vmul.f32 %v889, %v885
    %v892 = vrot.slane %v771, 6
    %v894 = vpack.c.bf16 %v890, %v890
    %v895 = vpack.c.bf16 %v892, %v892
    %v898 = vrot.slane %v894, 1
    %v899 = vrot.slane %v895, 1
    %902 = vmatprep.subr.bf16.mxu0 %v194
    %903 = vmatpush1.bf16.msra.mxu0 %v193
    %904 = vmatprep.subr.bf16.mxu0 %v198
    %905 = vmatpush1.bf16.msra.mxu0 %v197
    %906 = vmatprep.subr.bf16.mxu0 %v202
    %907 = vmatpush1.bf16.msra.mxu0 %v201
    %908 = vmatprep.subr.bf16.mxu0 %v206
    %909 = vmatpush1.bf16.msra.mxu0 %v205
    %910 = vmatprep.subr.bf16.mxu0 %v210
    %911 = vmatpush1.bf16.msra.mxu0 %v209
    %912 = vmatprep.subr.bf16.mxu0 %v214
    %913 = vmatpush1.bf16.msra.mxu0 %v213
    %914 = vmatprep.subr.bf16.mxu0 %v218
    %915 = vmatpush1.bf16.msra.mxu0 %v217
    %916 = vmatprep.subr.bf16.mxu0 %v222
    %917 = vmatpush1.bf16.msra.mxu0 %v221
    %918 = vmatprep.subr.bf16.mxu0 %v226
    %919 = vmatpush1.bf16.msra.mxu0 %v225
    %920 = vmatprep.subr.bf16.mxu0 %v230
    %921 = vmatpush1.bf16.msra.mxu0 %v229
    %922 = vmatprep.subr.bf16.mxu0 %v234
    %923 = vmatpush1.bf16.msra.mxu0 %v233
    %924 = vmatprep.subr.bf16.mxu0 %v238
    %925 = vmatpush1.bf16.msra.mxu0 %v237
    %926 = vmatprep.subr.bf16.mxu0 %v242
    %927 = vmatpush1.bf16.msra.mxu0 %v241
    %928 = vmatprep.subr.bf16.mxu0 %v246
    %929 = vmatpush1.bf16.msra.mxu0 %v245
    %930 = vmatprep.subr.bf16.mxu0 %v250
    %931 = vmatpush1.bf16.msra.mxu0 %v249
    %932 = vmatprep.subr.bf16.mxu0 %v254
    %933 = vmatpush1.bf16.msra.mxu0 %v253
    %934 = vmatprep.mubr.bf16.mxu0 %v899
    %935 = vmatmul.mubr.bf16.gmra.mrb[0].mxu0 %v898
    %v936 = vpop.f32.mrb[0].mxu0
    %v937 = vadd.f32 %v263, %v936
    %v938 = vpop.f32.mrb[0].mxu0
    %v939 = vadd.f32 %v267, %v938
    %v940 = vpop.f32.mrb[0].mxu0
    %v941 = vpop.f32.mrb[0].mxu0
    %942 = vdwg.mxu0
    %943 = vmatprep.subr.bf16.mxu0 %v196
    %944 = vmatpush1.bf16.msra.mxu0 %v195
    %945 = vmatprep.subr.bf16.mxu0 %v200
    %946 = vmatpush1.bf16.msra.mxu0 %v199
    %947 = vmatprep.subr.bf16.mxu0 %v204
    %948 = vmatpush1.bf16.msra.mxu0 %v203
    %949 = vmatprep.subr.bf16.mxu0 %v208
    %950 = vmatpush1.bf16.msra.mxu0 %v207
    %951 = vmatprep.subr.bf16.mxu0 %v212
    %952 = vmatpush1.bf16.msra.mxu0 %v211
    %953 = vmatprep.subr.bf16.mxu0 %v216
    %954 = vmatpush1.bf16.msra.mxu0 %v215
    %955 = vmatprep.subr.bf16.mxu0 %v220
    %956 = vmatpush1.bf16.msra.mxu0 %v219
    %957 = vmatprep.subr.bf16.mxu0 %v224
    %958 = vmatpush1.bf16.msra.mxu0 %v223
    %959 = vmatprep.subr.bf16.mxu0 %v228
    %960 = vmatpush1.bf16.msra.mxu0 %v227
    %961 = vmatprep.subr.bf16.mxu0 %v232
    %962 = vmatpush1.bf16.msra.mxu0 %v231
    %963 = vmatprep.subr.bf16.mxu0 %v236
    %964 = vmatpush1.bf16.msra.mxu0 %v235
    %965 = vmatprep.subr.bf16.mxu0 %v240
    %966 = vmatpush1.bf16.msra.mxu0 %v239
    %967 = vmatprep.subr.bf16.mxu0 %v244
    %968 = vmatpush1.bf16.msra.mxu0 %v243
    %969 = vmatprep.subr.bf16.mxu0 %v248
    %970 = vmatpush1.bf16.msra.mxu0 %v247
    %971 = vmatprep.subr.bf16.mxu0 %v252
    %972 = vmatpush1.bf16.msra.mxu0 %v251
    %973 = vmatprep.subr.bf16.mxu0 %v256
    %974 = vmatpush1.bf16.msra.mxu0 %v255
    %975 = vmatprep.mubr.bf16.mxu0 %v899
    %976 = vmatmul.mubr.bf16.gmra.mrb[0].mxu0 %v898
    %v977 = vpop.f32.mrb[0].mxu0
    %v978 = vadd.f32 %v271, %v977
    %v979 = vpop.f32.mrb[0].mxu0
    %v980 = vadd.f32 %v275, %v979
    %v981 = vpop.f32.mrb[0].mxu0
    %v982 = vpop.f32.mrb[0].mxu0
    %983 = vdwg.mxu0
    %v984 = vmul.f32 %v937, 0.5
    %v985 = vtanh.pop %v984
    %v986 = vmul.f32 %v985, 0.5
    %v987 = vadd.f32 %v986, 0.5
    %v988 = vmul.f32 %v939, 0.5
    %v989 = vtanh.pop %v988
    %v990 = vmul.f32 %v989, 0.5
    %v991 = vadd.f32 %v990, 0.5
    %v992 = vtanh.pop %v978
    %v993 = vmul.f32 %v991, %v765
    %v994 = vmul.f32 %v987, %v992
    %v995 = vadd.f32 %v993, %v994
    %v996 = vtanh.pop %v995
    %v997 = vmul.f32 %v980, 0.5
    %v998 = vtanh.pop %v997
    %v999 = vmul.f32 %v998, 0.5
    %v1000 = vadd.f32 %v999, 0.5
    %v1001 = vmul.f32 %v1000, %v996
    %1002 = vmatprep.subr.bf16.mxu0 %v477
    %1003 = vmatpush1.bf16.msra.mxu0 %v476
    %1004 = vmatprep.subr.bf16.mxu0 %v481
    %1005 = vmatpush1.bf16.msra.mxu0 %v480
    %1006 = vmatprep.subr.bf16.mxu0 %v485
    %1007 = vmatpush1.bf16.msra.mxu0 %v484
    %1008 = vmatprep.subr.bf16.mxu0 %v489
    %1009 = vmatpush1.bf16.msra.mxu0 %v488
    %1010 = vmatprep.subr.bf16.mxu0 %v493
    %1011 = vmatpush1.bf16.msra.mxu0 %v492
    %1012 = vmatprep.subr.bf16.mxu0 %v497
    %1013 = vmatpush1.bf16.msra.mxu0 %v496
    %1014 = vmatprep.subr.bf16.mxu0 %v501
    %1015 = vmatpush1.bf16.msra.mxu0 %v500
    %1016 = vmatprep.subr.bf16.mxu0 %v505
    %1017 = vmatpush1.bf16.msra.mxu0 %v504
    %1018 = vmatprep.subr.bf16.mxu0 0
    %1019 = vmatpush1.bf16.msra.mxu0 0
    %1020 = vmatprep.subr.bf16.mxu0 0
    %1021 = vmatpush1.bf16.msra.mxu0 0
    %1022 = vmatprep.subr.bf16.mxu0 0
    %1023 = vmatpush1.bf16.msra.mxu0 0
    %1024 = vmatprep.subr.bf16.mxu0 0
    %1025 = vmatpush1.bf16.msra.mxu0 0
    %1026 = vmatprep.subr.bf16.mxu0 0
    %1027 = vmatpush1.bf16.msra.mxu0 0
    %1028 = vmatprep.subr.bf16.mxu0 0
    %1029 = vmatpush1.bf16.msra.mxu0 0
    %1030 = vmatprep.subr.bf16.mxu0 0
    %1031 = vmatpush1.bf16.msra.mxu0 0
    %1032 = vmatprep.subr.bf16.mxu0 0
    %1033 = vmatpush1.bf16.msra.mxu0 0
    %1034 = vmatprep.mubr.bf16.mxu0 0
    %1035 = vmatmul.mubr.bf16.gmra.mrb[0].mxu0 %v898
    %v1036 = vpop.f32.mrb[0].mxu0
    %v1037 = vadd.f32 0.0, %v1036
    %v1038 = vpop.f32.mrb[0].mxu0
    %v1039 = vadd.f32 0.0, %v1038
    %v1040 = vpop.f32.mrb[0].mxu0
    %v1041 = vpop.f32.mrb[0].mxu0
    %1042 = vdwg.mxu0
    %1043 = vmatprep.subr.bf16.mxu0 %v479
    %1044 = vmatpush1.bf16.msra.mxu0 %v478
    %1045 = vmatprep.subr.bf16.mxu0 %v483
    %1046 = vmatpush1.bf16.msra.mxu0 %v482
    %1047 = vmatprep.subr.bf16.mxu0 %v487
    %1048 = vmatpush1.bf16.msra.mxu0 %v486
    %1049 = vmatprep.subr.bf16.mxu0 %v491
    %1050 = vmatpush1.bf16.msra.mxu0 %v490
    %1051 = vmatprep.subr.bf16.mxu0 %v495
    %1052 = vmatpush1.bf16.msra.mxu0 %v494
    %1053 = vmatprep.subr.bf16.mxu0 %v499
    %1054 = vmatpush1.bf16.msra.mxu0 %v498
    %1055 = vmatprep.subr.bf16.mxu0 %v503
    %1056 = vmatpush1.bf16.msra.mxu0 %v502
    %1057 = vmatprep.subr.bf16.mxu0 %v507
    %1058 = vmatpush1.bf16.msra.mxu0 %v506
    %1059 = vmatprep.subr.bf16.mxu0 0
    %1060 = vmatpush1.bf16.msra.mxu0 0
    %1061 = vmatprep.subr.bf16.mxu0 0
    %1062 = vmatpush1.bf16.msra.mxu0 0
    %1063 = vmatprep.subr.bf16.mxu0 0
    %1064 = vmatpush1.bf16.msra.mxu0 0
    %1065 = vmatprep.subr.bf16.mxu0 0
    %1066 = vmatpush1.bf16.msra.mxu0 0
    %1067 = vmatprep.subr.bf16.mxu0 0
    %1068 = vmatpush1.bf16.msra.mxu0 0
    %1069 = vmatprep.subr.bf16.mxu0 0
    %1070 = vmatpush1.bf16.msra.mxu0 0
    %1071 = vmatprep.subr.bf16.mxu0 0
    %1072 = vmatpush1.bf16.msra.mxu0 0
    %1073 = vmatprep.subr.bf16.mxu0 0
    %1074 = vmatpush1.bf16.msra.mxu0 0
    %1075 = vmatprep.mubr.bf16.mxu0 0
    %1076 = vmatmul.mubr.bf16.gmra.mrb[0].mxu0 %v898
    %v1077 = vpop.f32.mrb[0].mxu0
    %v1078 = vadd.f32 0.0, %v1077
    %v1079 = vpop.f32.mrb[0].mxu0
    %v1080 = vadd.f32 0.0, %v1079
    %v1081 = vpop.f32.mrb[0].mxu0
    %v1082 = vpop.f32.mrb[0].mxu0
    %1083 = vdwg.mxu0
    %v1088 = vrot.slane %v1037, 5
    %v1089 = vrot.slane %v1039, 5
    %v1090 = vrot.slane %v1078, 5
    %v1091 = vrot.slane %v1080, 5
    %v1096 = vadd.f32 %v134, %v1088
    %v1097 = vadd.f32 %v135, %v1089
    %v1098 = vadd.f32 %v136, %v1090
    %v1099 = vadd.f32 %v137, %v1091
    %v1100 = vmul.f32 %v1096, 0.5
    %v1101 = vtanh.pop %v1100
    %v1102 = vmul.f32 %v1101, 0.5
    %v1103 = vadd.f32 %v1102, 0.5
    %v1104 = vmul.f32 %v1097, 0.5
    %v1105 = vtanh.pop %v1104
    %v1106 = vmul.f32 %v1105, 0.5
    %v1107 = vadd.f32 %v1106, 0.5
    %v1108 = vtanh.pop %v1098
    %v1110 = vrot.slane %v884, 7
    %v1112 = vmul.f32 %v1107, %v1110
    %v1113 = vmul.f32 %v1103, %v1108
    %v1114 = vadd.f32 %v1112, %v1113
    %v1115 = vtanh.pop %v1114
    %v1116 = vmul.f32 %v1099, 0.5
    %v1117 = vtanh.pop %v1116
    %v1118 = vmul.f32 %v1117, 0.5
    %v1119 = vadd.f32 %v1118, 0.5
    %v1120 = vmul.f32 %v1119, %v1115
    %v1122 = vrot.slane %v1001, 5
    %v1124 = vpack.c.bf16 %v1120, %v1120
    %v1125 = vpack.c.bf16 %v1122, %v1122
    %v1127 = vshrl.u32 %v1124, 16
    %v1129 = vrot.slane %v1127, 1
    %v1131 = vshrl.u32 %v1125, 16
    %v1133 = vrot.slane %v1131, 1
    %1136 = vmatprep.subr.bf16.mxu0 %v194
    %1137 = vmatpush1.bf16.msra.mxu0 %v193
    %1138 = vmatprep.subr.bf16.mxu0 %v198
    %1139 = vmatpush1.bf16.msra.mxu0 %v197
    %1140 = vmatprep.subr.bf16.mxu0 %v202
    %1141 = vmatpush1.bf16.msra.mxu0 %v201
    %1142 = vmatprep.subr.bf16.mxu0 %v206
    %1143 = vmatpush1.bf16.msra.mxu0 %v205
    %1144 = vmatprep.subr.bf16.mxu0 %v210
    %1145 = vmatpush1.bf16.msra.mxu0 %v209
    %1146 = vmatprep.subr.bf16.mxu0 %v214
    %1147 = vmatpush1.bf16.msra.mxu0 %v213
    %1148 = vmatprep.subr.bf16.mxu0 %v218
    %1149 = vmatpush1.bf16.msra.mxu0 %v217
    %1150 = vmatprep.subr.bf16.mxu0 %v222
    %1151 = vmatpush1.bf16.msra.mxu0 %v221
    %1152 = vmatprep.subr.bf16.mxu0 %v226
    %1153 = vmatpush1.bf16.msra.mxu0 %v225
    %1154 = vmatprep.subr.bf16.mxu0 %v230
    %1155 = vmatpush1.bf16.msra.mxu0 %v229
    %1156 = vmatprep.subr.bf16.mxu0 %v234
    %1157 = vmatpush1.bf16.msra.mxu0 %v233
    %1158 = vmatprep.subr.bf16.mxu0 %v238
    %1159 = vmatpush1.bf16.msra.mxu0 %v237
    %1160 = vmatprep.subr.bf16.mxu0 %v242
    %1161 = vmatpush1.bf16.msra.mxu0 %v241
    %1162 = vmatprep.subr.bf16.mxu0 %v246
    %1163 = vmatpush1.bf16.msra.mxu0 %v245
    %1164 = vmatprep.subr.bf16.mxu0 %v250
    %1165 = vmatpush1.bf16.msra.mxu0 %v249
    %1166 = vmatprep.subr.bf16.mxu0 %v254
    %1167 = vmatpush1.bf16.msra.mxu0 %v253
    %1168 = vmatprep.mubr.bf16.mxu0 %v1133
    %1169 = vmatmul.mubr.bf16.gmra.mrb[0].mxu0 %v1129
    %v1170 = vpop.f32.mrb[0].mxu0
    %v1171 = vadd.f32 %v263, %v1170
    %v1172 = vpop.f32.mrb[0].mxu0
    %v1173 = vadd.f32 %v267, %v1172
    %v1174 = vpop.f32.mrb[0].mxu0
    %v1175 = vpop.f32.mrb[0].mxu0
    %1176 = vdwg.mxu0
    %1177 = vmatprep.subr.bf16.mxu0 %v196
    %1178 = vmatpush1.bf16.msra.mxu0 %v195
    %1179 = vmatprep.subr.bf16.mxu0 %v200
    %1180 = vmatpush1.bf16.msra.mxu0 %v199
    %1181 = vmatprep.subr.bf16.mxu0 %v204
    %1182 = vmatpush1.bf16.msra.mxu0 %v203
    %1183 = vmatprep.subr.bf16.mxu0 %v208
    %1184 = vmatpush1.bf16.msra.mxu0 %v207
    %1185 = vmatprep.subr.bf16.mxu0 %v212
    %1186 = vmatpush1.bf16.msra.mxu0 %v211
    %1187 = vmatprep.subr.bf16.mxu0 %v216
    %1188 = vmatpush1.bf16.msra.mxu0 %v215
    %1189 = vmatprep.subr.bf16.mxu0 %v220
    %1190 = vmatpush1.bf16.msra.mxu0 %v219
    %1191 = vmatprep.subr.bf16.mxu0 %v224
    %1192 = vmatpush1.bf16.msra.mxu0 %v223
    %1193 = vmatprep.subr.bf16.mxu0 %v228
    %1194 = vmatpush1.bf16.msra.mxu0 %v227
    %1195 = vmatprep.subr.bf16.mxu0 %v232
    %1196 = vmatpush1.bf16.msra.mxu0 %v231
    %1197 = vmatprep.subr.bf16.mxu0 %v236
    %1198 = vmatpush1.bf16.msra.mxu0 %v235
    %1199 = vmatprep.subr.bf16.mxu0 %v240
    %1200 = vmatpush1.bf16.msra.mxu0 %v239
    %1201 = vmatprep.subr.bf16.mxu0 %v244
    %1202 = vmatpush1.bf16.msra.mxu0 %v243
    %1203 = vmatprep.subr.bf16.mxu0 %v248
    %1204 = vmatpush1.bf16.msra.mxu0 %v247
    %1205 = vmatprep.subr.bf16.mxu0 %v252
    %1206 = vmatpush1.bf16.msra.mxu0 %v251
    %1207 = vmatprep.subr.bf16.mxu0 %v256
    %1208 = vmatpush1.bf16.msra.mxu0 %v255
    %1209 = vmatprep.mubr.bf16.mxu0 %v1133
    %1210 = vmatmul.mubr.bf16.gmra.mrb[0].mxu0 %v1129
    %v1211 = vpop.f32.mrb[0].mxu0
    %v1212 = vadd.f32 %v271, %v1211
    %v1213 = vpop.f32.mrb[0].mxu0
    %v1214 = vadd.f32 %v275, %v1213
    %v1215 = vpop.f32.mrb[0].mxu0
    %v1216 = vpop.f32.mrb[0].mxu0
    %1217 = vdwg.mxu0
    %v1218 = vmul.f32 %v1171, 0.5
    %v1219 = vtanh.pop %v1218
    %v1220 = vmul.f32 %v1219, 0.5
    %v1221 = vadd.f32 %v1220, 0.5
    %v1222 = vmul.f32 %v1173, 0.5
    %v1223 = vtanh.pop %v1222
    %v1224 = vmul.f32 %v1223, 0.5
    %v1225 = vadd.f32 %v1224, 0.5
    %v1226 = vtanh.pop %v1212
    %v1227 = vmul.f32 %v1225, %v995
    %v1228 = vmul.f32 %v1221, %v1226
    %v1229 = vadd.f32 %v1227, %v1228
    %v1230 = vtanh.pop %v1229
    %v1231 = vmul.f32 %v1214, 0.5
    %v1232 = vtanh.pop %v1231
    %v1233 = vmul.f32 %v1232, 0.5
    %v1234 = vadd.f32 %v1233, 0.5
    %v1235 = vmul.f32 %v1234, %v1230
    %1236 = vmatprep.subr.bf16.mxu0 %v477
    %1237 = vmatpush1.bf16.msra.mxu0 %v476
    %1238 = vmatprep.subr.bf16.mxu0 %v481
    %1239 = vmatpush1.bf16.msra.mxu0 %v480
    %1240 = vmatprep.subr.bf16.mxu0 %v485
    %1241 = vmatpush1.bf16.msra.mxu0 %v484
    %1242 = vmatprep.subr.bf16.mxu0 %v489
    %1243 = vmatpush1.bf16.msra.mxu0 %v488
    %1244 = vmatprep.subr.bf16.mxu0 %v493
    %1245 = vmatpush1.bf16.msra.mxu0 %v492
    %1246 = vmatprep.subr.bf16.mxu0 %v497
    %1247 = vmatpush1.bf16.msra.mxu0 %v496
    %1248 = vmatprep.subr.bf16.mxu0 %v501
    %1249 = vmatpush1.bf16.msra.mxu0 %v500
    %1250 = vmatprep.subr.bf16.mxu0 %v505
    %1251 = vmatpush1.bf16.msra.mxu0 %v504
    %1252 = vmatprep.subr.bf16.mxu0 0
    %1253 = vmatpush1.bf16.msra.mxu0 0
    %1254 = vmatprep.subr.bf16.mxu0 0
    %1255 = vmatpush1.bf16.msra.mxu0 0
    %1256 = vmatprep.subr.bf16.mxu0 0
    %1257 = vmatpush1.bf16.msra.mxu0 0
    %1258 = vmatprep.subr.bf16.mxu0 0
    %1259 = vmatpush1.bf16.msra.mxu0 0
    %1260 = vmatprep.subr.bf16.mxu0 0
    %1261 = vmatpush1.bf16.msra.mxu0 0
    %1262 = vmatprep.subr.bf16.mxu0 0
    %1263 = vmatpush1.bf16.msra.mxu0 0
    %1264 = vmatprep.subr.bf16.mxu0 0
    %1265 = vmatpush1.bf16.msra.mxu0 0
    %1266 = vmatprep.subr.bf16.mxu0 0
    %1267 = vmatpush1.bf16.msra.mxu0 0
    %1268 = vmatprep.mubr.bf16.mxu0 0
    %1269 = vmatmul.mubr.bf16.gmra.mrb[0].mxu0 %v1129
    %v1270 = vpop.f32.mrb[0].mxu0
    %v1271 = vadd.f32 0.0, %v1270
    %v1272 = vpop.f32.mrb[0].mxu0
    %v1273 = vadd.f32 0.0, %v1272
    %v1274 = vpop.f32.mrb[0].mxu0
    %v1275 = vpop.f32.mrb[0].mxu0
    %1276 = vdwg.mxu0
    %1277 = vmatprep.subr.bf16.mxu0 %v479
    %1278 = vmatpush1.bf16.msra.mxu0 %v478
    %1279 = vmatprep.subr.bf16.mxu0 %v483
    %1280 = vmatpush1.bf16.msra.mxu0 %v482
    %1281 = vmatprep.subr.bf16.mxu0 %v487
    %1282 = vmatpush1.bf16.msra.mxu0 %v486
    %1283 = vmatprep.subr.bf16.mxu0 %v491
    %1284 = vmatpush1.bf16.msra.mxu0 %v490
    %1285 = vmatprep.subr.bf16.mxu0 %v495
    %1286 = vmatpush1.bf16.msra.mxu0 %v494
    %1287 = vmatprep.subr.bf16.mxu0 %v499
    %1288 = vmatpush1.bf16.msra.mxu0 %v498
    %1289 = vmatprep.subr.bf16.mxu0 %v503
    %1290 = vmatpush1.bf16.msra.mxu0 %v502
    %1291 = vmatprep.subr.bf16.mxu0 %v507
    %1292 = vmatpush1.bf16.msra.mxu0 %v506
    %1293 = vmatprep.subr.bf16.mxu0 0
    %1294 = vmatpush1.bf16.msra.mxu0 0
    %1295 = vmatprep.subr.bf16.mxu0 0
    %1296 = vmatpush1.bf16.msra.mxu0 0
    %1297 = vmatprep.subr.bf16.mxu0 0
    %1298 = vmatpush1.bf16.msra.mxu0 0
    %1299 = vmatprep.subr.bf16.mxu0 0
    %1300 = vmatpush1.bf16.msra.mxu0 0
    %1301 = vmatprep.subr.bf16.mxu0 0
    %1302 = vmatpush1.bf16.msra.mxu0 0
    %1303 = vmatprep.subr.bf16.mxu0 0
    %1304 = vmatpush1.bf16.msra.mxu0 0
    %1305 = vmatprep.subr.bf16.mxu0 0
    %1306 = vmatpush1.bf16.msra.mxu0 0
    %1307 = vmatprep.subr.bf16.mxu0 0
    %1308 = vmatpush1.bf16.msra.mxu0 0
    %1309 = vmatprep.mubr.bf16.mxu0 0
    %1310 = vmatmul.mubr.bf16.gmra.mrb[0].mxu0 %v1129
    %v1311 = vpop.f32.mrb[0].mxu0
    %v1312 = vadd.f32 0.0, %v1311
    %v1313 = vpop.f32.mrb[0].mxu0
    %v1314 = vadd.f32 0.0, %v1313
    %v1315 = vpop.f32.mrb[0].mxu0
    %v1316 = vpop.f32.mrb[0].mxu0
    %1317 = vdwg.mxu0
    %v1322 = vrot.slane %v1271, 4
    %v1323 = vrot.slane %v1273, 4
    %v1324 = vrot.slane %v1312, 4
    %v1325 = vrot.slane %v1314, 4
    %v1330 = vadd.f32 %v134, %v1322
    %v1331 = vadd.f32 %v135, %v1323
    %v1332 = vadd.f32 %v136, %v1324
    %v1333 = vadd.f32 %v137, %v1325
    %v1334 = vmul.f32 %v1330, 0.5
    %v1335 = vtanh.pop %v1334
    %v1336 = vmul.f32 %v1335, 0.5
    %v1337 = vadd.f32 %v1336, 0.5
    %v1338 = vmul.f32 %v1331, 0.5
    %v1339 = vtanh.pop %v1338
    %v1340 = vmul.f32 %v1339, 0.5
    %v1341 = vadd.f32 %v1340, 0.5
    %v1342 = vtanh.pop %v1332
    %v1344 = vrot.slane %v1114, 7
    %v1346 = vmul.f32 %v1341, %v1344
    %v1347 = vmul.f32 %v1337, %v1342
    %v1348 = vadd.f32 %v1346, %v1347
    %v1349 = vtanh.pop %v1348
    %v1350 = vmul.f32 %v1333, 0.5
    %v1351 = vtanh.pop %v1350
    %v1352 = vmul.f32 %v1351, 0.5
    %v1353 = vadd.f32 %v1352, 0.5
    %v1354 = vmul.f32 %v1353, %v1349
    %v1356 = vrot.slane %v1235, 4
    %v1358 = vpack.c.bf16 %v1354, %v1354
    %v1359 = vpack.c.bf16 %v1356, %v1356
    %v1362 = vrot.slane %v1358, 2
    %v1363 = vrot.slane %v1359, 2
    %1366 = vmatprep.subr.bf16.mxu0 %v194
    %1367 = vmatpush1.bf16.msra.mxu0 %v193
    %1368 = vmatprep.subr.bf16.mxu0 %v198
    %1369 = vmatpush1.bf16.msra.mxu0 %v197
    %1370 = vmatprep.subr.bf16.mxu0 %v202
    %1371 = vmatpush1.bf16.msra.mxu0 %v201
    %1372 = vmatprep.subr.bf16.mxu0 %v206
    %1373 = vmatpush1.bf16.msra.mxu0 %v205
    %1374 = vmatprep.subr.bf16.mxu0 %v210
    %1375 = vmatpush1.bf16.msra.mxu0 %v209
    %1376 = vmatprep.subr.bf16.mxu0 %v214
    %1377 = vmatpush1.bf16.msra.mxu0 %v213
    %1378 = vmatprep.subr.bf16.mxu0 %v218
    %1379 = vmatpush1.bf16.msra.mxu0 %v217
    %1380 = vmatprep.subr.bf16.mxu0 %v222
    %1381 = vmatpush1.bf16.msra.mxu0 %v221
    %1382 = vmatprep.subr.bf16.mxu0 %v226
    %1383 = vmatpush1.bf16.msra.mxu0 %v225
    %1384 = vmatprep.subr.bf16.mxu0 %v230
    %1385 = vmatpush1.bf16.msra.mxu0 %v229
    %1386 = vmatprep.subr.bf16.mxu0 %v234
    %1387 = vmatpush1.bf16.msra.mxu0 %v233
    %1388 = vmatprep.subr.bf16.mxu0 %v238
    %1389 = vmatpush1.bf16.msra.mxu0 %v237
    %1390 = vmatprep.subr.bf16.mxu0 %v242
    %1391 = vmatpush1.bf16.msra.mxu0 %v241
    %1392 = vmatprep.subr.bf16.mxu0 %v246
    %1393 = vmatpush1.bf16.msra.mxu0 %v245
    %1394 = vmatprep.subr.bf16.mxu0 %v250
    %1395 = vmatpush1.bf16.msra.mxu0 %v249
    %1396 = vmatprep.subr.bf16.mxu0 %v254
    %1397 = vmatpush1.bf16.msra.mxu0 %v253
    %1398 = vmatprep.mubr.bf16.mxu0 %v1363
    %1399 = vmatmul.mubr.bf16.gmra.mrb[0].mxu0 %v1362
    %v1400 = vpop.f32.mrb[0].mxu0
    %v1401 = vadd.f32 %v263, %v1400
    %v1402 = vpop.f32.mrb[0].mxu0
    %v1403 = vadd.f32 %v267, %v1402
    %v1404 = vpop.f32.mrb[0].mxu0
    %v1405 = vpop.f32.mrb[0].mxu0
    %1406 = vdwg.mxu0
    %1407 = vmatprep.subr.bf16.mxu0 %v196
    %1408 = vmatpush1.bf16.msra.mxu0 %v195
    %1409 = vmatprep.subr.bf16.mxu0 %v200
    %1410 = vmatpush1.bf16.msra.mxu0 %v199
    %1411 = vmatprep.subr.bf16.mxu0 %v204
    %1412 = vmatpush1.bf16.msra.mxu0 %v203
    %1413 = vmatprep.subr.bf16.mxu0 %v208
    %1414 = vmatpush1.bf16.msra.mxu0 %v207
    %1415 = vmatprep.subr.bf16.mxu0 %v212
    %1416 = vmatpush1.bf16.msra.mxu0 %v211
    %1417 = vmatprep.subr.bf16.mxu0 %v216
    %1418 = vmatpush1.bf16.msra.mxu0 %v215
    %1419 = vmatprep.subr.bf16.mxu0 %v220
    %1420 = vmatpush1.bf16.msra.mxu0 %v219
    %1421 = vmatprep.subr.bf16.mxu0 %v224
    %1422 = vmatpush1.bf16.msra.mxu0 %v223
    %1423 = vmatprep.subr.bf16.mxu0 %v228
    %1424 = vmatpush1.bf16.msra.mxu0 %v227
    %1425 = vmatprep.subr.bf16.mxu0 %v232
    %1426 = vmatpush1.bf16.msra.mxu0 %v231
    %1427 = vmatprep.subr.bf16.mxu0 %v236
    %1428 = vmatpush1.bf16.msra.mxu0 %v235
    %1429 = vmatprep.subr.bf16.mxu0 %v240
    %1430 = vmatpush1.bf16.msra.mxu0 %v239
    %1431 = vmatprep.subr.bf16.mxu0 %v244
    %1432 = vmatpush1.bf16.msra.mxu0 %v243
    %1433 = vmatprep.subr.bf16.mxu0 %v248
    %1434 = vmatpush1.bf16.msra.mxu0 %v247
    %1435 = vmatprep.subr.bf16.mxu0 %v252
    %1436 = vmatpush1.bf16.msra.mxu0 %v251
    %1437 = vmatprep.subr.bf16.mxu0 %v256
    %1438 = vmatpush1.bf16.msra.mxu0 %v255
    %1439 = vmatprep.mubr.bf16.mxu0 %v1363
    %1440 = vmatmul.mubr.bf16.gmra.mrb[0].mxu0 %v1362
    %v1441 = vpop.f32.mrb[0].mxu0
    %v1442 = vadd.f32 %v271, %v1441
    %v1443 = vpop.f32.mrb[0].mxu0
    %v1444 = vadd.f32 %v275, %v1443
    %v1445 = vpop.f32.mrb[0].mxu0
    %v1446 = vpop.f32.mrb[0].mxu0
    %1447 = vdwg.mxu0
    %v1448 = vmul.f32 %v1401, 0.5
    %v1449 = vtanh.pop %v1448
    %v1450 = vmul.f32 %v1449, 0.5
    %v1451 = vadd.f32 %v1450, 0.5
    %v1452 = vmul.f32 %v1403, 0.5
    %v1453 = vtanh.pop %v1452
    %v1454 = vmul.f32 %v1453, 0.5
    %v1455 = vadd.f32 %v1454, 0.5
    %v1456 = vtanh.pop %v1442
    %v1457 = vmul.f32 %v1455, %v1229
    %v1458 = vmul.f32 %v1451, %v1456
    %v1459 = vadd.f32 %v1457, %v1458
    %v1460 = vtanh.pop %v1459
    %v1461 = vmul.f32 %v1444, 0.5
    %v1462 = vtanh.pop %v1461
    %v1463 = vmul.f32 %v1462, 0.5
    %v1464 = vadd.f32 %v1463, 0.5
    %v1465 = vmul.f32 %v1464, %v1460
    %1466 = vmatprep.subr.bf16.mxu0 %v477
    %1467 = vmatpush1.bf16.msra.mxu0 %v476
    %1468 = vmatprep.subr.bf16.mxu0 %v481
    %1469 = vmatpush1.bf16.msra.mxu0 %v480
    %1470 = vmatprep.subr.bf16.mxu0 %v485
    %1471 = vmatpush1.bf16.msra.mxu0 %v484
    %1472 = vmatprep.subr.bf16.mxu0 %v489
    %1473 = vmatpush1.bf16.msra.mxu0 %v488
    %1474 = vmatprep.subr.bf16.mxu0 %v493
    %1475 = vmatpush1.bf16.msra.mxu0 %v492
    %1476 = vmatprep.subr.bf16.mxu0 %v497
    %1477 = vmatpush1.bf16.msra.mxu0 %v496
    %1478 = vmatprep.subr.bf16.mxu0 %v501
    %1479 = vmatpush1.bf16.msra.mxu0 %v500
    %1480 = vmatprep.subr.bf16.mxu0 %v505
    %1481 = vmatpush1.bf16.msra.mxu0 %v504
    %1482 = vmatprep.subr.bf16.mxu0 0
    %1483 = vmatpush1.bf16.msra.mxu0 0
    %1484 = vmatprep.subr.bf16.mxu0 0
    %1485 = vmatpush1.bf16.msra.mxu0 0
    %1486 = vmatprep.subr.bf16.mxu0 0
    %1487 = vmatpush1.bf16.msra.mxu0 0
    %1488 = vmatprep.subr.bf16.mxu0 0
    %1489 = vmatpush1.bf16.msra.mxu0 0
    %1490 = vmatprep.subr.bf16.mxu0 0
    %1491 = vmatpush1.bf16.msra.mxu0 0
    %1492 = vmatprep.subr.bf16.mxu0 0
    %1493 = vmatpush1.bf16.msra.mxu0 0
    %1494 = vmatprep.subr.bf16.mxu0 0
    %1495 = vmatpush1.bf16.msra.mxu0 0
    %1496 = vmatprep.subr.bf16.mxu0 0
    %1497 = vmatpush1.bf16.msra.mxu0 0
    %1498 = vmatprep.mubr.bf16.mxu0 0
    %1499 = vmatmul.mubr.bf16.gmra.mrb[0].mxu0 %v1362
    %v1500 = vpop.f32.mrb[0].mxu0
    %v1501 = vadd.f32 0.0, %v1500
    %v1502 = vpop.f32.mrb[0].mxu0
    %v1503 = vadd.f32 0.0, %v1502
    %v1504 = vpop.f32.mrb[0].mxu0
    %v1505 = vpop.f32.mrb[0].mxu0
    %1506 = vdwg.mxu0
    %1507 = vmatprep.subr.bf16.mxu0 %v479
    %1508 = vmatpush1.bf16.msra.mxu0 %v478
    %1509 = vmatprep.subr.bf16.mxu0 %v483
    %1510 = vmatpush1.bf16.msra.mxu0 %v482
    %1511 = vmatprep.subr.bf16.mxu0 %v487
    %1512 = vmatpush1.bf16.msra.mxu0 %v486
    %1513 = vmatprep.subr.bf16.mxu0 %v491
    %1514 = vmatpush1.bf16.msra.mxu0 %v490
    %1515 = vmatprep.subr.bf16.mxu0 %v495
    %1516 = vmatpush1.bf16.msra.mxu0 %v494
    %1517 = vmatprep.subr.bf16.mxu0 %v499
    %1518 = vmatpush1.bf16.msra.mxu0 %v498
    %1519 = vmatprep.subr.bf16.mxu0 %v503
    %1520 = vmatpush1.bf16.msra.mxu0 %v502
    %1521 = vmatprep.subr.bf16.mxu0 %v507
    %1522 = vmatpush1.bf16.msra.mxu0 %v506
    %1523 = vmatprep.subr.bf16.mxu0 0
    %1524 = vmatpush1.bf16.msra.mxu0 0
    %1525 = vmatprep.subr.bf16.mxu0 0
    %1526 = vmatpush1.bf16.msra.mxu0 0
    %1527 = vmatprep.subr.bf16.mxu0 0
    %1528 = vmatpush1.bf16.msra.mxu0 0
    %1529 = vmatprep.subr.bf16.mxu0 0
    %1530 = vmatpush1.bf16.msra.mxu0 0
    %1531 = vmatprep.subr.bf16.mxu0 0
    %1532 = vmatpush1.bf16.msra.mxu0 0
    %1533 = vmatprep.subr.bf16.mxu0 0
    %1534 = vmatpush1.bf16.msra.mxu0 0
    %1535 = vmatprep.subr.bf16.mxu0 0
    %1536 = vmatpush1.bf16.msra.mxu0 0
    %1537 = vmatprep.subr.bf16.mxu0 0
    %1538 = vmatpush1.bf16.msra.mxu0 0
    %1539 = vmatprep.mubr.bf16.mxu0 0
    %1540 = vmatmul.mubr.bf16.gmra.mrb[0].mxu0 %v1362
    %v1541 = vpop.f32.mrb[0].mxu0
    %v1542 = vadd.f32 0.0, %v1541
    %v1543 = vpop.f32.mrb[0].mxu0
    %v1544 = vadd.f32 0.0, %v1543
    %v1545 = vpop.f32.mrb[0].mxu0
    %v1546 = vpop.f32.mrb[0].mxu0
    %1547 = vdwg.mxu0
    %v1552 = vrot.slane %v1501, 3
    %v1553 = vrot.slane %v1503, 3
    %v1554 = vrot.slane %v1542, 3
    %v1555 = vrot.slane %v1544, 3
    %v1560 = vadd.f32 %v134, %v1552
    %v1561 = vadd.f32 %v135, %v1553
    %v1562 = vadd.f32 %v136, %v1554
    %v1563 = vadd.f32 %v137, %v1555
    %v1564 = vmul.f32 %v1560, 0.5
    %v1565 = vtanh.pop %v1564
    %v1566 = vmul.f32 %v1565, 0.5
    %v1567 = vadd.f32 %v1566, 0.5
    %v1568 = vmul.f32 %v1561, 0.5
    %v1569 = vtanh.pop %v1568
    %v1570 = vmul.f32 %v1569, 0.5
    %v1571 = vadd.f32 %v1570, 0.5
    %v1572 = vtanh.pop %v1562
    %v1574 = vrot.slane %v1348, 7
    %v1576 = vmul.f32 %v1571, %v1574
    %v1577 = vmul.f32 %v1567, %v1572
    %v1578 = vadd.f32 %v1576, %v1577
    %v1579 = vtanh.pop %v1578
    %v1580 = vmul.f32 %v1563, 0.5
    %v1581 = vtanh.pop %v1580
    %v1582 = vmul.f32 %v1581, 0.5
    %v1583 = vadd.f32 %v1582, 0.5
    %v1584 = vmul.f32 %v1583, %v1579
    %v1586 = vrot.slane %v1465, 3
    %v1588 = vpack.c.bf16 %v1584, %v1584
    %v1589 = vpack.c.bf16 %v1586, %v1586
    %v1591 = vshrl.u32 %v1588, 16
    %v1593 = vrot.slane %v1591, 2
    %v1595 = vshrl.u32 %v1589, 16
    %v1597 = vrot.slane %v1595, 2
    %1600 = vmatprep.subr.bf16.mxu0 %v194
    %1601 = vmatpush1.bf16.msra.mxu0 %v193
    %1602 = vmatprep.subr.bf16.mxu0 %v198
    %1603 = vmatpush1.bf16.msra.mxu0 %v197
    %1604 = vmatprep.subr.bf16.mxu0 %v202
    %1605 = vmatpush1.bf16.msra.mxu0 %v201
    %1606 = vmatprep.subr.bf16.mxu0 %v206
    %1607 = vmatpush1.bf16.msra.mxu0 %v205
    %1608 = vmatprep.subr.bf16.mxu0 %v210
    %1609 = vmatpush1.bf16.msra.mxu0 %v209
    %1610 = vmatprep.subr.bf16.mxu0 %v214
    %1611 = vmatpush1.bf16.msra.mxu0 %v213
    %1612 = vmatprep.subr.bf16.mxu0 %v218
    %1613 = vmatpush1.bf16.msra.mxu0 %v217
    %1614 = vmatprep.subr.bf16.mxu0 %v222
    %1615 = vmatpush1.bf16.msra.mxu0 %v221
    %1616 = vmatprep.subr.bf16.mxu0 %v226
    %1617 = vmatpush1.bf16.msra.mxu0 %v225
    %1618 = vmatprep.subr.bf16.mxu0 %v230
    %1619 = vmatpush1.bf16.msra.mxu0 %v229
    %1620 = vmatprep.subr.bf16.mxu0 %v234
    %1621 = vmatpush1.bf16.msra.mxu0 %v233
    %1622 = vmatprep.subr.bf16.mxu0 %v238
    %1623 = vmatpush1.bf16.msra.mxu0 %v237
    %1624 = vmatprep.subr.bf16.mxu0 %v242
    %1625 = vmatpush1.bf16.msra.mxu0 %v241
    %1626 = vmatprep.subr.bf16.mxu0 %v246
    %1627 = vmatpush1.bf16.msra.mxu0 %v245
    %1628 = vmatprep.subr.bf16.mxu0 %v250
    %1629 = vmatpush1.bf16.msra.mxu0 %v249
    %1630 = vmatprep.subr.bf16.mxu0 %v254
    %1631 = vmatpush1.bf16.msra.mxu0 %v253
    %1632 = vmatprep.mubr.bf16.mxu0 %v1597
    %1633 = vmatmul.mubr.bf16.gmra.mrb[0].mxu0 %v1593
    %v1634 = vpop.f32.mrb[0].mxu0
    %v1635 = vadd.f32 %v263, %v1634
    %v1636 = vpop.f32.mrb[0].mxu0
    %v1637 = vadd.f32 %v267, %v1636
    %v1638 = vpop.f32.mrb[0].mxu0
    %v1639 = vpop.f32.mrb[0].mxu0
    %1640 = vdwg.mxu0
    %1641 = vmatprep.subr.bf16.mxu0 %v196
    %1642 = vmatpush1.bf16.msra.mxu0 %v195
    %1643 = vmatprep.subr.bf16.mxu0 %v200
    %1644 = vmatpush1.bf16.msra.mxu0 %v199
    %1645 = vmatprep.subr.bf16.mxu0 %v204
    %1646 = vmatpush1.bf16.msra.mxu0 %v203
    %1647 = vmatprep.subr.bf16.mxu0 %v208
    %1648 = vmatpush1.bf16.msra.mxu0 %v207
    %1649 = vmatprep.subr.bf16.mxu0 %v212
    %1650 = vmatpush1.bf16.msra.mxu0 %v211
    %1651 = vmatprep.subr.bf16.mxu0 %v216
    %1652 = vmatpush1.bf16.msra.mxu0 %v215
    %1653 = vmatprep.subr.bf16.mxu0 %v220
    %1654 = vmatpush1.bf16.msra.mxu0 %v219
    %1655 = vmatprep.subr.bf16.mxu0 %v224
    %1656 = vmatpush1.bf16.msra.mxu0 %v223
    %1657 = vmatprep.subr.bf16.mxu0 %v228
    %1658 = vmatpush1.bf16.msra.mxu0 %v227
    %1659 = vmatprep.subr.bf16.mxu0 %v232
    %1660 = vmatpush1.bf16.msra.mxu0 %v231
    %1661 = vmatprep.subr.bf16.mxu0 %v236
    %1662 = vmatpush1.bf16.msra.mxu0 %v235
    %1663 = vmatprep.subr.bf16.mxu0 %v240
    %1664 = vmatpush1.bf16.msra.mxu0 %v239
    %1665 = vmatprep.subr.bf16.mxu0 %v244
    %1666 = vmatpush1.bf16.msra.mxu0 %v243
    %1667 = vmatprep.subr.bf16.mxu0 %v248
    %1668 = vmatpush1.bf16.msra.mxu0 %v247
    %1669 = vmatprep.subr.bf16.mxu0 %v252
    %1670 = vmatpush1.bf16.msra.mxu0 %v251
    %1671 = vmatprep.subr.bf16.mxu0 %v256
    %1672 = vmatpush1.bf16.msra.mxu0 %v255
    %1673 = vmatprep.mubr.bf16.mxu0 %v1597
    %1674 = vmatmul.mubr.bf16.gmra.mrb[0].mxu0 %v1593
    %v1675 = vpop.f32.mrb[0].mxu0
    %v1676 = vadd.f32 %v271, %v1675
    %v1677 = vpop.f32.mrb[0].mxu0
    %v1678 = vadd.f32 %v275, %v1677
    %v1679 = vpop.f32.mrb[0].mxu0
    %v1680 = vpop.f32.mrb[0].mxu0
    %1681 = vdwg.mxu0
    %v1682 = vmul.f32 %v1635, 0.5
    %v1683 = vtanh.pop %v1682
    %v1684 = vmul.f32 %v1683, 0.5
    %v1685 = vadd.f32 %v1684, 0.5
    %v1686 = vmul.f32 %v1637, 0.5
    %v1687 = vtanh.pop %v1686
    %v1688 = vmul.f32 %v1687, 0.5
    %v1689 = vadd.f32 %v1688, 0.5
    %v1690 = vtanh.pop %v1676
    %v1691 = vmul.f32 %v1689, %v1459
    %v1692 = vmul.f32 %v1685, %v1690
    %v1693 = vadd.f32 %v1691, %v1692
    %v1694 = vtanh.pop %v1693
    %v1695 = vmul.f32 %v1678, 0.5
    %v1696 = vtanh.pop %v1695
    %v1697 = vmul.f32 %v1696, 0.5
    %v1698 = vadd.f32 %v1697, 0.5
    %v1699 = vmul.f32 %v1698, %v1694
    %1700 = vmatprep.subr.bf16.mxu0 %v477
    %1701 = vmatpush1.bf16.msra.mxu0 %v476
    %1702 = vmatprep.subr.bf16.mxu0 %v481
    %1703 = vmatpush1.bf16.msra.mxu0 %v480
    %1704 = vmatprep.subr.bf16.mxu0 %v485
    %1705 = vmatpush1.bf16.msra.mxu0 %v484
    %1706 = vmatprep.subr.bf16.mxu0 %v489
    %1707 = vmatpush1.bf16.msra.mxu0 %v488
    %1708 = vmatprep.subr.bf16.mxu0 %v493
    %1709 = vmatpush1.bf16.msra.mxu0 %v492
    %1710 = vmatprep.subr.bf16.mxu0 %v497
    %1711 = vmatpush1.bf16.msra.mxu0 %v496
    %1712 = vmatprep.subr.bf16.mxu0 %v501
    %1713 = vmatpush1.bf16.msra.mxu0 %v500
    %1714 = vmatprep.subr.bf16.mxu0 %v505
    %1715 = vmatpush1.bf16.msra.mxu0 %v504
    %1716 = vmatprep.subr.bf16.mxu0 0
    %1717 = vmatpush1.bf16.msra.mxu0 0
    %1718 = vmatprep.subr.bf16.mxu0 0
    %1719 = vmatpush1.bf16.msra.mxu0 0
    %1720 = vmatprep.subr.bf16.mxu0 0
    %1721 = vmatpush1.bf16.msra.mxu0 0
    %1722 = vmatprep.subr.bf16.mxu0 0
    %1723 = vmatpush1.bf16.msra.mxu0 0
    %1724 = vmatprep.subr.bf16.mxu0 0
    %1725 = vmatpush1.bf16.msra.mxu0 0
    %1726 = vmatprep.subr.bf16.mxu0 0
    %1727 = vmatpush1.bf16.msra.mxu0 0
    %1728 = vmatprep.subr.bf16.mxu0 0
    %1729 = vmatpush1.bf16.msra.mxu0 0
    %1730 = vmatprep.subr.bf16.mxu0 0
    %1731 = vmatpush1.bf16.msra.mxu0 0
    %1732 = vmatprep.mubr.bf16.mxu0 0
    %1733 = vmatmul.mubr.bf16.gmra.mrb[0].mxu0 %v1593
    %v1734 = vpop.f32.mrb[0].mxu0
    %v1735 = vadd.f32 0.0, %v1734
    %v1736 = vpop.f32.mrb[0].mxu0
    %v1737 = vadd.f32 0.0, %v1736
    %v1738 = vpop.f32.mrb[0].mxu0
    %v1739 = vpop.f32.mrb[0].mxu0
    %1740 = vdwg.mxu0
    %1741 = vmatprep.subr.bf16.mxu0 %v479
    %1742 = vmatpush1.bf16.msra.mxu0 %v478
    %1743 = vmatprep.subr.bf16.mxu0 %v483
    %1744 = vmatpush1.bf16.msra.mxu0 %v482
    %1745 = vmatprep.subr.bf16.mxu0 %v487
    %1746 = vmatpush1.bf16.msra.mxu0 %v486
    %1747 = vmatprep.subr.bf16.mxu0 %v491
    %1748 = vmatpush1.bf16.msra.mxu0 %v490
    %1749 = vmatprep.subr.bf16.mxu0 %v495
    %1750 = vmatpush1.bf16.msra.mxu0 %v494
    %1751 = vmatprep.subr.bf16.mxu0 %v499
    %1752 = vmatpush1.bf16.msra.mxu0 %v498
    %1753 = vmatprep.subr.bf16.mxu0 %v503
    %1754 = vmatpush1.bf16.msra.mxu0 %v502
    %1755 = vmatprep.subr.bf16.mxu0 %v507
    %1756 = vmatpush1.bf16.msra.mxu0 %v506
    %1757 = vmatprep.subr.bf16.mxu0 0
    %1758 = vmatpush1.bf16.msra.mxu0 0
    %1759 = vmatprep.subr.bf16.mxu0 0
    %1760 = vmatpush1.bf16.msra.mxu0 0
    %1761 = vmatprep.subr.bf16.mxu0 0
    %1762 = vmatpush1.bf16.msra.mxu0 0
    %1763 = vmatprep.subr.bf16.mxu0 0
    %1764 = vmatpush1.bf16.msra.mxu0 0
    %1765 = vmatprep.subr.bf16.mxu0 0
    %1766 = vmatpush1.bf16.msra.mxu0 0
    %1767 = vmatprep.subr.bf16.mxu0 0
    %1768 = vmatpush1.bf16.msra.mxu0 0
    %1769 = vmatprep.subr.bf16.mxu0 0
    %1770 = vmatpush1.bf16.msra.mxu0 0
    %1771 = vmatprep.subr.bf16.mxu0 0
    %1772 = vmatpush1.bf16.msra.mxu0 0
    %1773 = vmatprep.mubr.bf16.mxu0 0
    %1774 = vmatmul.mubr.bf16.gmra.mrb[0].mxu0 %v1593
    %v1775 = vpop.f32.mrb[0].mxu0
    %v1776 = vadd.f32 0.0, %v1775
    %v1777 = vpop.f32.mrb[0].mxu0
    %v1778 = vadd.f32 0.0, %v1777
    %v1779 = vpop.f32.mrb[0].mxu0
    %v1780 = vpop.f32.mrb[0].mxu0
    %1781 = vdwg.mxu0
    %v1786 = vrot.slane %v1735, 2
    %v1787 = vrot.slane %v1737, 2
    %v1788 = vrot.slane %v1776, 2
    %v1789 = vrot.slane %v1778, 2
    %v1794 = vadd.f32 %v134, %v1786
    %v1795 = vadd.f32 %v135, %v1787
    %v1796 = vadd.f32 %v136, %v1788
    %v1797 = vadd.f32 %v137, %v1789
    %v1798 = vmul.f32 %v1794, 0.5
    %v1799 = vtanh.pop %v1798
    %v1800 = vmul.f32 %v1799, 0.5
    %v1801 = vadd.f32 %v1800, 0.5
    %v1802 = vmul.f32 %v1795, 0.5
    %v1803 = vtanh.pop %v1802
    %v1804 = vmul.f32 %v1803, 0.5
    %v1805 = vadd.f32 %v1804, 0.5
    %v1806 = vtanh.pop %v1796
    %v1808 = vrot.slane %v1578, 7
    %v1810 = vmul.f32 %v1805, %v1808
    %v1811 = vmul.f32 %v1801, %v1806
    %v1812 = vadd.f32 %v1810, %v1811
    %v1813 = vtanh.pop %v1812
    %v1814 = vmul.f32 %v1797, 0.5
    %v1815 = vtanh.pop %v1814
    %v1816 = vmul.f32 %v1815, 0.5
    %v1817 = vadd.f32 %v1816, 0.5
    %v1818 = vmul.f32 %v1817, %v1813
    %v1820 = vrot.slane %v1699, 2
    %v1822 = vpack.c.bf16 %v1818, %v1818
    %v1823 = vpack.c.bf16 %v1820, %v1820
    %v1826 = vrot.slane %v1822, 3
    %v1827 = vrot.slane %v1823, 3
    %1830 = vmatprep.subr.bf16.mxu0 %v194
    %1831 = vmatpush1.bf16.msra.mxu0 %v193
    %1832 = vmatprep.subr.bf16.mxu0 %v198
    %1833 = vmatpush1.bf16.msra.mxu0 %v197
    %1834 = vmatprep.subr.bf16.mxu0 %v202
    %1835 = vmatpush1.bf16.msra.mxu0 %v201
    %1836 = vmatprep.subr.bf16.mxu0 %v206
    %1837 = vmatpush1.bf16.msra.mxu0 %v205
    %1838 = vmatprep.subr.bf16.mxu0 %v210
    %1839 = vmatpush1.bf16.msra.mxu0 %v209
    %1840 = vmatprep.subr.bf16.mxu0 %v214
    %1841 = vmatpush1.bf16.msra.mxu0 %v213
    %1842 = vmatprep.subr.bf16.mxu0 %v218
    %1843 = vmatpush1.bf16.msra.mxu0 %v217
    %1844 = vmatprep.subr.bf16.mxu0 %v222
    %1845 = vmatpush1.bf16.msra.mxu0 %v221
    %1846 = vmatprep.subr.bf16.mxu0 %v226
    %1847 = vmatpush1.bf16.msra.mxu0 %v225
    %1848 = vmatprep.subr.bf16.mxu0 %v230
    %1849 = vmatpush1.bf16.msra.mxu0 %v229
    %1850 = vmatprep.subr.bf16.mxu0 %v234
    %1851 = vmatpush1.bf16.msra.mxu0 %v233
    %1852 = vmatprep.subr.bf16.mxu0 %v238
    %1853 = vmatpush1.bf16.msra.mxu0 %v237
    %1854 = vmatprep.subr.bf16.mxu0 %v242
    %1855 = vmatpush1.bf16.msra.mxu0 %v241
    %1856 = vmatprep.subr.bf16.mxu0 %v246
    %1857 = vmatpush1.bf16.msra.mxu0 %v245
    %1858 = vmatprep.subr.bf16.mxu0 %v250
    %1859 = vmatpush1.bf16.msra.mxu0 %v249
    %1860 = vmatprep.subr.bf16.mxu0 %v254
    %1861 = vmatpush1.bf16.msra.mxu0 %v253
    %1862 = vmatprep.mubr.bf16.mxu0 %v1827
    %1863 = vmatmul.mubr.bf16.gmra.mrb[0].mxu0 %v1826
    %v1864 = vpop.f32.mrb[0].mxu0
    %v1865 = vadd.f32 %v263, %v1864
    %v1866 = vpop.f32.mrb[0].mxu0
    %v1867 = vadd.f32 %v267, %v1866
    %v1868 = vpop.f32.mrb[0].mxu0
    %v1869 = vpop.f32.mrb[0].mxu0
    %1870 = vdwg.mxu0
    %1871 = vmatprep.subr.bf16.mxu0 %v196
    %1872 = vmatpush1.bf16.msra.mxu0 %v195
    %1873 = vmatprep.subr.bf16.mxu0 %v200
    %1874 = vmatpush1.bf16.msra.mxu0 %v199
    %1875 = vmatprep.subr.bf16.mxu0 %v204
    %1876 = vmatpush1.bf16.msra.mxu0 %v203
    %1877 = vmatprep.subr.bf16.mxu0 %v208
    %1878 = vmatpush1.bf16.msra.mxu0 %v207
    %1879 = vmatprep.subr.bf16.mxu0 %v212
    %1880 = vmatpush1.bf16.msra.mxu0 %v211
    %1881 = vmatprep.subr.bf16.mxu0 %v216
    %1882 = vmatpush1.bf16.msra.mxu0 %v215
    %1883 = vmatprep.subr.bf16.mxu0 %v220
    %1884 = vmatpush1.bf16.msra.mxu0 %v219
    %1885 = vmatprep.subr.bf16.mxu0 %v224
    %1886 = vmatpush1.bf16.msra.mxu0 %v223
    %1887 = vmatprep.subr.bf16.mxu0 %v228
    %1888 = vmatpush1.bf16.msra.mxu0 %v227
    %1889 = vmatprep.subr.bf16.mxu0 %v232
    %1890 = vmatpush1.bf16.msra.mxu0 %v231
    %1891 = vmatprep.subr.bf16.mxu0 %v236
    %1892 = vmatpush1.bf16.msra.mxu0 %v235
    %1893 = vmatprep.subr.bf16.mxu0 %v240
    %1894 = vmatpush1.bf16.msra.mxu0 %v239
    %1895 = vmatprep.subr.bf16.mxu0 %v244
    %1896 = vmatpush1.bf16.msra.mxu0 %v243
    %1897 = vmatprep.subr.bf16.mxu0 %v248
    %1898 = vmatpush1.bf16.msra.mxu0 %v247
    %1899 = vmatprep.subr.bf16.mxu0 %v252
    %1900 = vmatpush1.bf16.msra.mxu0 %v251
    %1901 = vmatprep.subr.bf16.mxu0 %v256
    %1902 = vmatpush1.bf16.msra.mxu0 %v255
    %1903 = vmatprep.mubr.bf16.mxu0 %v1827
    %1904 = vmatmul.mubr.bf16.gmra.mrb[0].mxu0 %v1826
    %v1905 = vpop.f32.mrb[0].mxu0
    %v1906 = vadd.f32 %v271, %v1905
    %v1907 = vpop.f32.mrb[0].mxu0
    %v1908 = vadd.f32 %v275, %v1907
    %v1909 = vpop.f32.mrb[0].mxu0
    %v1910 = vpop.f32.mrb[0].mxu0
    %1911 = vdwg.mxu0
    %v1912 = vmul.f32 %v1865, 0.5
    %v1913 = vtanh.pop %v1912
    %v1914 = vmul.f32 %v1913, 0.5
    %v1915 = vadd.f32 %v1914, 0.5
    %v1916 = vmul.f32 %v1867, 0.5
    %v1917 = vtanh.pop %v1916
    %v1918 = vmul.f32 %v1917, 0.5
    %v1919 = vadd.f32 %v1918, 0.5
    %v1920 = vtanh.pop %v1906
    %v1921 = vmul.f32 %v1919, %v1693
    %v1922 = vmul.f32 %v1915, %v1920
    %v1923 = vadd.f32 %v1921, %v1922
    %v1924 = vtanh.pop %v1923
    %v1925 = vmul.f32 %v1908, 0.5
    %v1926 = vtanh.pop %v1925
    %v1927 = vmul.f32 %v1926, 0.5
    %v1928 = vadd.f32 %v1927, 0.5
    %v1929 = vmul.f32 %v1928, %v1924
    %1930 = vmatprep.subr.bf16.mxu0 %v477
    %1931 = vmatpush1.bf16.msra.mxu0 %v476
    %1932 = vmatprep.subr.bf16.mxu0 %v481
    %1933 = vmatpush1.bf16.msra.mxu0 %v480
    %1934 = vmatprep.subr.bf16.mxu0 %v485
    %1935 = vmatpush1.bf16.msra.mxu0 %v484
    %1936 = vmatprep.subr.bf16.mxu0 %v489
    %1937 = vmatpush1.bf16.msra.mxu0 %v488
    %1938 = vmatprep.subr.bf16.mxu0 %v493
    %1939 = vmatpush1.bf16.msra.mxu0 %v492
    %1940 = vmatprep.subr.bf16.mxu0 %v497
    %1941 = vmatpush1.bf16.msra.mxu0 %v496
    %1942 = vmatprep.subr.bf16.mxu0 %v501
    %1943 = vmatpush1.bf16.msra.mxu0 %v500
    %1944 = vmatprep.subr.bf16.mxu0 %v505
    %1945 = vmatpush1.bf16.msra.mxu0 %v504
    %1946 = vmatprep.subr.bf16.mxu0 0
    %1947 = vmatpush1.bf16.msra.mxu0 0
    %1948 = vmatprep.subr.bf16.mxu0 0
    %1949 = vmatpush1.bf16.msra.mxu0 0
    %1950 = vmatprep.subr.bf16.mxu0 0
    %1951 = vmatpush1.bf16.msra.mxu0 0
    %1952 = vmatprep.subr.bf16.mxu0 0
    %1953 = vmatpush1.bf16.msra.mxu0 0
    %1954 = vmatprep.subr.bf16.mxu0 0
    %1955 = vmatpush1.bf16.msra.mxu0 0
    %1956 = vmatprep.subr.bf16.mxu0 0
    %1957 = vmatpush1.bf16.msra.mxu0 0
    %1958 = vmatprep.subr.bf16.mxu0 0
    %1959 = vmatpush1.bf16.msra.mxu0 0
    %1960 = vmatprep.subr.bf16.mxu0 0
    %1961 = vmatpush1.bf16.msra.mxu0 0
    %1962 = vmatprep.mubr.bf16.mxu0 0
    %1963 = vmatmul.mubr.bf16.gmra.mrb[0].mxu0 %v1826
    %v1964 = vpop.f32.mrb[0].mxu0
    %v1965 = vadd.f32 0.0, %v1964
    %v1966 = vpop.f32.mrb[0].mxu0
    %v1967 = vadd.f32 0.0, %v1966
    %v1968 = vpop.f32.mrb[0].mxu0
    %v1969 = vpop.f32.mrb[0].mxu0
    %1970 = vdwg.mxu0
    %1971 = vmatprep.subr.bf16.mxu0 %v479
    %1972 = vmatpush1.bf16.msra.mxu0 %v478
    %1973 = vmatprep.subr.bf16.mxu0 %v483
    %1974 = vmatpush1.bf16.msra.mxu0 %v482
    %1975 = vmatprep.subr.bf16.mxu0 %v487
    %1976 = vmatpush1.bf16.msra.mxu0 %v486
    %1977 = vmatprep.subr.bf16.mxu0 %v491
    %1978 = vmatpush1.bf16.msra.mxu0 %v490
    %1979 = vmatprep.subr.bf16.mxu0 %v495
    %1980 = vmatpush1.bf16.msra.mxu0 %v494
    %1981 = vmatprep.subr.bf16.mxu0 %v499
    %1982 = vmatpush1.bf16.msra.mxu0 %v498
    %1983 = vmatprep.subr.bf16.mxu0 %v503
    %1984 = vmatpush1.bf16.msra.mxu0 %v502
    %1985 = vmatprep.subr.bf16.mxu0 %v507
    %1986 = vmatpush1.bf16.msra.mxu0 %v506
    %1987 = vmatprep.subr.bf16.mxu0 0
    %1988 = vmatpush1.bf16.msra.mxu0 0
    %1989 = vmatprep.subr.bf16.mxu0 0
    %1990 = vmatpush1.bf16.msra.mxu0 0
    %1991 = vmatprep.subr.bf16.mxu0 0
    %1992 = vmatpush1.bf16.msra.mxu0 0
    %1993 = vmatprep.subr.bf16.mxu0 0
    %1994 = vmatpush1.bf16.msra.mxu0 0
    %1995 = vmatprep.subr.bf16.mxu0 0
    %1996 = vmatpush1.bf16.msra.mxu0 0
    %1997 = vmatprep.subr.bf16.mxu0 0
    %1998 = vmatpush1.bf16.msra.mxu0 0
    %1999 = vmatprep.subr.bf16.mxu0 0
    %2000 = vmatpush1.bf16.msra.mxu0 0
    %2001 = vmatprep.subr.bf16.mxu0 0
    %2002 = vmatpush1.bf16.msra.mxu0 0
    %2003 = vmatprep.mubr.bf16.mxu0 0
    %2004 = vmatmul.mubr.bf16.gmra.mrb[0].mxu0 %v1826
    %v2005 = vpop.f32.mrb[0].mxu0
    %v2006 = vadd.f32 0.0, %v2005
    %v2007 = vpop.f32.mrb[0].mxu0
    %v2008 = vadd.f32 0.0, %v2007
    %v2009 = vpop.f32.mrb[0].mxu0
    %v2010 = vpop.f32.mrb[0].mxu0
    %2011 = vdwg.mxu0
    %v2016 = vrot.slane %v1965, 1
    %v2017 = vrot.slane %v1967, 1
    %v2018 = vrot.slane %v2006, 1
    %v2019 = vrot.slane %v2008, 1
    %v2024 = vadd.f32 %v134, %v2016
    %v2025 = vadd.f32 %v135, %v2017
    %v2026 = vadd.f32 %v136, %v2018
    %v2027 = vadd.f32 %v137, %v2019
    %v2028 = vmul.f32 %v2024, 0.5
    %v2029 = vtanh.pop %v2028
    %v2030 = vmul.f32 %v2029, 0.5
    %v2031 = vadd.f32 %v2030, 0.5
    %v2032 = vmul.f32 %v2025, 0.5
    %v2033 = vtanh.pop %v2032
    %v2034 = vmul.f32 %v2033, 0.5
    %v2035 = vadd.f32 %v2034, 0.5
    %v2036 = vtanh.pop %v2026
    %v2038 = vrot.slane %v1812, 7
    %v2040 = vmul.f32 %v2035, %v2038
    %v2041 = vmul.f32 %v2031, %v2036
    %v2042 = vadd.f32 %v2040, %v2041
    %v2043 = vtanh.pop %v2042
    %v2044 = vmul.f32 %v2027, 0.5
    %v2045 = vtanh.pop %v2044
    %v2046 = vmul.f32 %v2045, 0.5
    %v2047 = vadd.f32 %v2046, 0.5
    %v2048 = vmul.f32 %v2047, %v2043
    %v2050 = vrot.slane %v1929, 1
    %v2052 = vpack.c.bf16 %v2048, %v2048
    %v2053 = vpack.c.bf16 %v2050, %v2050
    %v2055 = vshrl.u32 %v2052, 16
    %v2057 = vrot.slane %v2055, 3
    %v2059 = vshrl.u32 %v2053, 16
    %v2061 = vrot.slane %v2059, 3
    %2064 = vmatprep.subr.bf16.mxu0 %v194
    %2065 = vmatpush1.bf16.msra.mxu0 %v193
    %2066 = vmatprep.subr.bf16.mxu0 %v198
    %2067 = vmatpush1.bf16.msra.mxu0 %v197
    %2068 = vmatprep.subr.bf16.mxu0 %v202
    %2069 = vmatpush1.bf16.msra.mxu0 %v201
    %2070 = vmatprep.subr.bf16.mxu0 %v206
    %2071 = vmatpush1.bf16.msra.mxu0 %v205
    %2072 = vmatprep.subr.bf16.mxu0 %v210
    %2073 = vmatpush1.bf16.msra.mxu0 %v209
    %2074 = vmatprep.subr.bf16.mxu0 %v214
    %2075 = vmatpush1.bf16.msra.mxu0 %v213
    %2076 = vmatprep.subr.bf16.mxu0 %v218
    %2077 = vmatpush1.bf16.msra.mxu0 %v217
    %2078 = vmatprep.subr.bf16.mxu0 %v222
    %2079 = vmatpush1.bf16.msra.mxu0 %v221
    %2080 = vmatprep.subr.bf16.mxu0 %v226
    %2081 = vmatpush1.bf16.msra.mxu0 %v225
    %2082 = vmatprep.subr.bf16.mxu0 %v230
    %2083 = vmatpush1.bf16.msra.mxu0 %v229
    %2084 = vmatprep.subr.bf16.mxu0 %v234
    %2085 = vmatpush1.bf16.msra.mxu0 %v233
    %2086 = vmatprep.subr.bf16.mxu0 %v238
    %2087 = vmatpush1.bf16.msra.mxu0 %v237
    %2088 = vmatprep.subr.bf16.mxu0 %v242
    %2089 = vmatpush1.bf16.msra.mxu0 %v241
    %2090 = vmatprep.subr.bf16.mxu0 %v246
    %2091 = vmatpush1.bf16.msra.mxu0 %v245
    %2092 = vmatprep.subr.bf16.mxu0 %v250
    %2093 = vmatpush1.bf16.msra.mxu0 %v249
    %2094 = vmatprep.subr.bf16.mxu0 %v254
    %2095 = vmatpush1.bf16.msra.mxu0 %v253
    %2096 = vmatprep.mubr.bf16.mxu0 %v2061
    %2097 = vmatmul.mubr.bf16.gmra.mrb[0].mxu0 %v2057
    %v2098 = vpop.f32.mrb[0].mxu0
    %v2099 = vadd.f32 %v263, %v2098
    %v2100 = vpop.f32.mrb[0].mxu0
    %v2101 = vadd.f32 %v267, %v2100
    %v2102 = vpop.f32.mrb[0].mxu0
    %v2103 = vpop.f32.mrb[0].mxu0
    %2104 = vdwg.mxu0
    %2105 = vmatprep.subr.bf16.mxu0 %v196
    %2106 = vmatpush1.bf16.msra.mxu0 %v195
    %2107 = vmatprep.subr.bf16.mxu0 %v200
    %2108 = vmatpush1.bf16.msra.mxu0 %v199
    %2109 = vmatprep.subr.bf16.mxu0 %v204
    %2110 = vmatpush1.bf16.msra.mxu0 %v203
    %2111 = vmatprep.subr.bf16.mxu0 %v208
    %2112 = vmatpush1.bf16.msra.mxu0 %v207
    %2113 = vmatprep.subr.bf16.mxu0 %v212
    %2114 = vmatpush1.bf16.msra.mxu0 %v211
    %2115 = vmatprep.subr.bf16.mxu0 %v216
    %2116 = vmatpush1.bf16.msra.mxu0 %v215
    %2117 = vmatprep.subr.bf16.mxu0 %v220
    %2118 = vmatpush1.bf16.msra.mxu0 %v219
    %2119 = vmatprep.subr.bf16.mxu0 %v224
    %2120 = vmatpush1.bf16.msra.mxu0 %v223
    %2121 = vmatprep.subr.bf16.mxu0 %v228
    %2122 = vmatpush1.bf16.msra.mxu0 %v227
    %2123 = vmatprep.subr.bf16.mxu0 %v232
    %2124 = vmatpush1.bf16.msra.mxu0 %v231
    %2125 = vmatprep.subr.bf16.mxu0 %v236
    %2126 = vmatpush1.bf16.msra.mxu0 %v235
    %2127 = vmatprep.subr.bf16.mxu0 %v240
    %2128 = vmatpush1.bf16.msra.mxu0 %v239
    %2129 = vmatprep.subr.bf16.mxu0 %v244
    %2130 = vmatpush1.bf16.msra.mxu0 %v243
    %2131 = vmatprep.subr.bf16.mxu0 %v248
    %2132 = vmatpush1.bf16.msra.mxu0 %v247
    %2133 = vmatprep.subr.bf16.mxu0 %v252
    %2134 = vmatpush1.bf16.msra.mxu0 %v251
    %2135 = vmatprep.subr.bf16.mxu0 %v256
    %2136 = vmatpush1.bf16.msra.mxu0 %v255
    %2137 = vmatprep.mubr.bf16.mxu0 %v2061
    %2138 = vmatmul.mubr.bf16.gmra.mrb[0].mxu0 %v2057
    %v2139 = vpop.f32.mrb[0].mxu0
    %v2140 = vadd.f32 %v271, %v2139
    %v2141 = vpop.f32.mrb[0].mxu0
    %v2142 = vadd.f32 %v275, %v2141
    %v2143 = vpop.f32.mrb[0].mxu0
    %v2144 = vpop.f32.mrb[0].mxu0
    %2145 = vdwg.mxu0
    %v2146 = vmul.f32 %v2099, 0.5
    %v2147 = vtanh.pop %v2146
    %v2148 = vmul.f32 %v2147, 0.5
    %v2149 = vadd.f32 %v2148, 0.5
    %v2150 = vmul.f32 %v2101, 0.5
    %v2151 = vtanh.pop %v2150
    %v2152 = vmul.f32 %v2151, 0.5
    %v2153 = vadd.f32 %v2152, 0.5
    %v2154 = vtanh.pop %v2140
    %v2155 = vmul.f32 %v2153, %v1923
    %v2156 = vmul.f32 %v2149, %v2154
    %v2157 = vadd.f32 %v2155, %v2156
    %v2158 = vtanh.pop %v2157
    %v2159 = vmul.f32 %v2142, 0.5
    %v2160 = vtanh.pop %v2159
    %v2161 = vmul.f32 %v2160, 0.5
    %v2162 = vadd.f32 %v2161, 0.5
    %v2163 = vmul.f32 %v2162, %v2158
    %v2164 = vpack.c.bf16 %v2163, %v2163
    %v2165 = vld [vmem:[%s5] sm:$0xf]
    %v2166 = vld [vmem:[%s5 + $0x4] sm:$0xf]
    %v2167 = vld [vmem:[%s5 + $0x8] sm:$0xf]
    %v2168 = vld [vmem:[%s5 + $0xc] sm:$0xf]
    %v2169 = vld [vmem:[%s5 + $0x10] sm:$0xf]
    %v2170 = vld [vmem:[%s5 + $0x14] sm:$0xf]
    %v2171 = vld [vmem:[%s5 + $0x18] sm:$0xf]
    %v2172 = vld [vmem:[%s5 + $0x1c] sm:$0xf]
    %v2173 = vld [vmem:[%s5 + $0x20] sm:$0xf]
    %v2174 = vld [vmem:[%s5 + $0x24] sm:$0xf]
    %v2175 = vld [vmem:[%s5 + $0x28] sm:$0xf]
    %v2176 = vld [vmem:[%s5 + $0x2c] sm:$0xf]
    %v2177 = vld [vmem:[%s5 + $0x30] sm:$0xf]
    %v2178 = vld [vmem:[%s5 + $0x34] sm:$0xf]
    %v2179 = vld [vmem:[%s5 + $0x38] sm:$0xf]
    %v2180 = vld [vmem:[%s5 + $0x3c] sm:$0xf]
    %v2181 = vld [vmem:[#allocation4] sm:$0x1]
    %v2198 = vunpack.c.l.b16 %v2165
    %v2199 = vunpack.c.l.b16 %v2166
    %v2200 = vunpack.c.l.b16 %v2167
    %v2201 = vunpack.c.l.b16 %v2168
    %v2202 = vunpack.c.l.b16 %v2169
    %v2203 = vunpack.c.l.b16 %v2170
    %v2204 = vunpack.c.l.b16 %v2171
    %v2205 = vunpack.c.l.b16 %v2172
    %v2206 = vunpack.c.l.b16 %v2173
    %v2207 = vunpack.c.l.b16 %v2174
    %v2208 = vunpack.c.l.b16 %v2175
    %v2209 = vunpack.c.l.b16 %v2176
    %v2210 = vunpack.c.l.b16 %v2177
    %v2211 = vunpack.c.l.b16 %v2178
    %v2212 = vunpack.c.l.b16 %v2179
    %v2213 = vunpack.c.l.b16 %v2180
    %v2214 = vpack.c.b16 %v2199, %v2198
    %v2215 = vpack.c.b16 %v2201, %v2200
    %v2216 = vpack.c.b16 %v2203, %v2202
    %v2217 = vpack.c.b16 %v2205, %v2204
    %v2218 = vpack.c.b16 %v2207, %v2206
    %v2219 = vpack.c.b16 %v2209, %v2208
    %v2220 = vpack.c.b16 %v2211, %v2210
    %v2221 = vpack.c.b16 %v2213, %v2212
    %2230 = vmatprep.subr.bf16.mxu0 0
    %2231 = vmatpush1.bf16.msra.mxu0 %v2214
    %2232 = vmatprep.subr.bf16.mxu0 0
    %2233 = vmatpush1.bf16.msra.mxu0 %v2215
    %2234 = vmatprep.subr.bf16.mxu0 0
    %2235 = vmatpush1.bf16.msra.mxu0 %v2216
    %2236 = vmatprep.subr.bf16.mxu0 0
    %2237 = vmatpush1.bf16.msra.mxu0 %v2217
    %2238 = vmatprep.subr.bf16.mxu0 0
    %2239 = vmatpush1.bf16.msra.mxu0 %v2218
    %2240 = vmatprep.subr.bf16.mxu0 0
    %2241 = vmatpush1.bf16.msra.mxu0 %v2219
    %2242 = vmatprep.subr.bf16.mxu0 0
    %2243 = vmatpush1.bf16.msra.mxu0 %v2220
    %2244 = vmatprep.subr.bf16.mxu0 0
    %2245 = vmatpush1.bf16.msra.mxu0 %v2221
    %2246 = vmatprep.subr.bf16.mxu0 0
    %2247 = vmatpush1.bf16.msra.mxu0 0
    %2248 = vmatprep.subr.bf16.mxu0 0
    %2249 = vmatpush1.bf16.msra.mxu0 0
    %2250 = vmatprep.subr.bf16.mxu0 0
    %2251 = vmatpush1.bf16.msra.mxu0 0
    %2252 = vmatprep.subr.bf16.mxu0 0
    %2253 = vmatpush1.bf16.msra.mxu0 0
    %2254 = vmatprep.subr.bf16.mxu0 0
    %2255 = vmatpush1.bf16.msra.mxu0 0
    %2256 = vmatprep.subr.bf16.mxu0 0
    %2257 = vmatpush1.bf16.msra.mxu0 0
    %2258 = vmatprep.subr.bf16.mxu0 0
    %2259 = vmatpush1.bf16.msra.mxu0 0
    %2260 = vmatprep.subr.bf16.mxu0 0
    %2261 = vmatpush1.bf16.msra.mxu0 0
    %2262 = vmatprep.mubr.bf16.mxu0 0
    %2263 = vmatmul.mubr.bf16.gmra.mrb[0].mxu0 %v2164
    %v2264 = vpop.f32.mrb[0].mxu0
    %v2265 = vadd.f32 %v2181, %v2264
    %v2266 = vpop.f32.mrb[0].mxu0
    %v2267 = vpop.f32.mrb[0].mxu0
    %v2268 = vpop.f32.mrb[0].mxu0
    %2269 = vdwg.mxu0
    %vm2270 = vcmask 0
    %2271 = vst.msk [vmem:[#allocation8] sm:$0x1] %vm2270, %v2265
    // Predicated region
    $region34: #{tpu_custom_call.1} parent=1 // pred_check
      _
    $region35: #{tpu_custom_call.1} parent=1 // pred_check_branch
      %2273 = sbr.rel (0) target = $region37
    $region36: #{tpu_custom_call.1} parent=1 // pred_region
      %s2275 = ssub.s32 16, 16
      %2276 = vsyncadd [#allocation7], %s2275
      %s2278 = sshll.u32 [#allocation8], 4
      %s2279 = int_to_ptr.vmem [resolvable:$true] %s2278
      %2281 = dma.vmem_to_hbm [thread:$0]  %s2279, 16, %s8, [#allocation7]
    $region37: #{tpu_custom_call.1} parent=1 // pred_fallthru
      _
    // Predicated region
    $region38: #{tpu_custom_call.1} parent=1 // pred_check
      _
    $region39: #{tpu_custom_call.1} parent=1 // pred_check_branch
      %2283 = sbr.rel (0) target = $region41
    $region40: #{tpu_custom_call.1} parent=1 // pred_region
      %2284 = dma.done [#allocation7], 16
    $region41: #{tpu_custom_call.1} parent=1 // pred_fallthru
      _
    %2285 = vsyncpa [#allocation6], 1
    %2286 = vsyncpa [#allocation7], 1
  %2287 = vsyncmov [#allocation3]
  %s2288 = vpop.sfrf %2287
  %p2289 = scmp.eq.s32.totalorder %s2288, 0
  %p2290 = pneg %p2289
  %2292 = shalt.err (%p2290)

</llo_original>
